<compile_context>
chip_gen: v6e
topology: v6e:2x2x1
jax: 0.10.0
libtpu: 0.0.40
codegen_flags: <defaults>
</compile_context>

<pallas_src>
import jax
import jax.numpy as jnp
from jax.experimental import pallas as pl
from jax.experimental.pallas import tpu as pltpu

EPS = 1e-5
KSIZE = 5
STRIDE = 2
PAD = 2
HALO = 8          # sublane-aligned halo (only 2 rows are actually consumed)


def _round_up(x, m):
    return (x + m - 1) // m * m


# ---------------------------------------------------------------------------
# Pallas kernel: fused 5-tap strided conv + BN shift + ReLU [+ pe add]
# ---------------------------------------------------------------------------
def _make_conv_kernel(cin, with_pe):
    """Refs:
       xe, xo      : (TL, Cin)       even/odd phases of the padded input tile
       xe_h, xo_h  : (HALO, Cin)     halo rows following the tile
       w           : (5, Cin, Cout)  conv taps with BN scale folded in
       shift       : (1, Cout)       f32 (beta - mean*scale + bias*scale)
       [pe]        : (TL, Cout)      f32 positional-embedding tile
       out         : (TL, Cout)
       xe_s, xo_s  : (TL+HALO, Cin)  VMEM scratch (halo-extended phases)
    """
    def kernel(xe_ref, xo_ref, xeh_ref, xoh_ref, w_ref, shift_ref, *rest):
        if with_pe:
            pe_ref, o_ref, xe_s, xo_s = rest
        else:
            o_ref, xe_s, xo_s = rest
        tl = o_ref.shape[0]

        # Assemble halo-extended even/odd phases in VMEM (aligned stores).
        xe_s[pl.ds(0, tl), :] = xe_ref[...]
        xe_s[pl.ds(tl, HALO), :] = xeh_ref[...]
        xo_s[pl.ds(0, tl), :] = xo_ref[...]
        xo_s[pl.ds(tl, HALO), :] = xoh_ref[...]

        def tap(src, row, t):
            xt = src[pl.ds(row, tl), :]                  # unit-stride shifted read
            if cin == 1:
                # Layer 1: (TL,1)*(1,Cout) broadcast FMA on the VPU, pure f32.
                return xt.astype(jnp.float32) * w_ref[t].astype(jnp.float32)
            return jnp.dot(xt, w_ref[t], preferred_element_type=jnp.float32)

        # out[o] = W0 xe[o] + W1 xo[o] + W2 xe[o+1] + W3 xo[o+1] + W4 xe[o+2]
        acc = tap(xe_s, 0, 0)
        acc += tap(xo_s, 0, 1)
        acc += tap(xe_s, 1, 2)
        acc += tap(xo_s, 1, 3)
        acc += tap(xe_s, 2, 4)

        y = jnp.maximum(acc + shift_ref[...], 0.0)
        if with_pe:
            y = y + pe_ref[...]
        o_ref[...] = y.astype(o_ref.dtype)

    return kernel


def conv_bn_relu(xe, xo, xe_h, xo_h, w_taps, shift, *, l_out, tl, out_dtype, pe=None):
    """xe/xo: (B, Lp, Cin); xe_h/xo_h: (B, nt, HALO, Cin); w_taps: (5, Cin, Cout);
    shift: (1, Cout) f32; pe: optional (Lp, Cout) f32.  Returns (B, l_out, Cout)."""
    B, lp, cin = xe.shape
    nt = lp // tl
    cout = w_taps.shape[-1]

    in_specs = [
        pl.BlockSpec((None, tl, cin), lambda l, b: (b, l, 0)),
        pl.BlockSpec((None, tl, cin), lambda l, b: (b, l, 0)),
        pl.BlockSpec((None, None, HALO, cin), lambda l, b: (b, l, 0, 0)),
        pl.BlockSpec((None, None, HALO, cin), lambda l, b: (b, l, 0, 0)),
        # weights / shift: constant block index -> fetched once, VMEM-resident
        pl.BlockSpec((KSIZE, cin, cout), lambda l, b: (0, 0, 0)),
        pl.BlockSpec((1, cout), lambda l, b: (0, 0)),
    ]
    args = [xe, xo, xe_h, xo_h, w_taps, shift]
    if pe is not None:
        # l is the OUTER grid axis -> this block is re-fetched only when the
        # L-tile changes (once per tile, not once per (batch, tile)).
        in_specs.append(pl.BlockSpec((tl, cout), lambda l, b: (l, 0)))
        args.append(pe)

    return pl.pallas_call(
        _make_conv_kernel(cin, pe is not None),
        out_shape=jax.ShapeDtypeStruct((B, l_out, cout), out_dtype),
        grid=(nt, B),
        in_specs=in_specs,
        out_specs=pl.BlockSpec((None, tl, cout), lambda l, b: (b, l, 0)),
        scratch_shapes=[pltpu.VMEM((tl + HALO, cin), xe.dtype),
                        pltpu.VMEM((tl + HALO, cin), xe.dtype)],
        compiler_params=pltpu.CompilerParams(
            dimension_semantics=("parallel", "parallel"),
            vmem_limit_bytes=48 * 1024 * 1024),
    )(*args)


# ---------------------------------------------------------------------------
# Plain-JAX glue
# ---------------------------------------------------------------------------
def split_even_odd(h, l_out, tl, dtype):
    """h: (B, L_in, Cin) -> even/odd phases of the (pad=2) padded input.

    xe[j] = xpad[2j], xo[j] = xpad[2j+1] so that
      out[o] = W0 xe[o] + W1 xo[o] + W2 xe[o+1] + W3 xo[o+1] + W4 xe[o+2].
    Only strided/static slices (no gathers); total ~1x the input bytes.
    """
    B, L_in, cin = h.shape
    nt = pl.cdiv(l_out, tl)
    lp = nt * tl
    total = 2 * (lp + tl)                    # covers all main blocks + halos
    h = h.astype(dtype)
    xpad = jnp.pad(h, ((0, 0), (PAD, total - L_in - PAD), (0, 0)))
    xe = xpad[:, 0::2, :]                    # (B, lp + tl, Cin)
    xo = xpad[:, 1::2, :]
    xe_main, xo_main = xe[:, :lp], xo[:, :lp]
    xe_halo = xe[:, tl:].reshape(B, nt, tl, cin)[:, :, :HALO, :]
    xo_halo = xo[:, tl:].reshape(B, nt, tl, cin)[:, :, :HALO, :]
    return xe_main, xo_main, xe_halo, xo_halo, lp


def sinusoidal_pe(embedding_dim, max_len=5000):
    position = jnp.arange(max_len, dtype=jnp.float32)[:, None]
    div_term = jnp.exp(
        jnp.arange(0, embedding_dim, 2, dtype=jnp.float32)
        * (-jnp.log(jnp.float32(10000.0)) / embedding_dim))
    pe = jnp.zeros((max_len, embedding_dim), jnp.float32)
    pe = pe.at[:, 0::2].set(jnp.sin(position * div_term))
    pe = pe.at[:, 1::2].set(jnp.cos(position * div_term))
    return pe


def init_layer_params(key, cin, cout, ksize=5):
    kw, kb, kg, kbeta, km, kv = jax.random.split(key, 6)
    bound = (cin * ksize) ** -0.5
    w = jax.random.uniform(kw, (cout, cin, ksize), jnp.float32, -bound, bound)
    b = jax.random.uniform(kb, (cout,), jnp.float32, -bound, bound)
    gamma = jax.random.uniform(kg, (cout,), jnp.float32, 0.5, 1.5)
    beta = jax.random.uniform(kbeta, (cout,), jnp.float32, -0.1, 0.1)
    mean = jax.random.uniform(km, (cout,), jnp.float32, -0.1, 0.1)
    var = jax.random.uniform(kv, (cout,), jnp.float32, 0.5, 1.5)
    return (w, b, gamma, beta, mean, var)


def encoder_forward(x_ncl, layers, pe_table, tile_l=1024):
    """x_ncl: (B, 1, L) float32 (PyTorch Conv1d layout). Returns (B, ceil(L/8), D)."""
    h = jnp.transpose(x_ncl, (0, 2, 1)).astype(jnp.float32)   # (B, L, 1) channels-last
    n_layers = len(layers)
    for i, (w, b, gamma, beta, mean, var) in enumerate(layers):
        cout, cin, k = w.shape
        assert k == KSIZE and cin == h.shape[2]
        L_in = h.shape[1]
        l_out = (L_in + 2 * PAD - KSIZE) // STRIDE + 1

        # Fold BN (inference mode) + conv bias into per-tap weights / shift.
        scale = gamma / jnp.sqrt(var + EPS)
        shift = (beta - mean * scale + b * scale)[None, :]             # (1, cout) f32
        w_taps = jnp.transpose(w, (2, 1, 0)) * scale[None, None, :]    # (5, cin, cout)

        is_last = i == n_layers - 1
        in_dtype = jnp.float32 if cin == 1 else jnp.bfloat16   # layer 1 stays f32 (VPU)
        out_dtype = jnp.float32 if is_last else jnp.bfloat16   # bf16 intermediates

        tl = min(tile_l, _round_up(l_out, 8))
        xe, xo, xe_h, xo_h, lp = split_even_odd(h, l_out, tl, in_dtype)

        pe_arg = None
        if is_last:
            assert l_out <= pe_table.shape[0], "sequence longer than PE table"
            pe_arg = jnp.pad(pe_table[:l_out], ((0, lp - l_out), (0, 0)))

        h = conv_bn_relu(xe, xo, xe_h, xo_h, w_taps.astype(in_dtype), shift,
                         l_out=l_out, tl=tl, out_dtype=out_dtype, pe=pe_arg)
    # Conv output is already (B, L_out, C): PyTorch's transpose(1, 2) is a no-op here.
    return h


# ---------------------------------------------------------------------------
# Pure-JAX reference (lax.conv) for a numerical sanity check
# ---------------------------------------------------------------------------
def reference_forward(x_ncl, layers, pe):
    h = x_ncl.astype(jnp.float32)
    for (w, b, gamma, beta, mean, var) in layers:
        h = jax.lax.conv_general_dilated(
            h, w, window_strides=(2,), padding=((2, 2),),
            dimension_numbers=("NCH", "OIH", "NCH"))
        h = h + b[None, :, None]
        h = (h - mean[None, :, None]) / jnp.sqrt(var[None, :, None] + EPS)
        h = h * gamma[None, :, None] + beta[None, :, None]
        h = jnp.maximum(h, 0.0)
    h = jnp.transpose(h, (0, 2, 1))
    return h + pe[None, :h.shape[1], :]


if __name__ == "__main__":
    embedding_dim = 256   # Encoder() default; inner conv channels are 64, 128
    key = jax.random.PRNGKey(0)
    kx, k1, k2, k3, kx2 = jax.random.split(key, 5)

    layers = [
        init_layer_params(k1, 1, 64),
        init_layer_params(k2, 64, 128),
        init_layer_params(k3, 128, embedding_dim),
    ]
    pe = sinusoidal_pe(embedding_dim, max_len=5000)

    fwd = jax.jit(encoder_forward, static_argnames=("tile_l",))

    # Small aligned case: (B, 1, L) -> (B, L//8, D).
    B, L = 2, 64
    x = jax.random.normal(kx, (B, 1, L), dtype=jnp.float32)
    out = jax.block_until_ready(fwd(x, layers, pe))
    ref = jax.block_until_ready(reference_forward(x, layers, pe))
    assert out.shape == (B, L // 8, embedding_dim), out.shape
    # bf16 MXU operands / intermediates with f32 accumulation vs. pure-f32 reference.
    assert jnp.allclose(out, ref, atol=2e-2, rtol=2e-2), float(
        jnp.max(jnp.abs(out - ref)))

    # Ragged case: L_out not a multiple of the tile -> partial output blocks.
    B2, L2 = 1, 200
    x2 = jax.random.normal(kx2, (B2, 1, L2), dtype=jnp.float32)
    out2 = jax.block_until_ready(fwd(x2, layers, pe))
    ref2 = jax.block_until_ready(reference_forward(x2, layers, pe))
    assert out2.shape == ref2.shape, (out2.shape, ref2.shape)
    assert jnp.allclose(out2, ref2, atol=2e-2, rtol=2e-2), float(
        jnp.max(jnp.abs(out2 - ref2)))

    print("KERNEL_OK")
</pallas_src>

<mosaic_0001>
module attributes {stable_mosaic.version = 11 : i64} {
  func.func @kernel(%arg0: i32, %arg1: i32, %arg2: memref<1x32x1xf32, #tpu.memory_space<vmem>>, %arg3: memref<1x32x1xf32, #tpu.memory_space<vmem>>, %arg4: memref<1x1x8x1xf32, #tpu.memory_space<vmem>>, %arg5: memref<1x1x8x1xf32, #tpu.memory_space<vmem>>, %arg6: memref<5x1x64xf32, #tpu.memory_space<vmem>>, %arg7: memref<1x64xf32, #tpu.memory_space<vmem>>, %arg8: memref<1x32x64xbf16, #tpu.memory_space<vmem>>, %arg9: memref<40x1xf32, #tpu.memory_space<vmem>>, %arg10: memref<40x1xf32, #tpu.memory_space<vmem>>) attributes {dimension_semantics = [#tpu.dimension_semantics<parallel>, #tpu.dimension_semantics<parallel>], iteration_bounds = array<i64: 1, 2>, scalar_prefetch = 0 : i64, scratch_operands = 2 : i64, tpu.core_type = #tpu.core_type<tc>, window_params = [{transform_indices = @transform_0, window_bounds = array<i64: 1, 32, 1>}, {transform_indices = @transform_1, window_bounds = array<i64: 1, 32, 1>}, {transform_indices = @transform_2, window_bounds = array<i64: 1, 1, 8, 1>}, {transform_indices = @transform_3, window_bounds = array<i64: 1, 1, 8, 1>}, {pipeline_mode = #tpu.pipeline_mode<synchronous>, transform_indices = @transform_4, window_bounds = array<i64: 5, 1, 64>}, {pipeline_mode = #tpu.pipeline_mode<synchronous>, transform_indices = @transform_5, window_bounds = array<i64: 1, 64>}, {transform_indices = @transform_6, window_bounds = array<i64: 1, 32, 64>}]} {
    %c0 = arith.constant 0 : index
    %c0_0 = arith.constant 0 : index
    %c0_1 = arith.constant 0 : index
    %0 = vector.load %arg2[%c0, %c0_0, %c0_1] : memref<1x32x1xf32, #tpu.memory_space<vmem>>, vector<1x32x1xf32>
    %1 = vector.shape_cast %0 : vector<1x32x1xf32> to vector<32x1xf32>
    %c0_2 = arith.constant 0 : index
    %c0_3 = arith.constant 0 : index
    %2 = vector.load %arg9[%c0_2, %c0_3] : memref<40x1xf32, #tpu.memory_space<vmem>>, vector<32x1xf32>
    tpu.vector_store %arg9[%c0_2, %c0_3], %1 {strides = array<i32>} : memref<40x1xf32, #tpu.memory_space<vmem>>, vector<32x1xf32>,
    %c0_4 = arith.constant 0 : index
    %c0_5 = arith.constant 0 : index
    %c0_6 = arith.constant 0 : index
    %c0_7 = arith.constant 0 : index
    %3 = vector.load %arg4[%c0_4, %c0_5, %c0_6, %c0_7] : memref<1x1x8x1xf32, #tpu.memory_space<vmem>>, vector<1x1x8x1xf32>
    %4 = vector.shape_cast %3 : vector<1x1x8x1xf32> to vector<8x1xf32>
    %c32 = arith.constant 32 : index
    %c0_8 = arith.constant 0 : index
    %5 = vector.load %arg9[%c32, %c0_8] : memref<40x1xf32, #tpu.memory_space<vmem>>, vector<8x1xf32>
    tpu.vector_store %arg9[%c32, %c0_8], %4 {strides = array<i32>} : memref<40x1xf32, #tpu.memory_space<vmem>>, vector<8x1xf32>,
    %c0_9 = arith.constant 0 : index
    %c0_10 = arith.constant 0 : index
    %c0_11 = arith.constant 0 : index
    %6 = vector.load %arg3[%c0_9, %c0_10, %c0_11] : memref<1x32x1xf32, #tpu.memory_space<vmem>>, vector<1x32x1xf32>
    %7 = vector.shape_cast %6 : vector<1x32x1xf32> to vector<32x1xf32>
    %c0_12 = arith.constant 0 : index
    %c0_13 = arith.constant 0 : index
    %8 = vector.load %arg10[%c0_12, %c0_13] : memref<40x1xf32, #tpu.memory_space<vmem>>, vector<32x1xf32>
    tpu.vector_store %arg10[%c0_12, %c0_13], %7 {strides = array<i32>} : memref<40x1xf32, #tpu.memory_space<vmem>>, vector<32x1xf32>,
    %c0_14 = arith.constant 0 : index
    %c0_15 = arith.constant 0 : index
    %c0_16 = arith.constant 0 : index
    %c0_17 = arith.constant 0 : index
    %9 = vector.load %arg5[%c0_14, %c0_15, %c0_16, %c0_17] : memref<1x1x8x1xf32, #tpu.memory_space<vmem>>, vector<1x1x8x1xf32>
    %10 = vector.shape_cast %9 : vector<1x1x8x1xf32> to vector<8x1xf32>
    %c32_18 = arith.constant 32 : index
    %c0_19 = arith.constant 0 : index
    %11 = vector.load %arg10[%c32_18, %c0_19] : memref<40x1xf32, #tpu.memory_space<vmem>>, vector<8x1xf32>
    tpu.vector_store %arg10[%c32_18, %c0_19], %10 {strides = array<i32>} : memref<40x1xf32, #tpu.memory_space<vmem>>, vector<8x1xf32>,
    %c0_20 = arith.constant 0 : index
    %c0_21 = arith.constant 0 : index
    %12 = vector.load %arg9[%c0_20, %c0_21] : memref<40x1xf32, #tpu.memory_space<vmem>>, vector<32x1xf32>
    %c0_22 = arith.constant 0 : index
    %c0_23 = arith.constant 0 : index
    %c0_24 = arith.constant 0 : index
    %13 = vector.load %arg6[%c0_22, %c0_23, %c0_24] : memref<5x1x64xf32, #tpu.memory_space<vmem>>, vector<1x1x64xf32>
    %14 = vector.shape_cast %13 : vector<1x1x64xf32> to vector<1x64xf32>
    %15 = vector.broadcast %12 : vector<32x1xf32> to vector<32x64xf32>
    %16 = vector.broadcast %14 : vector<1x64xf32> to vector<32x64xf32>
    %17 = arith.mulf %15, %16 : vector<32x64xf32>
    %c0_25 = arith.constant 0 : index
    %c0_26 = arith.constant 0 : index
    %18 = vector.load %arg10[%c0_25, %c0_26] : memref<40x1xf32, #tpu.memory_space<vmem>>, vector<32x1xf32>
    %c1 = arith.constant 1 : index
    %c0_27 = arith.constant 0 : index
    %c0_28 = arith.constant 0 : index
    %19 = vector.load %arg6[%c1, %c0_27, %c0_28] : memref<5x1x64xf32, #tpu.memory_space<vmem>>, vector<1x1x64xf32>
    %20 = vector.shape_cast %19 : vector<1x1x64xf32> to vector<1x64xf32>
    %21 = vector.broadcast %18 : vector<32x1xf32> to vector<32x64xf32>
    %22 = vector.broadcast %20 : vector<1x64xf32> to vector<32x64xf32>
    %23 = arith.mulf %21, %22 : vector<32x64xf32>
    %24 = arith.addf %17, %23 : vector<32x64xf32>
    %c1_29 = arith.constant 1 : index
    %c0_30 = arith.constant 0 : index
    %25 = vector.load %arg9[%c1_29, %c0_30] : memref<40x1xf32, #tpu.memory_space<vmem>>, vector<32x1xf32>
    %c2 = arith.constant 2 : index
    %c0_31 = arith.constant 0 : index
    %c0_32 = arith.constant 0 : index
    %26 = vector.load %arg6[%c2, %c0_31, %c0_32] : memref<5x1x64xf32, #tpu.memory_space<vmem>>, vector<1x1x64xf32>
    %27 = vector.shape_cast %26 : vector<1x1x64xf32> to vector<1x64xf32>
    %28 = vector.broadcast %25 : vector<32x1xf32> to vector<32x64xf32>
    %29 = vector.broadcast %27 : vector<1x64xf32> to vector<32x64xf32>
    %30 = arith.mulf %28, %29 : vector<32x64xf32>
    %31 = arith.addf %24, %30 : vector<32x64xf32>
    %c1_33 = arith.constant 1 : index
    %c0_34 = arith.constant 0 : index
    %32 = vector.load %arg10[%c1_33, %c0_34] : memref<40x1xf32, #tpu.memory_space<vmem>>, vector<32x1xf32>
    %c3 = arith.constant 3 : index
    %c0_35 = arith.constant 0 : index
    %c0_36 = arith.constant 0 : index
    %33 = vector.load %arg6[%c3, %c0_35, %c0_36] : memref<5x1x64xf32, #tpu.memory_space<vmem>>, vector<1x1x64xf32>
    %34 = vector.shape_cast %33 : vector<1x1x64xf32> to vector<1x64xf32>
    %35 = vector.broadcast %32 : vector<32x1xf32> to vector<32x64xf32>
    %36 = vector.broadcast %34 : vector<1x64xf32> to vector<32x64xf32>
    %37 = arith.mulf %35, %36 : vector<32x64xf32>
    %38 = arith.addf %31, %37 : vector<32x64xf32>
    %c2_37 = arith.constant 2 : index
    %c0_38 = arith.constant 0 : index
    %39 = vector.load %arg9[%c2_37, %c0_38] : memref<40x1xf32, #tpu.memory_space<vmem>>, vector<32x1xf32>
    %c4 = arith.constant 4 : index
    %c0_39 = arith.constant 0 : index
    %c0_40 = arith.constant 0 : index
    %40 = vector.load %arg6[%c4, %c0_39, %c0_40] : memref<5x1x64xf32, #tpu.memory_space<vmem>>, vector<1x1x64xf32>
    %41 = vector.shape_cast %40 : vector<1x1x64xf32> to vector<1x64xf32>
    %42 = vector.broadcast %39 : vector<32x1xf32> to vector<32x64xf32>
    %43 = vector.broadcast %41 : vector<1x64xf32> to vector<32x64xf32>
    %44 = arith.mulf %42, %43 : vector<32x64xf32>
    %45 = arith.addf %38, %44 : vector<32x64xf32>
    %c0_41 = arith.constant 0 : index
    %c0_42 = arith.constant 0 : index
    %46 = vector.load %arg7[%c0_41, %c0_42] : memref<1x64xf32, #tpu.memory_space<vmem>>, vector<1x64xf32>
    %47 = vector.broadcast %46 : vector<1x64xf32> to vector<32x64xf32>
    %48 = arith.addf %45, %47 : vector<32x64xf32>
    %cst = arith.constant 0.000000e+00 : f32
    %49 = vector.broadcast %cst : f32 to vector<32x64xf32>
    %50 = arith.maximumf %48, %49 : vector<32x64xf32>
    %51 = arith.truncf %50 : vector<32x64xf32> to vector<32x64xbf16>
    %c0_43 = arith.constant 0 : index
    %c0_44 = arith.constant 0 : index
    %c0_45 = arith.constant 0 : index
    %52 = vector.load %arg8[%c0_43, %c0_44, %c0_45] : memref<1x32x64xbf16, #tpu.memory_space<vmem>>, vector<1x32x64xbf16>
    %53 = vector.shape_cast %52 : vector<1x32x64xbf16> to vector<32x64xbf16>
    %54 = vector.shape_cast %51 : vector<32x64xbf16> to vector<1x32x64xbf16>
    tpu.vector_store %arg8[%c0_43, %c0_44, %c0_45], %54 {strides = array<i32>} : memref<1x32x64xbf16, #tpu.memory_space<vmem>>, vector<1x32x64xbf16>,
    return
  }
  func.func @transform_0(%arg0: i32, %arg1: i32) -> (i32, i32, i32) {
    %c0_i32 = arith.constant 0 : i32
    %c0_i32_0 = arith.constant 0 : i32
    return %arg1, %arg0, %c0_i32 : i32, i32, i32
  }
  func.func @transform_1(%arg0: i32, %arg1: i32) -> (i32, i32, i32) {
    %c0_i32 = arith.constant 0 : i32
    %c0_i32_0 = arith.constant 0 : i32
    return %arg1, %arg0, %c0_i32 : i32, i32, i32
  }
  func.func @transform_2(%arg0: i32, %arg1: i32) -> (i32, i32, i32, i32) {
    %c0_i32 = arith.constant 0 : i32
    %c0_i32_0 = arith.constant 0 : i32
    %c0_i32_1 = arith.constant 0 : i32
    return %arg1, %arg0, %c0_i32, %c0_i32_0 : i32, i32, i32, i32
  }
  func.func @transform_3(%arg0: i32, %arg1: i32) -> (i32, i32, i32, i32) {
    %c0_i32 = arith.constant 0 : i32
    %c0_i32_0 = arith.constant 0 : i32
    %c0_i32_1 = arith.constant 0 : i32
    return %arg1, %arg0, %c0_i32, %c0_i32_0 : i32, i32, i32, i32
  }
  func.func @transform_4(%arg0: i32, %arg1: i32) -> (i32, i32, i32) {
    %c0_i32 = arith.constant 0 : i32
    %c0_i32_0 = arith.constant 0 : i32
    %c0_i32_1 = arith.constant 0 : i32
    %c0_i32_2 = arith.constant 0 : i32
    return %c0_i32, %c0_i32_0, %c0_i32_1 : i32, i32, i32
  }
  func.func @transform_5(%arg0: i32, %arg1: i32) -> (i32, i32) {
    %c0_i32 = arith.constant 0 : i32
    %c0_i32_0 = arith.constant 0 : i32
    %c0_i32_1 = arith.constant 0 : i32
    return %c0_i32, %c0_i32_0 : i32, i32
  }
  func.func @transform_6(%arg0: i32, %arg1: i32) -> (i32, i32, i32) {
    %c0_i32 = arith.constant 0 : i32
    %c0_i32_0 = arith.constant 0 : i32
    return %arg1, %arg0, %c0_i32 : i32, i32, i32
  }
}

module attributes {stable_mosaic.version = 11 : i64} {
  func.func @kernel(%arg0: i32, %arg1: i32, %arg2: memref<1x16x64xbf16, #tpu.memory_space<vmem>>, %arg3: memref<1x16x64xbf16, #tpu.memory_space<vmem>>, %arg4: memref<1x1x8x64xbf16, #tpu.memory_space<vmem>>, %arg5: memref<1x1x8x64xbf16, #tpu.memory_space<vmem>>, %arg6: memref<5x64x128xbf16, #tpu.memory_space<vmem>>, %arg7: memref<1x128xf32, #tpu.memory_space<vmem>>, %arg8: memref<1x16x128xbf16, #tpu.memory_space<vmem>>, %arg9: memref<24x64xbf16, #tpu.memory_space<vmem>>, %arg10: memref<24x64xbf16, #tpu.memory_space<vmem>>) attributes {dimension_semantics = [#tpu.dimension_semantics<parallel>, #tpu.dimension_semantics<parallel>], iteration_bounds = array<i64: 1, 2>, scalar_prefetch = 0 : i64, scratch_operands = 2 : i64, tpu.core_type = #tpu.core_type<tc>, window_params = [{transform_indices = @transform_0, window_bounds = array<i64: 1, 16, 64>}, {transform_indices = @transform_1, window_bounds = array<i64: 1, 16, 64>}, {transform_indices = @transform_2, window_bounds = array<i64: 1, 1, 8, 64>}, {transform_indices = @transform_3, window_bounds = array<i64: 1, 1, 8, 64>}, {pipeline_mode = #tpu.pipeline_mode<synchronous>, transform_indices = @transform_4, window_bounds = array<i64: 5, 64, 128>}, {pipeline_mode = #tpu.pipeline_mode<synchronous>, transform_indices = @transform_5, window_bounds = array<i64: 1, 128>}, {transform_indices = @transform_6, window_bounds = array<i64: 1, 16, 128>}]} {
    %c0 = arith.constant 0 : index
    %c0_0 = arith.constant 0 : index
    %c0_1 = arith.constant 0 : index
    %0 = vector.load %arg2[%c0, %c0_0, %c0_1] : memref<1x16x64xbf16, #tpu.memory_space<vmem>>, vector<1x16x64xbf16>
    %1 = vector.shape_cast %0 : vector<1x16x64xbf16> to vector<16x64xbf16>
    %c0_2 = arith.constant 0 : index
    %c0_3 = arith.constant 0 : index
    %2 = vector.load %arg9[%c0_2, %c0_3] : memref<24x64xbf16, #tpu.memory_space<vmem>>, vector<16x64xbf16>
    tpu.vector_store %arg9[%c0_2, %c0_3], %1 {strides = array<i32>} : memref<24x64xbf16, #tpu.memory_space<vmem>>, vector<16x64xbf16>,
    %c0_4 = arith.constant 0 : index
    %c0_5 = arith.constant 0 : index
    %c0_6 = arith.constant 0 : index
    %c0_7 = arith.constant 0 : index
    %3 = vector.load %arg4[%c0_4, %c0_5, %c0_6, %c0_7] : memref<1x1x8x64xbf16, #tpu.memory_space<vmem>>, vector<1x1x8x64xbf16>
    %4 = vector.shape_cast %3 : vector<1x1x8x64xbf16> to vector<8x64xbf16>
    %c16 = arith.constant 16 : index
    %c0_8 = arith.constant 0 : index
    %5 = vector.load %arg9[%c16, %c0_8] : memref<24x64xbf16, #tpu.memory_space<vmem>>, vector<8x64xbf16>
    tpu.vector_store %arg9[%c16, %c0_8], %4 {strides = array<i32>} : memref<24x64xbf16, #tpu.memory_space<vmem>>, vector<8x64xbf16>,
    %c0_9 = arith.constant 0 : index
    %c0_10 = arith.constant 0 : index
    %c0_11 = arith.constant 0 : index
    %6 = vector.load %arg3[%c0_9, %c0_10, %c0_11] : memref<1x16x64xbf16, #tpu.memory_space<vmem>>, vector<1x16x64xbf16>
    %7 = vector.shape_cast %6 : vector<1x16x64xbf16> to vector<16x64xbf16>
    %c0_12 = arith.constant 0 : index
    %c0_13 = arith.constant 0 : index
    %8 = vector.load %arg10[%c0_12, %c0_13] : memref<24x64xbf16, #tpu.memory_space<vmem>>, vector<16x64xbf16>
    tpu.vector_store %arg10[%c0_12, %c0_13], %7 {strides = array<i32>} : memref<24x64xbf16, #tpu.memory_space<vmem>>, vector<16x64xbf16>,
    %c0_14 = arith.constant 0 : index
    %c0_15 = arith.constant 0 : index
    %c0_16 = arith.constant 0 : index
    %c0_17 = arith.constant 0 : index
    %9 = vector.load %arg5[%c0_14, %c0_15, %c0_16, %c0_17] : memref<1x1x8x64xbf16, #tpu.memory_space<vmem>>, vector<1x1x8x64xbf16>
    %10 = vector.shape_cast %9 : vector<1x1x8x64xbf16> to vector<8x64xbf16>
    %c16_18 = arith.constant 16 : index
    %c0_19 = arith.constant 0 : index
    %11 = vector.load %arg10[%c16_18, %c0_19] : memref<24x64xbf16, #tpu.memory_space<vmem>>, vector<8x64xbf16>
    tpu.vector_store %arg10[%c16_18, %c0_19], %10 {strides = array<i32>} : memref<24x64xbf16, #tpu.memory_space<vmem>>, vector<8x64xbf16>,
    %c0_20 = arith.constant 0 : index
    %c0_21 = arith.constant 0 : index
    %12 = vector.load %arg9[%c0_20, %c0_21] : memref<24x64xbf16, #tpu.memory_space<vmem>>, vector<16x64xbf16>
    %c0_22 = arith.constant 0 : index
    %c0_23 = arith.constant 0 : index
    %c0_24 = arith.constant 0 : index
    %13 = vector.load %arg6[%c0_22, %c0_23, %c0_24] : memref<5x64x128xbf16, #tpu.memory_space<vmem>>, vector<1x64x128xbf16>
    %14 = vector.shape_cast %13 : vector<1x64x128xbf16> to vector<64x128xbf16>
    %cst = arith.constant dense<0.000000e+00> : vector<16x128xf32>
    %15 = tpu.matmul %12, %14, %cst {dimension_numbers = #tpu.dot_dimension_numbers<[1], [0], [0], [1], [0, 0, 1, 1], [], []>} : vector<16x64xbf16>, vector<64x128xbf16>, vector<16x128xf32> -> vector<16x128xf32>
    %c0_25 = arith.constant 0 : index
    %c0_26 = arith.constant 0 : index
    %16 = vector.load %arg10[%c0_25, %c0_26] : memref<24x64xbf16, #tpu.memory_space<vmem>>, vector<16x64xbf16>
    %c1 = arith.constant 1 : index
    %c0_27 = arith.constant 0 : index
    %c0_28 = arith.constant 0 : index
    %17 = vector.load %arg6[%c1, %c0_27, %c0_28] : memref<5x64x128xbf16, #tpu.memory_space<vmem>>, vector<1x64x128xbf16>
    %18 = vector.shape_cast %17 : vector<1x64x128xbf16> to vector<64x128xbf16>
    %cst_29 = arith.constant dense<0.000000e+00> : vector<16x128xf32>
    %19 = tpu.matmul %16, %18, %cst_29 {dimension_numbers = #tpu.dot_dimension_numbers<[1], [0], [0], [1], [0, 0, 1, 1], [], []>} : vector<16x64xbf16>, vector<64x128xbf16>, vector<16x128xf32> -> vector<16x128xf32>
    %20 = arith.addf %15, %19 : vector<16x128xf32>
    %c1_30 = arith.constant 1 : index
    %c0_31 = arith.constant 0 : index
    %21 = vector.load %arg9[%c1_30, %c0_31] : memref<24x64xbf16, #tpu.memory_space<vmem>>, vector<16x64xbf16>
    %c2 = arith.constant 2 : index
    %c0_32 = arith.constant 0 : index
    %c0_33 = arith.constant 0 : index
    %22 = vector.load %arg6[%c2, %c0_32, %c0_33] : memref<5x64x128xbf16, #tpu.memory_space<vmem>>, vector<1x64x128xbf16>
    %23 = vector.shape_cast %22 : vector<1x64x128xbf16> to vector<64x128xbf16>
    %cst_34 = arith.constant dense<0.000000e+00> : vector<16x128xf32>
    %24 = tpu.matmul %21, %23, %cst_34 {dimension_numbers = #tpu.dot_dimension_numbers<[1], [0], [0], [1], [0, 0, 1, 1], [], []>} : vector<16x64xbf16>, vector<64x128xbf16>, vector<16x128xf32> -> vector<16x128xf32>
    %25 = arith.addf %20, %24 : vector<16x128xf32>
    %c1_35 = arith.constant 1 : index
    %c0_36 = arith.constant 0 : index
    %26 = vector.load %arg10[%c1_35, %c0_36] : memref<24x64xbf16, #tpu.memory_space<vmem>>, vector<16x64xbf16>
    %c3 = arith.constant 3 : index
    %c0_37 = arith.constant 0 : index
    %c0_38 = arith.constant 0 : index
    %27 = vector.load %arg6[%c3, %c0_37, %c0_38] : memref<5x64x128xbf16, #tpu.memory_space<vmem>>, vector<1x64x128xbf16>
    %28 = vector.shape_cast %27 : vector<1x64x128xbf16> to vector<64x128xbf16>
    %cst_39 = arith.constant dense<0.000000e+00> : vector<16x128xf32>
    %29 = tpu.matmul %26, %28, %cst_39 {dimension_numbers = #tpu.dot_dimension_numbers<[1], [0], [0], [1], [0, 0, 1, 1], [], []>} : vector<16x64xbf16>, vector<64x128xbf16>, vector<16x128xf32> -> vector<16x128xf32>
    %30 = arith.addf %25, %29 : vector<16x128xf32>
    %c2_40 = arith.constant 2 : index
    %c0_41 = arith.constant 0 : index
    %31 = vector.load %arg9[%c2_40, %c0_41] : memref<24x64xbf16, #tpu.memory_space<vmem>>, vector<16x64xbf16>
    %c4 = arith.constant 4 : index
    %c0_42 = arith.constant 0 : index
    %c0_43 = arith.constant 0 : index
    %32 = vector.load %arg6[%c4, %c0_42, %c0_43] : memref<5x64x128xbf16, #tpu.memory_space<vmem>>, vector<1x64x128xbf16>
    %33 = vector.shape_cast %32 : vector<1x64x128xbf16> to vector<64x128xbf16>
    %cst_44 = arith.constant dense<0.000000e+00> : vector<16x128xf32>
    %34 = tpu.matmul %31, %33, %cst_44 {dimension_numbers = #tpu.dot_dimension_numbers<[1], [0], [0], [1], [0, 0, 1, 1], [], []>} : vector<16x64xbf16>, vector<64x128xbf16>, vector<16x128xf32> -> vector<16x128xf32>
    %35 = arith.addf %30, %34 : vector<16x128xf32>
    %c0_45 = arith.constant 0 : index
    %c0_46 = arith.constant 0 : index
    %36 = vector.load %arg7[%c0_45, %c0_46] : memref<1x128xf32, #tpu.memory_space<vmem>>, vector<1x128xf32>
    %37 = vector.broadcast %36 : vector<1x128xf32> to vector<16x128xf32>
    %38 = arith.addf %35, %37 : vector<16x128xf32>
    %cst_47 = arith.constant 0.000000e+00 : f32
    %39 = vector.broadcast %cst_47 : f32 to vector<16x128xf32>
    %40 = arith.maximumf %38, %39 : vector<16x128xf32>
    %41 = arith.truncf %40 : vector<16x128xf32> to vector<16x128xbf16>
    %c0_48 = arith.constant 0 : index
    %c0_49 = arith.constant 0 : index
    %c0_50 = arith.constant 0 : index
    %42 = vector.load %arg8[%c0_48, %c0_49, %c0_50] : memref<1x16x128xbf16, #tpu.memory_space<vmem>>, vector<1x16x128xbf16>
    %43 = vector.shape_cast %42 : vector<1x16x128xbf16> to vector<16x128xbf16>
    %44 = vector.shape_cast %41 : vector<16x128xbf16> to vector<1x16x128xbf16>
    tpu.vector_store %arg8[%c0_48, %c0_49, %c0_50], %44 {strides = array<i32>} : memref<1x16x128xbf16, #tpu.memory_space<vmem>>, vector<1x16x128xbf16>,
    return
  }
  func.func @transform_0(%arg0: i32, %arg1: i32) -> (i32, i32, i32) {
    %c0_i32 = arith.constant 0 : i32
    %c0_i32_0 = arith.constant 0 : i32
    return %arg1, %arg0, %c0_i32 : i32, i32, i32
  }
  func.func @transform_1(%arg0: i32, %arg1: i32) -> (i32, i32, i32) {
    %c0_i32 = arith.constant 0 : i32
    %c0_i32_0 = arith.constant 0 : i32
    return %arg1, %arg0, %c0_i32 : i32, i32, i32
  }
  func.func @transform_2(%arg0: i32, %arg1: i32) -> (i32, i32, i32, i32) {
    %c0_i32 = arith.constant 0 : i32
    %c0_i32_0 = arith.constant 0 : i32
    %c0_i32_1 = arith.constant 0 : i32
    return %arg1, %arg0, %c0_i32, %c0_i32_0 : i32, i32, i32, i32
  }
  func.func @transform_3(%arg0: i32, %arg1: i32) -> (i32, i32, i32, i32) {
    %c0_i32 = arith.constant 0 : i32
    %c0_i32_0 = arith.constant 0 : i32
    %c0_i32_1 = arith.constant 0 : i32
    return %arg1, %arg0, %c0_i32, %c0_i32_0 : i32, i32, i32, i32
  }
  func.func @transform_4(%arg0: i32, %arg1: i32) -> (i32, i32, i32) {
    %c0_i32 = arith.constant 0 : i32
    %c0_i32_0 = arith.constant 0 : i32
    %c0_i32_1 = arith.constant 0 : i32
    %c0_i32_2 = arith.constant 0 : i32
    return %c0_i32, %c0_i32_0, %c0_i32_1 : i32, i32, i32
  }
  func.func @transform_5(%arg0: i32, %arg1: i32) -> (i32, i32) {
    %c0_i32 = arith.constant 0 : i32
    %c0_i32_0 = arith.constant 0 : i32
    %c0_i32_1 = arith.constant 0 : i32
    return %c0_i32, %c0_i32_0 : i32, i32
  }
  func.func @transform_6(%arg0: i32, %arg1: i32) -> (i32, i32, i32) {
    %c0_i32 = arith.constant 0 : i32
    %c0_i32_0 = arith.constant 0 : i32
    return %arg1, %arg0, %c0_i32 : i32, i32, i32
  }
}

module attributes {stable_mosaic.version = 11 : i64} {
  func.func @kernel(%arg0: i32, %arg1: i32, %arg2: memref<1x8x128xbf16, #tpu.memory_space<vmem>>, %arg3: memref<1x8x128xbf16, #tpu.memory_space<vmem>>, %arg4: memref<1x1x8x128xbf16, #tpu.memory_space<vmem>>, %arg5: memref<1x1x8x128xbf16, #tpu.memory_space<vmem>>, %arg6: memref<5x128x256xbf16, #tpu.memory_space<vmem>>, %arg7: memref<1x256xf32, #tpu.memory_space<vmem>>, %arg8: memref<8x256xf32, #tpu.memory_space<vmem>>, %arg9: memref<1x8x256xf32, #tpu.memory_space<vmem>>, %arg10: memref<16x128xbf16, #tpu.memory_space<vmem>>, %arg11: memref<16x128xbf16, #tpu.memory_space<vmem>>) attributes {dimension_semantics = [#tpu.dimension_semantics<parallel>, #tpu.dimension_semantics<parallel>], iteration_bounds = array<i64: 1, 2>, scalar_prefetch = 0 : i64, scratch_operands = 2 : i64, tpu.core_type = #tpu.core_type<tc>, window_params = [{transform_indices = @transform_0, window_bounds = array<i64: 1, 8, 128>}, {transform_indices = @transform_1, window_bounds = array<i64: 1, 8, 128>}, {transform_indices = @transform_2, window_bounds = array<i64: 1, 1, 8, 128>}, {transform_indices = @transform_3, window_bounds = array<i64: 1, 1, 8, 128>}, {pipeline_mode = #tpu.pipeline_mode<synchronous>, transform_indices = @transform_4, window_bounds = array<i64: 5, 128, 256>}, {pipeline_mode = #tpu.pipeline_mode<synchronous>, transform_indices = @transform_5, window_bounds = array<i64: 1, 256>}, {transform_indices = @transform_6, window_bounds = array<i64: 8, 256>}, {transform_indices = @transform_7, window_bounds = array<i64: 1, 8, 256>}]} {
    %c0 = arith.constant 0 : index
    %c0_0 = arith.constant 0 : index
    %c0_1 = arith.constant 0 : index
    %0 = vector.load %arg2[%c0, %c0_0, %c0_1] : memref<1x8x128xbf16, #tpu.memory_space<vmem>>, vector<1x8x128xbf16>
    %1 = vector.shape_cast %0 : vector<1x8x128xbf16> to vector<8x128xbf16>
    %c0_2 = arith.constant 0 : index
    %c0_3 = arith.constant 0 : index
    %2 = vector.load %arg10[%c0_2, %c0_3] : memref<16x128xbf16, #tpu.memory_space<vmem>>, vector<8x128xbf16>
    tpu.vector_store %arg10[%c0_2, %c0_3], %1 {strides = array<i32>} : memref<16x128xbf16, #tpu.memory_space<vmem>>, vector<8x128xbf16>,
    %c0_4 = arith.constant 0 : index
    %c0_5 = arith.constant 0 : index
    %c0_6 = arith.constant 0 : index
    %c0_7 = arith.constant 0 : index
    %3 = vector.load %arg4[%c0_4, %c0_5, %c0_6, %c0_7] : memref<1x1x8x128xbf16, #tpu.memory_space<vmem>>, vector<1x1x8x128xbf16>
    %4 = vector.shape_cast %3 : vector<1x1x8x128xbf16> to vector<8x128xbf16>
    %c8 = arith.constant 8 : index
    %c0_8 = arith.constant 0 : index
    %5 = vector.load %arg10[%c8, %c0_8] : memref<16x128xbf16, #tpu.memory_space<vmem>>, vector<8x128xbf16>
    tpu.vector_store %arg10[%c8, %c0_8], %4 {strides = array<i32>} : memref<16x128xbf16, #tpu.memory_space<vmem>>, vector<8x128xbf16>,
    %c0_9 = arith.constant 0 : index
    %c0_10 = arith.constant 0 : index
    %c0_11 = arith.constant 0 : index
    %6 = vector.load %arg3[%c0_9, %c0_10, %c0_11] : memref<1x8x128xbf16, #tpu.memory_space<vmem>>, vector<1x8x128xbf16>
    %7 = vector.shape_cast %6 : vector<1x8x128xbf16> to vector<8x128xbf16>
    %c0_12 = arith.constant 0 : index
    %c0_13 = arith.constant 0 : index
    %8 = vector.load %arg11[%c0_12, %c0_13] : memref<16x128xbf16, #tpu.memory_space<vmem>>, vector<8x128xbf16>
    tpu.vector_store %arg11[%c0_12, %c0_13], %7 {strides = array<i32>} : memref<16x128xbf16, #tpu.memory_space<vmem>>, vector<8x128xbf16>,
    %c0_14 = arith.constant 0 : index
    %c0_15 = arith.constant 0 : index
    %c0_16 = arith.constant 0 : index
    %c0_17 = arith.constant 0 : index
    %9 = vector.load %arg5[%c0_14, %c0_15, %c0_16, %c0_17] : memref<1x1x8x128xbf16, #tpu.memory_space<vmem>>, vector<1x1x8x128xbf16>
    %10 = vector.shape_cast %9 : vector<1x1x8x128xbf16> to vector<8x128xbf16>
    %c8_18 = arith.constant 8 : index
    %c0_19 = arith.constant 0 : index
    %11 = vector.load %arg11[%c8_18, %c0_19] : memref<16x128xbf16, #tpu.memory_space<vmem>>, vector<8x128xbf16>
    tpu.vector_store %arg11[%c8_18, %c0_19], %10 {strides = array<i32>} : memref<16x128xbf16, #tpu.memory_space<vmem>>, vector<8x128xbf16>,
    %c0_20 = arith.constant 0 : index
    %c0_21 = arith.constant 0 : index
    %12 = vector.load %arg10[%c0_20, %c0_21] : memref<16x128xbf16, #tpu.memory_space<vmem>>, vector<8x128xbf16>
    %c0_22 = arith.constant 0 : index
    %c0_23 = arith.constant 0 : index
    %c0_24 = arith.constant 0 : index
    %13 = vector.load %arg6[%c0_22, %c0_23, %c0_24] : memref<5x128x256xbf16, #tpu.memory_space<vmem>>, vector<1x128x256xbf16>
    %14 = vector.shape_cast %13 : vector<1x128x256xbf16> to vector<128x256xbf16>
    %cst = arith.constant dense<0.000000e+00> : vector<8x256xf32>
    %15 = tpu.matmul %12, %14, %cst {dimension_numbers = #tpu.dot_dimension_numbers<[1], [0], [0], [1], [0, 0, 1, 1], [], []>} : vector<8x128xbf16>, vector<128x256xbf16>, vector<8x256xf32> -> vector<8x256xf32>
    %c0_25 = arith.constant 0 : index
    %c0_26 = arith.constant 0 : index
    %16 = vector.load %arg11[%c0_25, %c0_26] : memref<16x128xbf16, #tpu.memory_space<vmem>>, vector<8x128xbf16>
    %c1 = arith.constant 1 : index
    %c0_27 = arith.constant 0 : index
    %c0_28 = arith.constant 0 : index
    %17 = vector.load %arg6[%c1, %c0_27, %c0_28] : memref<5x128x256xbf16, #tpu.memory_space<vmem>>, vector<1x128x256xbf16>
    %18 = vector.shape_cast %17 : vector<1x128x256xbf16> to vector<128x256xbf16>
    %cst_29 = arith.constant dense<0.000000e+00> : vector<8x256xf32>
    %19 = tpu.matmul %16, %18, %cst_29 {dimension_numbers = #tpu.dot_dimension_numbers<[1], [0], [0], [1], [0, 0, 1, 1], [], []>} : vector<8x128xbf16>, vector<128x256xbf16>, vector<8x256xf32> -> vector<8x256xf32>
    %20 = arith.addf %15, %19 : vector<8x256xf32>
    %c1_30 = arith.constant 1 : index
    %c0_31 = arith.constant 0 : index
    %21 = vector.load %arg10[%c1_30, %c0_31] : memref<16x128xbf16, #tpu.memory_space<vmem>>, vector<8x128xbf16>
    %c2 = arith.constant 2 : index
    %c0_32 = arith.constant 0 : index
    %c0_33 = arith.constant 0 : index
    %22 = vector.load %arg6[%c2, %c0_32, %c0_33] : memref<5x128x256xbf16, #tpu.memory_space<vmem>>, vector<1x128x256xbf16>
    %23 = vector.shape_cast %22 : vector<1x128x256xbf16> to vector<128x256xbf16>
    %cst_34 = arith.constant dense<0.000000e+00> : vector<8x256xf32>
    %24 = tpu.matmul %21, %23, %cst_34 {dimension_numbers = #tpu.dot_dimension_numbers<[1], [0], [0], [1], [0, 0, 1, 1], [], []>} : vector<8x128xbf16>, vector<128x256xbf16>, vector<8x256xf32> -> vector<8x256xf32>
    %25 = arith.addf %20, %24 : vector<8x256xf32>
    %c1_35 = arith.constant 1 : index
    %c0_36 = arith.constant 0 : index
    %26 = vector.load %arg11[%c1_35, %c0_36] : memref<16x128xbf16, #tpu.memory_space<vmem>>, vector<8x128xbf16>
    %c3 = arith.constant 3 : index
    %c0_37 = arith.constant 0 : index
    %c0_38 = arith.constant 0 : index
    %27 = vector.load %arg6[%c3, %c0_37, %c0_38] : memref<5x128x256xbf16, #tpu.memory_space<vmem>>, vector<1x128x256xbf16>
    %28 = vector.shape_cast %27 : vector<1x128x256xbf16> to vector<128x256xbf16>
    %cst_39 = arith.constant dense<0.000000e+00> : vector<8x256xf32>
    %29 = tpu.matmul %26, %28, %cst_39 {dimension_numbers = #tpu.dot_dimension_numbers<[1], [0], [0], [1], [0, 0, 1, 1], [], []>} : vector<8x128xbf16>, vector<128x256xbf16>, vector<8x256xf32> -> vector<8x256xf32>
    %30 = arith.addf %25, %29 : vector<8x256xf32>
    %c2_40 = arith.constant 2 : index
    %c0_41 = arith.constant 0 : index
    %31 = vector.load %arg10[%c2_40, %c0_41] : memref<16x128xbf16, #tpu.memory_space<vmem>>, vector<8x128xbf16>
    %c4 = arith.constant 4 : index
    %c0_42 = arith.constant 0 : index
    %c0_43 = arith.constant 0 : index
    %32 = vector.load %arg6[%c4, %c0_42, %c0_43] : memref<5x128x256xbf16, #tpu.memory_space<vmem>>, vector<1x128x256xbf16>
    %33 = vector.shape_cast %32 : vector<1x128x256xbf16> to vector<128x256xbf16>
    %cst_44 = arith.constant dense<0.000000e+00> : vector<8x256xf32>
    %34 = tpu.matmul %31, %33, %cst_44 {dimension_numbers = #tpu.dot_dimension_numbers<[1], [0], [0], [1], [0, 0, 1, 1], [], []>} : vector<8x128xbf16>, vector<128x256xbf16>, vector<8x256xf32> -> vector<8x256xf32>
    %35 = arith.addf %30, %34 : vector<8x256xf32>
    %c0_45 = arith.constant 0 : index
    %c0_46 = arith.constant 0 : index
    %36 = vector.load %arg7[%c0_45, %c0_46] : memref<1x256xf32, #tpu.memory_space<vmem>>, vector<1x256xf32>
    %37 = vector.broadcast %36 : vector<1x256xf32> to vector<8x256xf32>
    %38 = arith.addf %35, %37 : vector<8x256xf32>
    %cst_47 = arith.constant 0.000000e+00 : f32
    %39 = vector.broadcast %cst_47 : f32 to vector<8x256xf32>
    %40 = arith.maximumf %38, %39 : vector<8x256xf32>
    %c0_48 = arith.constant 0 : index
    %c0_49 = arith.constant 0 : index
    %41 = vector.load %arg8[%c0_48, %c0_49] : memref<8x256xf32, #tpu.memory_space<vmem>>, vector<8x256xf32>
    %42 = arith.addf %40, %41 : vector<8x256xf32>
    %c0_50 = arith.constant 0 : index
    %c0_51 = arith.constant 0 : index
    %c0_52 = arith.constant 0 : index
    %43 = vector.load %arg9[%c0_50, %c0_51, %c0_52] : memref<1x8x256xf32, #tpu.memory_space<vmem>>, vector<1x8x256xf32>
    %44 = vector.shape_cast %43 : vector<1x8x256xf32> to vector<8x256xf32>
    %45 = vector.shape_cast %42 : vector<8x256xf32> to vector<1x8x256xf32>
    tpu.vector_store %arg9[%c0_50, %c0_51, %c0_52], %45 {strides = array<i32>} : memref<1x8x256xf32, #tpu.memory_space<vmem>>, vector<1x8x256xf32>,
    return
  }
  func.func @transform_0(%arg0: i32, %arg1: i32) -> (i32, i32, i32) {
    %c0_i32 = arith.constant 0 : i32
    %c0_i32_0 = arith.constant 0 : i32
    return %arg1, %arg0, %c0_i32 : i32, i32, i32
  }
  func.func @transform_1(%arg0: i32, %arg1: i32) -> (i32, i32, i32) {
    %c0_i32 = arith.constant 0 : i32
    %c0_i32_0 = arith.constant 0 : i32
    return %arg1, %arg0, %c0_i32 : i32, i32, i32
  }
  func.func @transform_2(%arg0: i32, %arg1: i32) -> (i32, i32, i32, i32) {
    %c0_i32 = arith.constant 0 : i32
    %c0_i32_0 = arith.constant 0 : i32
    %c0_i32_1 = arith.constant 0 : i32
    return %arg1, %arg0, %c0_i32, %c0_i32_0 : i32, i32, i32, i32
  }
  func.func @transform_3(%arg0: i32, %arg1: i32) -> (i32, i32, i32, i32) {
    %c0_i32 = arith.constant 0 : i32
    %c0_i32_0 = arith.constant 0 : i32
    %c0_i32_1 = arith.constant 0 : i32
    return %arg1, %arg0, %c0_i32, %c0_i32_0 : i32, i32, i32, i32
  }
  func.func @transform_4(%arg0: i32, %arg1: i32) -> (i32, i32, i32) {
    %c0_i32 = arith.constant 0 : i32
    %c0_i32_0 = arith.constant 0 : i32
    %c0_i32_1 = arith.constant 0 : i32
    %c0_i32_2 = arith.constant 0 : i32
    return %c0_i32, %c0_i32_0, %c0_i32_1 : i32, i32, i32
  }
  func.func @transform_5(%arg0: i32, %arg1: i32) -> (i32, i32) {
    %c0_i32 = arith.constant 0 : i32
    %c0_i32_0 = arith.constant 0 : i32
    %c0_i32_1 = arith.constant 0 : i32
    return %c0_i32, %c0_i32_0 : i32, i32
  }
  func.func @transform_6(%arg0: i32, %arg1: i32) -> (i32, i32) {
    %c0_i32 = arith.constant 0 : i32
    %c0_i32_0 = arith.constant 0 : i32
    return %arg0, %c0_i32 : i32, i32
  }
  func.func @transform_7(%arg0: i32, %arg1: i32) -> (i32, i32, i32) {
    %c0_i32 = arith.constant 0 : i32
    %c0_i32_0 = arith.constant 0 : i32
    return %arg1, %arg0, %c0_i32 : i32, i32, i32
  }
}

</mosaic_0001>

<llo_original>
// kernel: encoder_forward.3
$region0: #{encoder_forward.3}
  #allocation0 [shape = 'u32[]', space=smem, size = 0x4, offset = 0x4, fixed_abs, tag = 'smem constant byte address 0x4 - core index']
  #allocation1 [shape = 'u32[144,128]{1,0:T(1,128)}', space=vmem, size = 0x12000, scoped, tag = 'internal scratch']
  #allocation2 [shape = 'f32[40,1]{1,0:T(8,128)}', space=vmem, size = 0x5000, scoped, tag = 'scratch operand']
  #allocation3 [shape = 'f32[40,1]{1,0:T(8,128)}', space=vmem, size = 0x5000, scoped, tag = 'scratch operand']
  %s0 = inlined_call_operand.vmem [shape: f32[2,32,1], index: 0, kind: input, shape index: {}]
  %s1 = inlined_call_operand.vmem [shape: f32[2,32,1], index: 1, kind: input, shape index: {}]
  %s2 = inlined_call_operand.vmem [shape: f32[2,1,8,1], index: 2, kind: input, shape index: {}]
  %s3 = inlined_call_operand.vmem [shape: f32[2,1,8,1], index: 3, kind: input, shape index: {}]
  %s4 = inlined_call_operand.vmem [shape: f32[5,1,64], index: 4, kind: input, shape index: {}]
  %s5 = inlined_call_operand.vmem [shape: f32[1,64], index: 5, kind: input, shape index: {}]
  %s6 = inlined_call_operand.vmem [shape: bf16[2,32,64], index: 6, kind: output, shape index: {}]
  %s7 = sld [smem:[#allocation0]]
  $region57: #{encoder_forward.3} parent=0
    _
  %s9 = ssub.s32 1, %s7
  %s10 = scalar_select 0, %s9, %s7
  loop: start=0, step=1, limit=4
  $region2: #{encoder_forward.3} parent=0 // loop_pre_header
    _
  $region3: #{encoder_forward.3} parent=0 // loop_header
    %s12 = sphi 0, %s16
    %p13 = scmp.ge.s32.totalorder %s12, 4
    %s19 = sphi 0, %s31
    %s20 = sphi 0, %s27
    %s21 = sphi 0, %s19
    %s22 = sphi 0, %s20
    %s23 = sphi 0, %s21
    %s24 = sphi 0, %s22
    %s36 = sphi 0, %s38
    %s39 = sphi 0, %s36
    %s40 = sphi 0, %s39
    %s56 = sphi 0, %s40
    %s64 = sphi 0, %s66
    %s67 = sphi 0, %s64
    %s68 = sphi 0, %s67
    %s84 = sphi 0, %s68
    %s92 = sphi 0, %s94
    %s95 = sphi 0, %s92
    %s96 = sphi 0, %s95
    %s112 = sphi 0, %s96
    %s120 = sphi 0, %s122
    %s123 = sphi 0, %s120
    %s124 = sphi 0, %s123
    %s140 = sphi 0, %s124
    %s144 = sphi 0, %s144
    %s146 = sphi 0, %s144
    %s147 = sphi 0, %s146
    %s161 = sphi 0, %s147
    %s165 = sphi 0, %s165
    %s167 = sphi 0, %s165
    %s168 = sphi 0, %s167
    %s182 = sphi 0, %s168
    %s190 = sphi 0, %s192
    %s193 = sphi 0, %s190
    %s194 = sphi 0, %s193
    %s210 = sphi 0, %s194
  $region4: #{encoder_forward.3} parent=0 // loop_header_branch
    %15 = sbr.rel (%p13) target = $region8
  $region5: #{encoder_forward.3} parent=0 // loop_body
    %s17 = ssub.s32 %s12, 1
    %s18 = ssub.s32 %s12, 2
    %s25 = sadd.s32 1, %s20
    %p26 = scmp.ge.s32.totalorder %s25, 2
    %s27 = scalar_select %p26, 0, %s25
    %s28 = sadd.s32 1, %s19
    %s29 = scalar_select %p26, %s28, %s19
    %p30 = scmp.ge.s32.totalorder %s29, 1
    %s31 = scalar_select %p30, 0, %s29
    %s32 = ssub.s32 %s20, %s27
    %s33 = ssub.s32 %s19, %s31
    %s34 = sor.u32 %s32, %s33
    %p35 = scmp.eq.s32.totalorder %s34, 0
    %s37 = sadd.s32 %s36, 1
    %s38 = scalar_select %p35, %s36, %s37
    %p41 = pneg %p35
    %p42 = scmp.eq.s32.totalorder %s12, 1
    %p43 = por %p41, %p42
    %p44 = scmp.ne.s32.totalorder %s36, %s39
    %p45 = scmp.eq.s32.totalorder %s12, 0
    %p46 = por %p44, %p45
    %p47 = scmp.ne.s32.totalorder %s36, %s39
    %p48 = scmp.eq.s32.totalorder %s17, 1
    %p49 = por %p47, %p48
    %p50 = scmp.ne.s32.totalorder %s39, %s40
    %p51 = scmp.eq.s32.totalorder %s17, 0
    %p52 = por %p50, %p51
    %p53 = scmp.ne.s32.totalorder %s39, %s40
    %p54 = scmp.eq.s32.totalorder %s18, 1
    %p55 = por %p53, %p54
    %p57 = scmp.ne.s32.totalorder %s40, %s56
    %p58 = scmp.eq.s32.totalorder %s18, 0
    %p59 = por %p57, %p58
    %s60 = ssub.s32 %s20, %s27
    %s61 = ssub.s32 %s19, %s31
    %s62 = sor.u32 %s60, %s61
    %p63 = scmp.eq.s32.totalorder %s62, 0
    %s65 = sadd.s32 %s64, 1
    %s66 = scalar_select %p63, %s64, %s65
    %p69 = pneg %p63
    %p70 = scmp.eq.s32.totalorder %s12, 1
    %p71 = por %p69, %p70
    %p72 = scmp.ne.s32.totalorder %s64, %s67
    %p73 = scmp.eq.s32.totalorder %s12, 0
    %p74 = por %p72, %p73
    %p75 = scmp.ne.s32.totalorder %s64, %s67
    %p76 = scmp.eq.s32.totalorder %s17, 1
    %p77 = por %p75, %p76
    %p78 = scmp.ne.s32.totalorder %s67, %s68
    %p79 = scmp.eq.s32.totalorder %s17, 0
    %p80 = por %p78, %p79
    %p81 = scmp.ne.s32.totalorder %s67, %s68
    %p82 = scmp.eq.s32.totalorder %s18, 1
    %p83 = por %p81, %p82
    %p85 = scmp.ne.s32.totalorder %s68, %s84
    %p86 = scmp.eq.s32.totalorder %s18, 0
    %p87 = por %p85, %p86
    %s88 = ssub.s32 %s20, %s27
    %s89 = ssub.s32 %s19, %s31
    %s90 = sor.u32 %s88, %s89
    %p91 = scmp.eq.s32.totalorder %s90, 0
    %s93 = sadd.s32 %s92, 1
    %s94 = scalar_select %p91, %s92, %s93
    %p97 = pneg %p91
    %p98 = scmp.eq.s32.totalorder %s12, 1
    %p99 = por %p97, %p98
    %p100 = scmp.ne.s32.totalorder %s92, %s95
    %p101 = scmp.eq.s32.totalorder %s12, 0
    %p102 = por %p100, %p101
    %p103 = scmp.ne.s32.totalorder %s92, %s95
    %p104 = scmp.eq.s32.totalorder %s17, 1
    %p105 = por %p103, %p104
    %p106 = scmp.ne.s32.totalorder %s95, %s96
    %p107 = scmp.eq.s32.totalorder %s17, 0
    %p108 = por %p106, %p107
    %p109 = scmp.ne.s32.totalorder %s95, %s96
    %p110 = scmp.eq.s32.totalorder %s18, 1
    %p111 = por %p109, %p110
    %p113 = scmp.ne.s32.totalorder %s96, %s112
    %p114 = scmp.eq.s32.totalorder %s18, 0
    %p115 = por %p113, %p114
    %s116 = ssub.s32 %s20, %s27
    %s117 = ssub.s32 %s19, %s31
    %s118 = sor.u32 %s116, %s117
    %p119 = scmp.eq.s32.totalorder %s118, 0
    %s121 = sadd.s32 %s120, 1
    %s122 = scalar_select %p119, %s120, %s121
    %p125 = pneg %p119
    %p126 = scmp.eq.s32.totalorder %s12, 1
    %p127 = por %p125, %p126
    %p128 = scmp.ne.s32.totalorder %s120, %s123
    %p129 = scmp.eq.s32.totalorder %s12, 0
    %p130 = por %p128, %p129
    %p131 = scmp.ne.s32.totalorder %s120, %s123
    %p132 = scmp.eq.s32.totalorder %s17, 1
    %p133 = por %p131, %p132
    %p134 = scmp.ne.s32.totalorder %s123, %s124
    %p135 = scmp.eq.s32.totalorder %s17, 0
    %p136 = por %p134, %p135
    %p137 = scmp.ne.s32.totalorder %s123, %s124
    %p138 = scmp.eq.s32.totalorder %s18, 1
    %p139 = por %p137, %p138
    %p141 = scmp.ne.s32.totalorder %s124, %s140
    %p142 = scmp.eq.s32.totalorder %s18, 0
    %p143 = por %p141, %p142
    %s145 = sadd.s32 %s144, 1
    %p148 = scmp.eq.s32.totalorder %s12, 1
    %p149 = scmp.ne.s32.totalorder %s144, %s146
    %p150 = scmp.eq.s32.totalorder %s12, 0
    %p151 = por %p149, %p150
    %p152 = scmp.ne.s32.totalorder %s144, %s146
    %p153 = scmp.eq.s32.totalorder %s17, 1
    %p154 = por %p152, %p153
    %p155 = scmp.ne.s32.totalorder %s146, %s147
    %p156 = scmp.eq.s32.totalorder %s17, 0
    %p157 = por %p155, %p156
    %p158 = scmp.ne.s32.totalorder %s146, %s147
    %p159 = scmp.eq.s32.totalorder %s18, 1
    %p160 = por %p158, %p159
    %p162 = scmp.ne.s32.totalorder %s147, %s161
    %p163 = scmp.eq.s32.totalorder %s18, 0
    %p164 = por %p162, %p163
    %s166 = sadd.s32 %s165, 1
    %p169 = scmp.eq.s32.totalorder %s12, 1
    %p170 = scmp.ne.s32.totalorder %s165, %s167
    %p171 = scmp.eq.s32.totalorder %s12, 0
    %p172 = por %p170, %p171
    %p173 = scmp.ne.s32.totalorder %s165, %s167
    %p174 = scmp.eq.s32.totalorder %s17, 1
    %p175 = por %p173, %p174
    %p176 = scmp.ne.s32.totalorder %s167, %s168
    %p177 = scmp.eq.s32.totalorder %s17, 0
    %p178 = por %p176, %p177
    %p179 = scmp.ne.s32.totalorder %s167, %s168
    %p180 = scmp.eq.s32.totalorder %s18, 1
    %p181 = por %p179, %p180
    %p183 = scmp.ne.s32.totalorder %s168, %s182
    %p184 = scmp.eq.s32.totalorder %s18, 0
    %p185 = por %p183, %p184
    %s186 = ssub.s32 %s20, %s27
    %s187 = ssub.s32 %s19, %s31
    %s188 = sor.u32 %s186, %s187
    %p189 = scmp.eq.s32.totalorder %s188, 0
    %s191 = sadd.s32 %s190, 1
    %s192 = scalar_select %p189, %s190, %s191
    %p195 = pneg %p189
    %p196 = scmp.eq.s32.totalorder %s12, 1
    %p197 = por %p195, %p196
    %p198 = scmp.ne.s32.totalorder %s190, %s193
    %p199 = scmp.eq.s32.totalorder %s12, 0
    %p200 = por %p198, %p199
    %p201 = scmp.ne.s32.totalorder %s190, %s193
    %p202 = scmp.eq.s32.totalorder %s17, 1
    %p203 = por %p201, %p202
    %p204 = scmp.ne.s32.totalorder %s193, %s194
    %p205 = scmp.eq.s32.totalorder %s17, 0
    %p206 = por %p204, %p205
    %p207 = scmp.ne.s32.totalorder %s193, %s194
    %p208 = scmp.eq.s32.totalorder %s18, 1
    %p209 = por %p207, %p208
    %p211 = scmp.ne.s32.totalorder %s194, %s210
    %p212 = scmp.eq.s32.totalorder %s18, 0
    %p213 = por %p211, %p212
    %p214 = scmp.le.s32.totalorder 1, %s12
    %p215 = scmp.lt.s32.totalorder %s12, 3
    %p216 = pnand %p214, %p215
    %p217 = pneg %p216
    // Predicated region
    $region9: #{encoder_forward.3} parent=5 // pred_check
      _
    $region10: #{encoder_forward.3} parent=5 // pred_check_branch
      %219 = sbr.rel (%p216) target = $region12
    $region11: #{encoder_forward.3} parent=5 // pred_region
      %s220 = ssub.s32 %s12, 1
      // Predicated region
      $region13: #{encoder_forward.3} parent=11 // pred_check
        %p221 = pneg %p157
      $region14: #{encoder_forward.3} parent=11 // pred_check_branch
        %223 = sbr.rel (%p221) target = $region16
      $region15: #{encoder_forward.3} parent=11 // pred_region
        _
      $region16: #{encoder_forward.3} parent=11 // pred_fallthru
        _
      // Predicated region
      $region17: #{encoder_forward.3} parent=11 // pred_check
        %p224 = pneg %p178
      $region18: #{encoder_forward.3} parent=11 // pred_check_branch
        %226 = sbr.rel (%p224) target = $region20
      $region19: #{encoder_forward.3} parent=11 // pred_region
        _
      $region20: #{encoder_forward.3} parent=11 // pred_fallthru
        _
    $region12: #{encoder_forward.3} parent=5 // pred_fallthru
      _
    %p227 = scmp.lt.s32.totalorder %s12, 2
    // Predicated region
    $region21: #{encoder_forward.3} parent=5 // pred_check
      %p228 = pneg %p227
    $region22: #{encoder_forward.3} parent=5 // pred_check_branch
      %230 = sbr.rel (%p228) target = $region24
    $region23: #{encoder_forward.3} parent=5 // pred_region
      // Predicated region
      $region25: #{encoder_forward.3} parent=23 // pred_check
        %p231 = pneg %p46
      $region26: #{encoder_forward.3} parent=23 // pred_check_branch
        %233 = sbr.rel (%p231) target = $region28
      $region27: #{encoder_forward.3} parent=23 // pred_region
        %s234 = smul.u32 4, %s19
        %p235 = scmp.lt.s32.totalorder %s20, 1
        %s236 = scalar_select %p235, %s20, 1
        %p237 = scmp.lt.s32.totalorder %s234, 3
        %s238 = scalar_select %p237, %s234, 3
        %s239 = smul.addr %s236, 4
        %s240 = sadd.s32 %s238, %s239
        %s241 = smul.addr %s240, 8
        %s242 = scalar_lea.vmem %s0, %s241
        %s243 = smul.u32 4, %s19
      $region28: #{encoder_forward.3} parent=23 // pred_fallthru
        _
      // Predicated region
      $region29: #{encoder_forward.3} parent=23 // pred_check
        %p244 = pneg %p74
      $region30: #{encoder_forward.3} parent=23 // pred_check_branch
        %246 = sbr.rel (%p244) target = $region32
      $region31: #{encoder_forward.3} parent=23 // pred_region
        %s247 = smul.u32 4, %s19
        %p248 = scmp.lt.s32.totalorder %s20, 1
        %s249 = scalar_select %p248, %s20, 1
        %p250 = scmp.lt.s32.totalorder %s247, 3
        %s251 = scalar_select %p250, %s247, 3
        %s252 = smul.addr %s249, 4
        %s253 = sadd.s32 %s251, %s252
        %s254 = smul.addr %s253, 8
        %s255 = scalar_lea.vmem %s1, %s254
        %s256 = smul.u32 4, %s19
      $region32: #{encoder_forward.3} parent=23 // pred_fallthru
        _
      // Predicated region
      $region33: #{encoder_forward.3} parent=23 // pred_check
        %p257 = pneg %p102
      $region34: #{encoder_forward.3} parent=23 // pred_check_branch
        %259 = sbr.rel (%p257) target = $region36
      $region35: #{encoder_forward.3} parent=23 // pred_region
        %p260 = scmp.lt.s32.totalorder %s20, 1
        %s261 = scalar_select %p260, %s20, 1
        %p262 = scmp.lt.s32.totalorder %s19, 0
        %s263 = scalar_select %p262, %s19, 0
        %s264 = sadd.s32 %s263, %s261
        %s265 = smul.addr %s264, 8
        %s266 = scalar_lea.vmem %s2, %s265
      $region36: #{encoder_forward.3} parent=23 // pred_fallthru
        _
      // Predicated region
      $region37: #{encoder_forward.3} parent=23 // pred_check
        %p267 = pneg %p130
      $region38: #{encoder_forward.3} parent=23 // pred_check_branch
        %269 = sbr.rel (%p267) target = $region40
      $region39: #{encoder_forward.3} parent=23 // pred_region
        %p270 = scmp.lt.s32.totalorder %s20, 1
        %s271 = scalar_select %p270, %s20, 1
        %p272 = scmp.lt.s32.totalorder %s19, 0
        %s273 = scalar_select %p272, %s19, 0
        %s274 = sadd.s32 %s273, %s271
        %s275 = smul.addr %s274, 8
        %s276 = scalar_lea.vmem %s3, %s275
      $region40: #{encoder_forward.3} parent=23 // pred_fallthru
        _
    $region24: #{encoder_forward.3} parent=5 // pred_fallthru
      _
    %p277 = scmp.le.s32.totalorder 1, %s12
    %p278 = scmp.lt.s32.totalorder %s12, 3
    %p279 = pnand %p277, %p278
    %p280 = pneg %p279
    // Predicated region
    $region41: #{encoder_forward.3} parent=5 // pred_check
      _
    $region42: #{encoder_forward.3} parent=5 // pred_check_branch
      %282 = sbr.rel (%p279) target = $region44
    $region43: #{encoder_forward.3} parent=5 // pred_region
      %s283 = ssub.s32 %s12, 1
      %s284 = smul.u32 4, %s21
      %p285 = scmp.lt.s32.totalorder %s22, 1
      %s286 = scalar_select %p285, %s22, 1
      %p287 = scmp.lt.s32.totalorder %s284, 3
      %s288 = scalar_select %p287, %s284, 3
      %s289 = smul.addr %s286, 4
      %s290 = sadd.s32 %s288, %s289
      %s291 = smul.addr %s290, 8
      %s292 = scalar_lea.vmem %s0, %s291
      %p293 = pneg %p52
      %p294 = pneg %p49
      %s295 = smul.u32 4, %s21
      %p296 = scmp.lt.s32.totalorder %s22, 1
      %s297 = scalar_select %p296, %s22, 1
      %p298 = scmp.lt.s32.totalorder %s295, 3
      %s299 = scalar_select %p298, %s295, 3
      %s300 = smul.addr %s297, 4
      %s301 = sadd.s32 %s299, %s300
      %s302 = smul.addr %s301, 8
      %s303 = scalar_lea.vmem %s1, %s302
      %p304 = pneg %p80
      %p305 = pneg %p77
      %p306 = scmp.lt.s32.totalorder %s22, 1
      %s307 = scalar_select %p306, %s22, 1
      %p308 = scmp.lt.s32.totalorder %s21, 0
      %s309 = scalar_select %p308, %s21, 0
      %s310 = sadd.s32 %s309, %s307
      %s311 = smul.addr %s310, 8
      %s312 = scalar_lea.vmem %s2, %s311
      %p313 = pneg %p108
      %p314 = pneg %p105
      %p315 = scmp.lt.s32.totalorder %s22, 1
      %s316 = scalar_select %p315, %s22, 1
      %p317 = scmp.lt.s32.totalorder %s21, 0
      %s318 = scalar_select %p317, %s21, 0
      %s319 = sadd.s32 %s318, %s316
      %s320 = smul.addr %s319, 8
      %s321 = scalar_lea.vmem %s3, %s320
      %p322 = pneg %p136
      %p323 = pneg %p133
      %p324 = pneg %p157
      %p325 = pneg %p154
      %p326 = pneg %p178
      %p327 = pneg %p175
      %p328 = pneg %p206
      %p329 = pneg %p203
      %s330 = smul.u32 4, %s21
      %p331 = scmp.lt.s32.totalorder %s22, 1
      %s332 = scalar_select %p331, %s22, 1
      %p333 = scmp.lt.s32.totalorder %s330, 3
      %s334 = scalar_select %p333, %s330, 3
      %s335 = smul.addr %s332, 4
      %s336 = sadd.s32 %s334, %s335
      %s337 = smul.addr %s336, 4
      %s338 = scalar_lea.vmem %s6, %s337
      %s339 = smul.u32 4, %s21
      %p340 = scmp.lt.s32.totalorder %s22, 1
      %s341 = scalar_select %p340, %s22, 1
      %p342 = scmp.lt.s32.totalorder %s339, 3
      %s343 = scalar_select %p342, %s339, 3
      %s344 = smul.addr %s341, 4
      %s345 = sadd.s32 %s343, %s344
      %s346 = smul.addr %s345, 8
      %s347 = scalar_lea.vmem %s0, %s346
      %s348 = smul.u32 4, %s21
      %s349 = smul.u32 4, %s21
      %p350 = scmp.lt.s32.totalorder %s22, 1
      %s351 = scalar_select %p350, %s22, 1
      %p352 = scmp.lt.s32.totalorder %s349, 3
      %s353 = scalar_select %p352, %s349, 3
      %s354 = smul.addr %s351, 4
      %s355 = sadd.s32 %s353, %s354
      %s356 = smul.addr %s355, 8
      %s357 = scalar_lea.vmem %s1, %s356
      %s358 = smul.u32 4, %s21
      %p359 = scmp.lt.s32.totalorder %s22, 1
      %s360 = scalar_select %p359, %s22, 1
      %p361 = scmp.lt.s32.totalorder %s21, 0
      %s362 = scalar_select %p361, %s21, 0
      %s363 = sadd.s32 %s362, %s360
      %s364 = smul.addr %s363, 8
      %s365 = scalar_lea.vmem %s2, %s364
      %p366 = scmp.lt.s32.totalorder %s22, 1
      %s367 = scalar_select %p366, %s22, 1
      %p368 = scmp.lt.s32.totalorder %s21, 0
      %s369 = scalar_select %p368, %s21, 0
      %s370 = sadd.s32 %s369, %s367
      %s371 = smul.addr %s370, 8
      %s372 = scalar_lea.vmem %s3, %s371
      %s373 = smul.u32 4, %s21
      %p374 = scmp.lt.s32.totalorder %s22, 1
      %s375 = scalar_select %p374, %s22, 1
      %p376 = scmp.lt.s32.totalorder %s373, 3
      %s377 = scalar_select %p376, %s373, 3
      %s378 = smul.addr %s375, 4
      %s379 = sadd.s32 %s377, %s378
      %s380 = smul.addr %s379, 4
      %s381 = scalar_lea.vmem %s6, %s380
      %s382 = smul.u32 4, %s21
      %v383 = vld [vmem:[%s347] sm:$0xff]
      %v384 = vld [vmem:[%s347 + $0x8] sm:$0xff]
      %v385 = vld [vmem:[%s347 + $0x10] sm:$0xff]
      %v386 = vld [vmem:[%s347 + $0x18] sm:$0xff]
      %vm387 = vcmask 7168
      %388 = vst.msk [vmem:[#allocation2] sm:$0xff] %vm387, %v383
      %389 = vst.msk [vmem:[#allocation2 + $0x8] sm:$0xff] %vm387, %v384
      %390 = vst.msk [vmem:[#allocation2 + $0x10] sm:$0xff] %vm387, %v385
      %391 = vst.msk [vmem:[#allocation2 + $0x18] sm:$0xff] %vm387, %v386
      %v392 = vld [vmem:[%s365] sm:$0xff]
      %393 = vst.msk [vmem:[#allocation2 + $0x20] sm:$0xff] %vm387, %v392
      %v394 = vld [vmem:[%s357] sm:$0xff]
      %v395 = vld [vmem:[%s357 + $0x8] sm:$0xff]
      %v396 = vld [vmem:[%s357 + $0x10] sm:$0xff]
      %v397 = vld [vmem:[%s357 + $0x18] sm:$0xff]
      %398 = vst.msk [vmem:[#allocation3] sm:$0xff] %vm387, %v394
      %399 = vst.msk [vmem:[#allocation3 + $0x8] sm:$0xff] %vm387, %v395
      %400 = vst.msk [vmem:[#allocation3 + $0x10] sm:$0xff] %vm387, %v396
      %401 = vst.msk [vmem:[#allocation3 + $0x18] sm:$0xff] %vm387, %v397
      %v402 = vld [vmem:[%s372] sm:$0xff]
      %403 = vst.msk [vmem:[#allocation3 + $0x20] sm:$0xff] %vm387, %v402
      %v404 = vld [vmem:[#allocation2] sm:$0xff]
      %v405 = vld [vmem:[#allocation2 + $0x8] sm:$0xff]
      %v406 = vld [vmem:[#allocation2 + $0x10] sm:$0xff]
      %v407 = vld [vmem:[#allocation2 + $0x18] sm:$0xff]
      %v408 = vld [vmem:[%s4] sm:$0x1]
      %410 = vset.pattern.permute.xlu0 0
      %411 = vperm.xlu0 %410, %v404
      %v412 = vpop.permute.xlu0 %411
      %415 = vset.pattern.permute.xlu0 0
      %416 = vperm.xlu0 %415, %v405
      %v417 = vpop.permute.xlu0 %416
      %420 = vset.pattern.permute.xlu0 0
      %421 = vperm.xlu0 %420, %v406
      %v422 = vpop.permute.xlu0 %421
      %425 = vset.pattern.permute.xlu0 0
      %426 = vperm.xlu0 %425, %v407
      %v427 = vpop.permute.xlu0 %426
      %v430 = vlaneseq
      %v431 = vshrl.u32 %v430, 7
      %v432 = vsub.s32 0, %v431
      %v433 = vrot.slane %v408, %v432
      %v435 = vmul.f32 %v412, %v433
      %v436 = vmul.f32 %v417, %v433
      %v437 = vmul.f32 %v422, %v433
      %v438 = vmul.f32 %v427, %v433
      %v439 = vld [vmem:[#allocation3] sm:$0xff]
      %v440 = vld [vmem:[#allocation3 + $0x8] sm:$0xff]
      %v441 = vld [vmem:[#allocation3 + $0x10] sm:$0xff]
      %v442 = vld [vmem:[#allocation3 + $0x18] sm:$0xff]
      %s443 = scalar_lea.vmem %s4, 1
      %v444 = vld [vmem:[%s443] sm:$0x1]
      %446 = vset.pattern.permute.xlu0 0
      %447 = vperm.xlu0 %446, %v439
      %v448 = vpop.permute.xlu0 %447
      %451 = vset.pattern.permute.xlu0 0
      %452 = vperm.xlu0 %451, %v440
      %v453 = vpop.permute.xlu0 %452
      %456 = vset.pattern.permute.xlu0 0
      %457 = vperm.xlu0 %456, %v441
      %v458 = vpop.permute.xlu0 %457
      %461 = vset.pattern.permute.xlu0 0
      %462 = vperm.xlu0 %461, %v442
      %v463 = vpop.permute.xlu0 %462
      %v466 = vlaneseq
      %v467 = vshrl.u32 %v466, 7
      %v468 = vsub.s32 0, %v467
      %v469 = vrot.slane %v444, %v468
      %v471 = vmul.f32 %v448, %v469
      %v472 = vmul.f32 %v453, %v469
      %v473 = vmul.f32 %v458, %v469
      %v474 = vmul.f32 %v463, %v469
      %v475 = vadd.f32 %v435, %v471
      %v476 = vadd.f32 %v436, %v472
      %v477 = vadd.f32 %v437, %v473
      %v478 = vadd.f32 %v438, %v474
      %v479 = vld [vmem:[#allocation2 + $0x1] sm:$0xff]
      %v480 = vld [vmem:[#allocation2 + $0x9] sm:$0xff]
      %v481 = vld [vmem:[#allocation2 + $0x11] sm:$0xff]
      %v482 = vld [vmem:[#allocation2 + $0x19] sm:$0xff]
      %s483 = scalar_lea.vmem %s4, 2
      %v484 = vld [vmem:[%s483] sm:$0x1]
      %486 = vset.pattern.permute.xlu0 0
      %487 = vperm.xlu0 %486, %v479
      %v488 = vpop.permute.xlu0 %487
      %491 = vset.pattern.permute.xlu0 0
      %492 = vperm.xlu0 %491, %v480
      %v493 = vpop.permute.xlu0 %492
      %496 = vset.pattern.permute.xlu0 0
      %497 = vperm.xlu0 %496, %v481
      %v498 = vpop.permute.xlu0 %497
      %501 = vset.pattern.permute.xlu0 0
      %502 = vperm.xlu0 %501, %v482
      %v503 = vpop.permute.xlu0 %502
      %v506 = vlaneseq
      %v507 = vshrl.u32 %v506, 7
      %v508 = vsub.s32 0, %v507
      %v509 = vrot.slane %v484, %v508
      %v511 = vmul.f32 %v488, %v509
      %v512 = vmul.f32 %v493, %v509
      %v513 = vmul.f32 %v498, %v509
      %v514 = vmul.f32 %v503, %v509
      %v515 = vadd.f32 %v475, %v511
      %v516 = vadd.f32 %v476, %v512
      %v517 = vadd.f32 %v477, %v513
      %v518 = vadd.f32 %v478, %v514
      %v519 = vld [vmem:[#allocation3 + $0x1] sm:$0xff]
      %v520 = vld [vmem:[#allocation3 + $0x9] sm:$0xff]
      %v521 = vld [vmem:[#allocation3 + $0x11] sm:$0xff]
      %v522 = vld [vmem:[#allocation3 + $0x19] sm:$0xff]
      %s523 = scalar_lea.vmem %s4, 3
      %v524 = vld [vmem:[%s523] sm:$0x1]
      %526 = vset.pattern.permute.xlu0 0
      %527 = vperm.xlu0 %526, %v519
      %v528 = vpop.permute.xlu0 %527
      %531 = vset.pattern.permute.xlu0 0
      %532 = vperm.xlu0 %531, %v520
      %v533 = vpop.permute.xlu0 %532
      %536 = vset.pattern.permute.xlu0 0
      %537 = vperm.xlu0 %536, %v521
      %v538 = vpop.permute.xlu0 %537
      %541 = vset.pattern.permute.xlu0 0
      %542 = vperm.xlu0 %541, %v522
      %v543 = vpop.permute.xlu0 %542
      %v546 = vlaneseq
      %v547 = vshrl.u32 %v546, 7
      %v548 = vsub.s32 0, %v547
      %v549 = vrot.slane %v524, %v548
      %v551 = vmul.f32 %v528, %v549
      %v552 = vmul.f32 %v533, %v549
      %v553 = vmul.f32 %v538, %v549
      %v554 = vmul.f32 %v543, %v549
      %v555 = vadd.f32 %v515, %v551
      %v556 = vadd.f32 %v516, %v552
      %v557 = vadd.f32 %v517, %v553
      %v558 = vadd.f32 %v518, %v554
      %v559 = vld [vmem:[#allocation2 + $0x2] sm:$0xff]
      %v560 = vld [vmem:[#allocation2 + $0xa] sm:$0xff]
      %v561 = vld [vmem:[#allocation2 + $0x12] sm:$0xff]
      %v562 = vld [vmem:[#allocation2 + $0x1a] sm:$0xff]
      %s563 = scalar_lea.vmem %s4, 4
      %v564 = vld [vmem:[%s563] sm:$0x1]
      %566 = vset.pattern.permute.xlu0 0
      %567 = vperm.xlu0 %566, %v559
      %v568 = vpop.permute.xlu0 %567
      %571 = vset.pattern.permute.xlu0 0
      %572 = vperm.xlu0 %571, %v560
      %v573 = vpop.permute.xlu0 %572
      %576 = vset.pattern.permute.xlu0 0
      %577 = vperm.xlu0 %576, %v561
      %v578 = vpop.permute.xlu0 %577
      %581 = vset.pattern.permute.xlu0 0
      %582 = vperm.xlu0 %581, %v562
      %v583 = vpop.permute.xlu0 %582
      %v586 = vlaneseq
      %v587 = vshrl.u32 %v586, 7
      %v588 = vsub.s32 0, %v587
      %v589 = vrot.slane %v564, %v588
      %v591 = vmul.f32 %v568, %v589
      %v592 = vmul.f32 %v573, %v589
      %v593 = vmul.f32 %v578, %v589
      %v594 = vmul.f32 %v583, %v589
      %v595 = vadd.f32 %v555, %v591
      %v596 = vadd.f32 %v556, %v592
      %v597 = vadd.f32 %v557, %v593
      %v598 = vadd.f32 %v558, %v594
      %v599 = vld [vmem:[%s5] sm:$0x1]
      %v601 = vlaneseq
      %v602 = vshrl.u32 %v601, 7
      %v603 = vsub.s32 0, %v602
      %v604 = vrot.slane %v599, %v603
      %v606 = vadd.f32 %v595, %v604
      %v607 = vadd.f32 %v596, %v604
      %v608 = vadd.f32 %v597, %v604
      %v609 = vadd.f32 %v598, %v604
      %v610 = vmax.f32 %v606, 0.0
      %v611 = vmax.f32 %v607, 0.0
      %v612 = vmax.f32 %v608, 0.0
      %v613 = vmax.f32 %v609, 0.0
      %v614 = vpack.c.bf16 %v611, %v610
      %v615 = vpack.c.bf16 %v613, %v612
      %v618 = vunpack.c.l.b16 %v614
      %v619 = vunpack.c.h.b16 %v614
      %v620 = vunpack.c.l.b16 %v615
      %v621 = vunpack.c.h.b16 %v615
      %v622 = vpack.c.b16 %v618, %v618
      %v623 = vpack.c.b16 %v619, %v619
      %v624 = vpack.c.b16 %v620, %v620
      %v625 = vpack.c.b16 %v621, %v621
      %vm630 = vcmask 519168
      %631 = vst.msk [vmem:[%s381] sm:$0xf] %vm630, %v622
      %632 = vst.msk [vmem:[%s381 + $0x4] sm:$0xf] %vm630, %v623
      %633 = vst.msk [vmem:[%s381 + $0x8] sm:$0xf] %vm630, %v624
      %634 = vst.msk [vmem:[%s381 + $0xc] sm:$0xf] %vm630, %v625
      %s635 = smul.u32 4, %s21
      %p636 = scmp.lt.s32.totalorder %s22, 1
      %s637 = scalar_select %p636, %s22, 1
      %p638 = scmp.lt.s32.totalorder %s635, 3
      %s639 = scalar_select %p638, %s635, 3
      %s640 = smul.addr %s637, 4
      %s641 = sadd.s32 %s639, %s640
      %s642 = smul.addr %s641, 4
      %s643 = scalar_lea.vmem %s6, %s642
      // Predicated region
      $region45: #{encoder_forward.3} parent=43 // pred_check
        %p644 = pneg %p203
      $region46: #{encoder_forward.3} parent=43 // pred_check_branch
        %646 = sbr.rel (%p644) target = $region48
      $region47: #{encoder_forward.3} parent=43 // pred_region
        %s647 = smul.u32 4, %s21
      $region48: #{encoder_forward.3} parent=43 // pred_fallthru
        _
    $region44: #{encoder_forward.3} parent=5 // pred_fallthru
      _
    %p648 = scmp.le.s32.totalorder 2, %s12
    // Predicated region
    $region49: #{encoder_forward.3} parent=5 // pred_check
      %p649 = pneg %p648
    $region50: #{encoder_forward.3} parent=5 // pred_check_branch
      %651 = sbr.rel (%p649) target = $region52
    $region51: #{encoder_forward.3} parent=5 // pred_region
      %s652 = ssub.s32 %s12, 2
      // Predicated region
      $region53: #{encoder_forward.3} parent=51 // pred_check
        %p653 = pneg %p209
      $region54: #{encoder_forward.3} parent=51 // pred_check_branch
        %655 = sbr.rel (%p653) target = $region56
      $region55: #{encoder_forward.3} parent=51 // pred_region
        %s656 = smul.u32 4, %s23
        %p657 = scmp.lt.s32.totalorder %s24, 1
        %s658 = scalar_select %p657, %s24, 1
        %p659 = scmp.lt.s32.totalorder %s656, 3
        %s660 = scalar_select %p659, %s656, 3
        %s661 = smul.addr %s658, 4
        %s662 = sadd.s32 %s660, %s661
        %s663 = smul.addr %s662, 4
        %s664 = scalar_lea.vmem %s6, %s663
      $region56: #{encoder_forward.3} parent=51 // pred_fallthru
        _
    $region52: #{encoder_forward.3} parent=5 // pred_fallthru
      _
  $region6: #{encoder_forward.3} parent=0 // loop_footer
    %s16 = sadd.s32 1, %s12
  $region7: #{encoder_forward.3} parent=0 // loop_footer_branch
    %11 = sbr.rel target = $region3
  $region8: #{encoder_forward.3} parent=0 // loop_exit
    _

// kernel: encoder_forward.4
$region0: #{encoder_forward.4}
  #allocation0 [shape = 'u32[]', space=smem, size = 0x4, offset = 0x4, fixed_abs, tag = 'smem constant byte address 0x4 - core index']
  #allocation1 [shape = 'u32[144,128]{1,0:T(1,128)}', space=vmem, size = 0x12000, scoped, tag = 'internal scratch']
  #allocation2 [shape = 'bf16[24,64]{1,0:T(8,128)(2,1)}', space=vmem, size = 0x1800, scoped, tag = 'scratch operand']
  #allocation3 [shape = 'bf16[24,64]{1,0:T(8,128)(2,1)}', space=vmem, size = 0x1800, scoped, tag = 'scratch operand']
  %s0 = inlined_call_operand.vmem [shape: bf16[2,16,64], index: 0, kind: input, shape index: {}]
  %s1 = inlined_call_operand.vmem [shape: bf16[2,16,64], index: 1, kind: input, shape index: {}]
  %s2 = inlined_call_operand.vmem [shape: bf16[2,1,8,64], index: 2, kind: input, shape index: {}]
  %s3 = inlined_call_operand.vmem [shape: bf16[2,1,8,64], index: 3, kind: input, shape index: {}]
  %s4 = inlined_call_operand.vmem [shape: bf16[5,64,128], index: 4, kind: input, shape index: {}]
  %s5 = inlined_call_operand.vmem [shape: f32[1,128], index: 5, kind: input, shape index: {}]
  %s6 = inlined_call_operand.vmem [shape: bf16[2,16,128], index: 6, kind: output, shape index: {}]
  %s7 = sld [smem:[#allocation0]]
  $region57: #{encoder_forward.4} parent=0
    _
  %s9 = ssub.s32 1, %s7
  %s10 = scalar_select 0, %s9, %s7
  loop: start=0, step=1, limit=4
  $region2: #{encoder_forward.4} parent=0 // loop_pre_header
    _
  $region3: #{encoder_forward.4} parent=0 // loop_header
    %s12 = sphi 0, %s16
    %p13 = scmp.ge.s32.totalorder %s12, 4
    %s19 = sphi 0, %s31
    %s20 = sphi 0, %s27
    %s21 = sphi 0, %s19
    %s22 = sphi 0, %s20
    %s23 = sphi 0, %s21
    %s24 = sphi 0, %s22
    %s36 = sphi 0, %s38
    %s39 = sphi 0, %s36
    %s40 = sphi 0, %s39
    %s56 = sphi 0, %s40
    %s64 = sphi 0, %s66
    %s67 = sphi 0, %s64
    %s68 = sphi 0, %s67
    %s84 = sphi 0, %s68
    %s92 = sphi 0, %s94
    %s95 = sphi 0, %s92
    %s96 = sphi 0, %s95
    %s112 = sphi 0, %s96
    %s120 = sphi 0, %s122
    %s123 = sphi 0, %s120
    %s124 = sphi 0, %s123
    %s140 = sphi 0, %s124
    %s144 = sphi 0, %s144
    %s146 = sphi 0, %s144
    %s147 = sphi 0, %s146
    %s161 = sphi 0, %s147
    %s165 = sphi 0, %s165
    %s167 = sphi 0, %s165
    %s168 = sphi 0, %s167
    %s182 = sphi 0, %s168
    %s190 = sphi 0, %s192
    %s193 = sphi 0, %s190
    %s194 = sphi 0, %s193
    %s210 = sphi 0, %s194
  $region4: #{encoder_forward.4} parent=0 // loop_header_branch
    %15 = sbr.rel (%p13) target = $region8
  $region5: #{encoder_forward.4} parent=0 // loop_body
    %s17 = ssub.s32 %s12, 1
    %s18 = ssub.s32 %s12, 2
    %s25 = sadd.s32 1, %s20
    %p26 = scmp.ge.s32.totalorder %s25, 2
    %s27 = scalar_select %p26, 0, %s25
    %s28 = sadd.s32 1, %s19
    %s29 = scalar_select %p26, %s28, %s19
    %p30 = scmp.ge.s32.totalorder %s29, 1
    %s31 = scalar_select %p30, 0, %s29
    %s32 = ssub.s32 %s20, %s27
    %s33 = ssub.s32 %s19, %s31
    %s34 = sor.u32 %s32, %s33
    %p35 = scmp.eq.s32.totalorder %s34, 0
    %s37 = sadd.s32 %s36, 1
    %s38 = scalar_select %p35, %s36, %s37
    %p41 = pneg %p35
    %p42 = scmp.eq.s32.totalorder %s12, 1
    %p43 = por %p41, %p42
    %p44 = scmp.ne.s32.totalorder %s36, %s39
    %p45 = scmp.eq.s32.totalorder %s12, 0
    %p46 = por %p44, %p45
    %p47 = scmp.ne.s32.totalorder %s36, %s39
    %p48 = scmp.eq.s32.totalorder %s17, 1
    %p49 = por %p47, %p48
    %p50 = scmp.ne.s32.totalorder %s39, %s40
    %p51 = scmp.eq.s32.totalorder %s17, 0
    %p52 = por %p50, %p51
    %p53 = scmp.ne.s32.totalorder %s39, %s40
    %p54 = scmp.eq.s32.totalorder %s18, 1
    %p55 = por %p53, %p54
    %p57 = scmp.ne.s32.totalorder %s40, %s56
    %p58 = scmp.eq.s32.totalorder %s18, 0
    %p59 = por %p57, %p58
    %s60 = ssub.s32 %s20, %s27
    %s61 = ssub.s32 %s19, %s31
    %s62 = sor.u32 %s60, %s61
    %p63 = scmp.eq.s32.totalorder %s62, 0
    %s65 = sadd.s32 %s64, 1
    %s66 = scalar_select %p63, %s64, %s65
    %p69 = pneg %p63
    %p70 = scmp.eq.s32.totalorder %s12, 1
    %p71 = por %p69, %p70
    %p72 = scmp.ne.s32.totalorder %s64, %s67
    %p73 = scmp.eq.s32.totalorder %s12, 0
    %p74 = por %p72, %p73
    %p75 = scmp.ne.s32.totalorder %s64, %s67
    %p76 = scmp.eq.s32.totalorder %s17, 1
    %p77 = por %p75, %p76
    %p78 = scmp.ne.s32.totalorder %s67, %s68
    %p79 = scmp.eq.s32.totalorder %s17, 0
    %p80 = por %p78, %p79
    %p81 = scmp.ne.s32.totalorder %s67, %s68
    %p82 = scmp.eq.s32.totalorder %s18, 1
    %p83 = por %p81, %p82
    %p85 = scmp.ne.s32.totalorder %s68, %s84
    %p86 = scmp.eq.s32.totalorder %s18, 0
    %p87 = por %p85, %p86
    %s88 = ssub.s32 %s20, %s27
    %s89 = ssub.s32 %s19, %s31
    %s90 = sor.u32 %s88, %s89
    %p91 = scmp.eq.s32.totalorder %s90, 0
    %s93 = sadd.s32 %s92, 1
    %s94 = scalar_select %p91, %s92, %s93
    %p97 = pneg %p91
    %p98 = scmp.eq.s32.totalorder %s12, 1
    %p99 = por %p97, %p98
    %p100 = scmp.ne.s32.totalorder %s92, %s95
    %p101 = scmp.eq.s32.totalorder %s12, 0
    %p102 = por %p100, %p101
    %p103 = scmp.ne.s32.totalorder %s92, %s95
    %p104 = scmp.eq.s32.totalorder %s17, 1
    %p105 = por %p103, %p104
    %p106 = scmp.ne.s32.totalorder %s95, %s96
    %p107 = scmp.eq.s32.totalorder %s17, 0
    %p108 = por %p106, %p107
    %p109 = scmp.ne.s32.totalorder %s95, %s96
    %p110 = scmp.eq.s32.totalorder %s18, 1
    %p111 = por %p109, %p110
    %p113 = scmp.ne.s32.totalorder %s96, %s112
    %p114 = scmp.eq.s32.totalorder %s18, 0
    %p115 = por %p113, %p114
    %s116 = ssub.s32 %s20, %s27
    %s117 = ssub.s32 %s19, %s31
    %s118 = sor.u32 %s116, %s117
    %p119 = scmp.eq.s32.totalorder %s118, 0
    %s121 = sadd.s32 %s120, 1
    %s122 = scalar_select %p119, %s120, %s121
    %p125 = pneg %p119
    %p126 = scmp.eq.s32.totalorder %s12, 1
    %p127 = por %p125, %p126
    %p128 = scmp.ne.s32.totalorder %s120, %s123
    %p129 = scmp.eq.s32.totalorder %s12, 0
    %p130 = por %p128, %p129
    %p131 = scmp.ne.s32.totalorder %s120, %s123
    %p132 = scmp.eq.s32.totalorder %s17, 1
    %p133 = por %p131, %p132
    %p134 = scmp.ne.s32.totalorder %s123, %s124
    %p135 = scmp.eq.s32.totalorder %s17, 0
    %p136 = por %p134, %p135
    %p137 = scmp.ne.s32.totalorder %s123, %s124
    %p138 = scmp.eq.s32.totalorder %s18, 1
    %p139 = por %p137, %p138
    %p141 = scmp.ne.s32.totalorder %s124, %s140
    %p142 = scmp.eq.s32.totalorder %s18, 0
    %p143 = por %p141, %p142
    %s145 = sadd.s32 %s144, 1
    %p148 = scmp.eq.s32.totalorder %s12, 1
    %p149 = scmp.ne.s32.totalorder %s144, %s146
    %p150 = scmp.eq.s32.totalorder %s12, 0
    %p151 = por %p149, %p150
    %p152 = scmp.ne.s32.totalorder %s144, %s146
    %p153 = scmp.eq.s32.totalorder %s17, 1
    %p154 = por %p152, %p153
    %p155 = scmp.ne.s32.totalorder %s146, %s147
    %p156 = scmp.eq.s32.totalorder %s17, 0
    %p157 = por %p155, %p156
    %p158 = scmp.ne.s32.totalorder %s146, %s147
    %p159 = scmp.eq.s32.totalorder %s18, 1
    %p160 = por %p158, %p159
    %p162 = scmp.ne.s32.totalorder %s147, %s161
    %p163 = scmp.eq.s32.totalorder %s18, 0
    %p164 = por %p162, %p163
    %s166 = sadd.s32 %s165, 1
    %p169 = scmp.eq.s32.totalorder %s12, 1
    %p170 = scmp.ne.s32.totalorder %s165, %s167
    %p171 = scmp.eq.s32.totalorder %s12, 0
    %p172 = por %p170, %p171
    %p173 = scmp.ne.s32.totalorder %s165, %s167
    %p174 = scmp.eq.s32.totalorder %s17, 1
    %p175 = por %p173, %p174
    %p176 = scmp.ne.s32.totalorder %s167, %s168
    %p177 = scmp.eq.s32.totalorder %s17, 0
    %p178 = por %p176, %p177
    %p179 = scmp.ne.s32.totalorder %s167, %s168
    %p180 = scmp.eq.s32.totalorder %s18, 1
    %p181 = por %p179, %p180
    %p183 = scmp.ne.s32.totalorder %s168, %s182
    %p184 = scmp.eq.s32.totalorder %s18, 0
    %p185 = por %p183, %p184
    %s186 = ssub.s32 %s20, %s27
    %s187 = ssub.s32 %s19, %s31
    %s188 = sor.u32 %s186, %s187
    %p189 = scmp.eq.s32.totalorder %s188, 0
    %s191 = sadd.s32 %s190, 1
    %s192 = scalar_select %p189, %s190, %s191
    %p195 = pneg %p189
    %p196 = scmp.eq.s32.totalorder %s12, 1
    %p197 = por %p195, %p196
    %p198 = scmp.ne.s32.totalorder %s190, %s193
    %p199 = scmp.eq.s32.totalorder %s12, 0
    %p200 = por %p198, %p199
    %p201 = scmp.ne.s32.totalorder %s190, %s193
    %p202 = scmp.eq.s32.totalorder %s17, 1
    %p203 = por %p201, %p202
    %p204 = scmp.ne.s32.totalorder %s193, %s194
    %p205 = scmp.eq.s32.totalorder %s17, 0
    %p206 = por %p204, %p205
    %p207 = scmp.ne.s32.totalorder %s193, %s194
    %p208 = scmp.eq.s32.totalorder %s18, 1
    %p209 = por %p207, %p208
    %p211 = scmp.ne.s32.totalorder %s194, %s210
    %p212 = scmp.eq.s32.totalorder %s18, 0
    %p213 = por %p211, %p212
    %p214 = scmp.le.s32.totalorder 1, %s12
    %p215 = scmp.lt.s32.totalorder %s12, 3
    %p216 = pnand %p214, %p215
    %p217 = pneg %p216
    // Predicated region
    $region9: #{encoder_forward.4} parent=5 // pred_check
      _
    $region10: #{encoder_forward.4} parent=5 // pred_check_branch
      %219 = sbr.rel (%p216) target = $region12
    $region11: #{encoder_forward.4} parent=5 // pred_region
      %s220 = ssub.s32 %s12, 1
      // Predicated region
      $region13: #{encoder_forward.4} parent=11 // pred_check
        %p221 = pneg %p157
      $region14: #{encoder_forward.4} parent=11 // pred_check_branch
        %223 = sbr.rel (%p221) target = $region16
      $region15: #{encoder_forward.4} parent=11 // pred_region
        _
      $region16: #{encoder_forward.4} parent=11 // pred_fallthru
        _
      // Predicated region
      $region17: #{encoder_forward.4} parent=11 // pred_check
        %p224 = pneg %p178
      $region18: #{encoder_forward.4} parent=11 // pred_check_branch
        %226 = sbr.rel (%p224) target = $region20
      $region19: #{encoder_forward.4} parent=11 // pred_region
        _
      $region20: #{encoder_forward.4} parent=11 // pred_fallthru
        _
    $region12: #{encoder_forward.4} parent=5 // pred_fallthru
      _
    %p227 = scmp.lt.s32.totalorder %s12, 2
    // Predicated region
    $region21: #{encoder_forward.4} parent=5 // pred_check
      %p228 = pneg %p227
    $region22: #{encoder_forward.4} parent=5 // pred_check_branch
      %230 = sbr.rel (%p228) target = $region24
    $region23: #{encoder_forward.4} parent=5 // pred_region
      // Predicated region
      $region25: #{encoder_forward.4} parent=23 // pred_check
        %p231 = pneg %p46
      $region26: #{encoder_forward.4} parent=23 // pred_check_branch
        %233 = sbr.rel (%p231) target = $region28
      $region27: #{encoder_forward.4} parent=23 // pred_region
        %s234 = smul.u32 2, %s19
        %p235 = scmp.lt.s32.totalorder %s20, 1
        %s236 = scalar_select %p235, %s20, 1
        %p237 = scmp.lt.s32.totalorder %s234, 1
        %s238 = scalar_select %p237, %s234, 1
        %s239 = smul.addr %s236, 2
        %s240 = sadd.s32 %s238, %s239
        %s241 = smul.addr %s240, 4
        %s242 = scalar_lea.vmem %s0, %s241
        %s243 = smul.u32 2, %s19
      $region28: #{encoder_forward.4} parent=23 // pred_fallthru
        _
      // Predicated region
      $region29: #{encoder_forward.4} parent=23 // pred_check
        %p244 = pneg %p74
      $region30: #{encoder_forward.4} parent=23 // pred_check_branch
        %246 = sbr.rel (%p244) target = $region32
      $region31: #{encoder_forward.4} parent=23 // pred_region
        %s247 = smul.u32 2, %s19
        %p248 = scmp.lt.s32.totalorder %s20, 1
        %s249 = scalar_select %p248, %s20, 1
        %p250 = scmp.lt.s32.totalorder %s247, 1
        %s251 = scalar_select %p250, %s247, 1
        %s252 = smul.addr %s249, 2
        %s253 = sadd.s32 %s251, %s252
        %s254 = smul.addr %s253, 4
        %s255 = scalar_lea.vmem %s1, %s254
        %s256 = smul.u32 2, %s19
      $region32: #{encoder_forward.4} parent=23 // pred_fallthru
        _
      // Predicated region
      $region33: #{encoder_forward.4} parent=23 // pred_check
        %p257 = pneg %p102
      $region34: #{encoder_forward.4} parent=23 // pred_check_branch
        %259 = sbr.rel (%p257) target = $region36
      $region35: #{encoder_forward.4} parent=23 // pred_region
        %p260 = scmp.lt.s32.totalorder %s20, 1
        %s261 = scalar_select %p260, %s20, 1
        %p262 = scmp.lt.s32.totalorder %s19, 0
        %s263 = scalar_select %p262, %s19, 0
        %s264 = sadd.s32 %s263, %s261
        %s265 = smul.addr %s264, 4
        %s266 = scalar_lea.vmem %s2, %s265
      $region36: #{encoder_forward.4} parent=23 // pred_fallthru
        _
      // Predicated region
      $region37: #{encoder_forward.4} parent=23 // pred_check
        %p267 = pneg %p130
      $region38: #{encoder_forward.4} parent=23 // pred_check_branch
        %269 = sbr.rel (%p267) target = $region40
      $region39: #{encoder_forward.4} parent=23 // pred_region
        %p270 = scmp.lt.s32.totalorder %s20, 1
        %s271 = scalar_select %p270, %s20, 1
        %p272 = scmp.lt.s32.totalorder %s19, 0
        %s273 = scalar_select %p272, %s19, 0
        %s274 = sadd.s32 %s273, %s271
        %s275 = smul.addr %s274, 4
        %s276 = scalar_lea.vmem %s3, %s275
      $region40: #{encoder_forward.4} parent=23 // pred_fallthru
        _
    $region24: #{encoder_forward.4} parent=5 // pred_fallthru
      _
    %p277 = scmp.le.s32.totalorder 1, %s12
    %p278 = scmp.lt.s32.totalorder %s12, 3
    %p279 = pnand %p277, %p278
    %p280 = pneg %p279
    // Predicated region
    $region41: #{encoder_forward.4} parent=5 // pred_check
      _
    $region42: #{encoder_forward.4} parent=5 // pred_check_branch
      %282 = sbr.rel (%p279) target = $region44
    $region43: #{encoder_forward.4} parent=5 // pred_region
      %s283 = ssub.s32 %s12, 1
      %s284 = smul.u32 2, %s21
      %p285 = scmp.lt.s32.totalorder %s22, 1
      %s286 = scalar_select %p285, %s22, 1
      %p287 = scmp.lt.s32.totalorder %s284, 1
      %s288 = scalar_select %p287, %s284, 1
      %s289 = smul.addr %s286, 2
      %s290 = sadd.s32 %s288, %s289
      %s291 = smul.addr %s290, 4
      %s292 = scalar_lea.vmem %s0, %s291
      %p293 = pneg %p52
      %p294 = pneg %p49
      %s295 = smul.u32 2, %s21
      %p296 = scmp.lt.s32.totalorder %s22, 1
      %s297 = scalar_select %p296, %s22, 1
      %p298 = scmp.lt.s32.totalorder %s295, 1
      %s299 = scalar_select %p298, %s295, 1
      %s300 = smul.addr %s297, 2
      %s301 = sadd.s32 %s299, %s300
      %s302 = smul.addr %s301, 4
      %s303 = scalar_lea.vmem %s1, %s302
      %p304 = pneg %p80
      %p305 = pneg %p77
      %p306 = scmp.lt.s32.totalorder %s22, 1
      %s307 = scalar_select %p306, %s22, 1
      %p308 = scmp.lt.s32.totalorder %s21, 0
      %s309 = scalar_select %p308, %s21, 0
      %s310 = sadd.s32 %s309, %s307
      %s311 = smul.addr %s310, 4
      %s312 = scalar_lea.vmem %s2, %s311
      %p313 = pneg %p108
      %p314 = pneg %p105
      %p315 = scmp.lt.s32.totalorder %s22, 1
      %s316 = scalar_select %p315, %s22, 1
      %p317 = scmp.lt.s32.totalorder %s21, 0
      %s318 = scalar_select %p317, %s21, 0
      %s319 = sadd.s32 %s318, %s316
      %s320 = smul.addr %s319, 4
      %s321 = scalar_lea.vmem %s3, %s320
      %p322 = pneg %p136
      %p323 = pneg %p133
      %p324 = pneg %p157
      %p325 = pneg %p154
      %p326 = pneg %p178
      %p327 = pneg %p175
      %p328 = pneg %p206
      %p329 = pneg %p203
      %s330 = smul.u32 2, %s21
      %p331 = scmp.lt.s32.totalorder %s22, 1
      %s332 = scalar_select %p331, %s22, 1
      %p333 = scmp.lt.s32.totalorder %s330, 1
      %s334 = scalar_select %p333, %s330, 1
      %s335 = smul.addr %s332, 2
      %s336 = sadd.s32 %s334, %s335
      %s337 = smul.addr %s336, 4
      %s338 = scalar_lea.vmem %s6, %s337
      %s339 = smul.u32 2, %s21
      %p340 = scmp.lt.s32.totalorder %s22, 1
      %s341 = scalar_select %p340, %s22, 1
      %p342 = scmp.lt.s32.totalorder %s339, 1
      %s343 = scalar_select %p342, %s339, 1
      %s344 = smul.addr %s341, 2
      %s345 = sadd.s32 %s343, %s344
      %s346 = smul.addr %s345, 4
      %s347 = scalar_lea.vmem %s0, %s346
      %s348 = smul.u32 2, %s21
      %s349 = smul.u32 2, %s21
      %p350 = scmp.lt.s32.totalorder %s22, 1
      %s351 = scalar_select %p350, %s22, 1
      %p352 = scmp.lt.s32.totalorder %s349, 1
      %s353 = scalar_select %p352, %s349, 1
      %s354 = smul.addr %s351, 2
      %s355 = sadd.s32 %s353, %s354
      %s356 = smul.addr %s355, 4
      %s357 = scalar_lea.vmem %s1, %s356
      %s358 = smul.u32 2, %s21
      %p359 = scmp.lt.s32.totalorder %s22, 1
      %s360 = scalar_select %p359, %s22, 1
      %p361 = scmp.lt.s32.totalorder %s21, 0
      %s362 = scalar_select %p361, %s21, 0
      %s363 = sadd.s32 %s362, %s360
      %s364 = smul.addr %s363, 4
      %s365 = scalar_lea.vmem %s2, %s364
      %p366 = scmp.lt.s32.totalorder %s22, 1
      %s367 = scalar_select %p366, %s22, 1
      %p368 = scmp.lt.s32.totalorder %s21, 0
      %s369 = scalar_select %p368, %s21, 0
      %s370 = sadd.s32 %s369, %s367
      %s371 = smul.addr %s370, 4
      %s372 = scalar_lea.vmem %s3, %s371
      %s373 = smul.u32 2, %s21
      %p374 = scmp.lt.s32.totalorder %s22, 1
      %s375 = scalar_select %p374, %s22, 1
      %p376 = scmp.lt.s32.totalorder %s373, 1
      %s377 = scalar_select %p376, %s373, 1
      %s378 = smul.addr %s375, 2
      %s379 = sadd.s32 %s377, %s378
      %s380 = smul.addr %s379, 4
      %s381 = scalar_lea.vmem %s6, %s380
      %s382 = smul.u32 2, %s21
      %v384 = vld [vmem:[%s347] sm:$0xf]
      %v385 = vld [vmem:[%s347 + $0x4] sm:$0xf]
      %vm386 = vcmask 519168
      %387 = vst.msk [vmem:[#allocation2] sm:$0xf] %vm386, %v384
      %388 = vst.msk [vmem:[#allocation2 + $0x4] sm:$0xf] %vm386, %v385
      %v389 = vld [vmem:[%s365] sm:$0xf]
      %390 = vst.msk [vmem:[#allocation2 + $0x8] sm:$0xf] %vm386, %v389
      %v391 = vld [vmem:[%s357] sm:$0xf]
      %v392 = vld [vmem:[%s357 + $0x4] sm:$0xf]
      %393 = vst.msk [vmem:[#allocation3] sm:$0xf] %vm386, %v391
      %394 = vst.msk [vmem:[#allocation3 + $0x4] sm:$0xf] %vm386, %v392
      %v395 = vld [vmem:[%s372] sm:$0xf]
      %396 = vst.msk [vmem:[#allocation3 + $0x8] sm:$0xf] %vm386, %v395
      %v397 = vld [vmem:[#allocation2] sm:$0xf]
      %v398 = vld [vmem:[#allocation2 + $0x4] sm:$0xf]
      %v399 = vld [vmem:[%s4] sm:$0xf]
      %v400 = vld [vmem:[%s4 + $0x4] sm:$0xf]
      %v401 = vld [vmem:[%s4 + $0x8] sm:$0xf]
      %v402 = vld [vmem:[%s4 + $0xc] sm:$0xf]
      %v403 = vld [vmem:[%s4 + $0x10] sm:$0xf]
      %v404 = vld [vmem:[%s4 + $0x14] sm:$0xf]
      %v405 = vld [vmem:[%s4 + $0x18] sm:$0xf]
      %v406 = vld [vmem:[%s4 + $0x1c] sm:$0xf]
      %v407 = vld [vmem:[#allocation3] sm:$0xf]
      %v408 = vld [vmem:[#allocation3 + $0x4] sm:$0xf]
      %s409 = scalar_lea.vmem %s4, 32
      %v410 = vld [vmem:[%s409] sm:$0xf]
      %v411 = vld [vmem:[%s409 + $0x4] sm:$0xf]
      %v412 = vld [vmem:[%s409 + $0x8] sm:$0xf]
      %v413 = vld [vmem:[%s409 + $0xc] sm:$0xf]
      %v414 = vld [vmem:[%s409 + $0x10] sm:$0xf]
      %v415 = vld [vmem:[%s409 + $0x14] sm:$0xf]
      %v416 = vld [vmem:[%s409 + $0x18] sm:$0xf]
      %v417 = vld [vmem:[%s409 + $0x1c] sm:$0xf]
      %v420 = vunpack.c.l.b16 %v407
      %v421 = vunpack.c.l.b16 %v408
      %v422 = vpack.c.b16 %v421, %v420
      %v431 = vunpack.c.l.b16 %v410
      %v432 = vunpack.c.l.b16 %v411
      %v433 = vunpack.c.l.b16 %v412
      %v434 = vunpack.c.l.b16 %v413
      %v435 = vunpack.c.l.b16 %v414
      %v436 = vunpack.c.l.b16 %v415
      %v437 = vunpack.c.l.b16 %v416
      %v438 = vunpack.c.l.b16 %v417
      %v439 = vpack.c.b16 %v432, %v431
      %v440 = vpack.c.b16 %v434, %v433
      %v441 = vpack.c.b16 %v436, %v435
      %v442 = vpack.c.b16 %v438, %v437
      %vm447 = vcmask 523264
      %v449 = vsel %vm447, %v422, 0
      %451 = vmatprep.subr.bf16.mxu0 0
      %452 = vmatpush1.bf16.msra.mxu0 0
      %453 = vmatprep.subr.bf16.mxu0 0
      %454 = vmatpush1.bf16.msra.mxu0 0
      %455 = vmatprep.subr.bf16.mxu0 0
      %456 = vmatpush1.bf16.msra.mxu0 0
      %457 = vmatprep.subr.bf16.mxu0 0
      %458 = vmatpush1.bf16.msra.mxu0 0
      %459 = vmatprep.subr.bf16.mxu0 0
      %460 = vmatpush1.bf16.msra.mxu0 %v442
      %461 = vmatprep.subr.bf16.mxu0 0
      %462 = vmatpush1.bf16.msra.mxu0 %v441
      %463 = vmatprep.subr.bf16.mxu0 0
      %464 = vmatpush1.bf16.msra.mxu0 %v440
      %465 = vmatprep.subr.bf16.mxu0 0
      %466 = vmatpush1.bf16.msra.mxu0 %v439
      %467 = vmatprep.subr.bf16.mxu0 0
      %468 = vmatpush2.bf16.msra.mxu0 0
      %469 = vmatprep.subr.bf16.mxu0 0
      %470 = vmatpush2.bf16.msra.mxu0 0
      %471 = vmatprep.subr.bf16.mxu0 0
      %472 = vmatpush2.bf16.msra.mxu0 0
      %473 = vmatprep.subr.bf16.mxu0 0
      %474 = vmatpush2.bf16.msra.mxu0 0
      %475 = vmatprep.subr.bf16.mxu0 0
      %476 = vmatpush2.bf16.msra.mxu0 0
      %477 = vmatprep.subr.bf16.mxu0 0
      %478 = vmatpush2.bf16.msra.mxu0 0
      %479 = vmatprep.subr.bf16.mxu0 0
      %480 = vmatpush2.bf16.msra.mxu0 0
      %481 = vmatprep.subr.bf16.mxu0 0
      %482 = vmatpush2.bf16.msra.mxu0 0
      %483 = vmatprep.mubr.bf16.mxu0 0
      %484 = vmatmul.mubr.bf16.gmra.mxu0 %v449
      %v485 = vpop.f32.mrf.mxu0
      %v486 = vadd.f32 0.0, %v485
      %v487 = vpop.f32.mrf.mxu0
      %v488 = vpop.f32.mrf.mxu0
      %v489 = vadd.f32 0.0, %v488
      %v490 = vpop.f32.mrf.mxu0
      %491 = vdwg.mxu0
      %v494 = vunpack.c.l.b16 %v397
      %v495 = vunpack.c.l.b16 %v398
      %v496 = vpack.c.b16 %v495, %v494
      %v505 = vunpack.c.l.b16 %v399
      %v506 = vunpack.c.l.b16 %v400
      %v507 = vunpack.c.l.b16 %v401
      %v508 = vunpack.c.l.b16 %v402
      %v509 = vunpack.c.l.b16 %v403
      %v510 = vunpack.c.l.b16 %v404
      %v511 = vunpack.c.l.b16 %v405
      %v512 = vunpack.c.l.b16 %v406
      %v513 = vpack.c.b16 %v506, %v505
      %v514 = vpack.c.b16 %v508, %v507
      %v515 = vpack.c.b16 %v510, %v509
      %v516 = vpack.c.b16 %v512, %v511
      %v522 = vsel %vm447, %v496, 0
      %524 = vmatprep.subr.bf16.mxu0 0
      %525 = vmatpush1.bf16.msra.mxu0 0
      %526 = vmatprep.subr.bf16.mxu0 0
      %527 = vmatpush1.bf16.msra.mxu0 0
      %528 = vmatprep.subr.bf16.mxu0 0
      %529 = vmatpush1.bf16.msra.mxu0 0
      %530 = vmatprep.subr.bf16.mxu0 0
      %531 = vmatpush1.bf16.msra.mxu0 0
      %532 = vmatprep.subr.bf16.mxu0 0
      %533 = vmatpush1.bf16.msra.mxu0 %v516
      %534 = vmatprep.subr.bf16.mxu0 0
      %535 = vmatpush1.bf16.msra.mxu0 %v515
      %536 = vmatprep.subr.bf16.mxu0 0
      %537 = vmatpush1.bf16.msra.mxu0 %v514
      %538 = vmatprep.subr.bf16.mxu0 0
      %539 = vmatpush1.bf16.msra.mxu0 %v513
      %540 = vmatprep.subr.bf16.mxu0 0
      %541 = vmatpush2.bf16.msra.mxu0 0
      %542 = vmatprep.subr.bf16.mxu0 0
      %543 = vmatpush2.bf16.msra.mxu0 0
      %544 = vmatprep.subr.bf16.mxu0 0
      %545 = vmatpush2.bf16.msra.mxu0 0
      %546 = vmatprep.subr.bf16.mxu0 0
      %547 = vmatpush2.bf16.msra.mxu0 0
      %548 = vmatprep.subr.bf16.mxu0 0
      %549 = vmatpush2.bf16.msra.mxu0 0
      %550 = vmatprep.subr.bf16.mxu0 0
      %551 = vmatpush2.bf16.msra.mxu0 0
      %552 = vmatprep.subr.bf16.mxu0 0
      %553 = vmatpush2.bf16.msra.mxu0 0
      %554 = vmatprep.subr.bf16.mxu0 0
      %555 = vmatpush2.bf16.msra.mxu0 0
      %556 = vmatprep.mubr.bf16.mxu0 0
      %557 = vmatmul.mubr.bf16.gmra.mxu0 %v522
      %v558 = vpop.f32.mrf.mxu0
      %v559 = vadd.f32 %v486, %v558
      %v560 = vpop.f32.mrf.mxu0
      %v561 = vpop.f32.mrf.mxu0
      %v562 = vadd.f32 %v489, %v561
      %v563 = vpop.f32.mrf.mxu0
      %564 = vdwg.mxu0
      %v565 = vld [vmem:[#allocation2] sm:$0xf]
      %v566 = vld [vmem:[#allocation2 + $0x4] sm:$0xf]
      %v567 = vld [vmem:[#allocation2 + $0x8] sm:$0x1]
      %s568 = scalar_lea.vmem %s4, 64
      %v569 = vld [vmem:[%s568] sm:$0xf]
      %v570 = vld [vmem:[%s568 + $0x4] sm:$0xf]
      %v571 = vld [vmem:[%s568 + $0x8] sm:$0xf]
      %v572 = vld [vmem:[%s568 + $0xc] sm:$0xf]
      %v573 = vld [vmem:[%s568 + $0x10] sm:$0xf]
      %v574 = vld [vmem:[%s568 + $0x14] sm:$0xf]
      %v575 = vld [vmem:[%s568 + $0x18] sm:$0xf]
      %v576 = vld [vmem:[%s568 + $0x1c] sm:$0xf]
      %v580 = vunpack.c.l.b16 %v565
      %v581 = vunpack.c.l.b16 %v566
      %v582 = vunpack.c.l.b16 %v567
      %v583 = vpack.c.b16 %v581, %v580
      %v584 = vpack.c.b16 %v582, %v582
      %vm585 = vsmask.f32 7424
      %v587 = vshrl.u32 %v583, 16
      %v589 = vshll.u32 %v583, 16
      %v591 = vrot.slane %v589, 1
      %v592 = vor.u32 %v587, %v591
      %v594 = vshll.u32 %v584, 16
      %v596 = vrot.slane %v594, 1
      %v597 = vsel %vm585, %v592, %v596
      %v606 = vunpack.c.l.b16 %v569
      %v607 = vunpack.c.l.b16 %v570
      %v608 = vunpack.c.l.b16 %v571
      %v609 = vunpack.c.l.b16 %v572
      %v610 = vunpack.c.l.b16 %v573
      %v611 = vunpack.c.l.b16 %v574
      %v612 = vunpack.c.l.b16 %v575
      %v613 = vunpack.c.l.b16 %v576
      %v614 = vpack.c.b16 %v607, %v606
      %v615 = vpack.c.b16 %v609, %v608
      %v616 = vpack.c.b16 %v611, %v610
      %v617 = vpack.c.b16 %v613, %v612
      %v623 = vsel %vm447, %v597, 0
      %625 = vmatprep.subr.bf16.mxu0 0
      %626 = vmatpush1.bf16.msra.mxu0 0
      %627 = vmatprep.subr.bf16.mxu0 0
      %628 = vmatpush1.bf16.msra.mxu0 0
      %629 = vmatprep.subr.bf16.mxu0 0
      %630 = vmatpush1.bf16.msra.mxu0 0
      %631 = vmatprep.subr.bf16.mxu0 0
      %632 = vmatpush1.bf16.msra.mxu0 0
      %633 = vmatprep.subr.bf16.mxu0 0
      %634 = vmatpush1.bf16.msra.mxu0 %v617
      %635 = vmatprep.subr.bf16.mxu0 0
      %636 = vmatpush1.bf16.msra.mxu0 %v616
      %637 = vmatprep.subr.bf16.mxu0 0
      %638 = vmatpush1.bf16.msra.mxu0 %v615
      %639 = vmatprep.subr.bf16.mxu0 0
      %640 = vmatpush1.bf16.msra.mxu0 %v614
      %641 = vmatprep.subr.bf16.mxu0 0
      %642 = vmatpush2.bf16.msra.mxu0 0
      %643 = vmatprep.subr.bf16.mxu0 0
      %644 = vmatpush2.bf16.msra.mxu0 0
      %645 = vmatprep.subr.bf16.mxu0 0
      %646 = vmatpush2.bf16.msra.mxu0 0
      %647 = vmatprep.subr.bf16.mxu0 0
      %648 = vmatpush2.bf16.msra.mxu0 0
      %649 = vmatprep.subr.bf16.mxu0 0
      %650 = vmatpush2.bf16.msra.mxu0 0
      %651 = vmatprep.subr.bf16.mxu0 0
      %652 = vmatpush2.bf16.msra.mxu0 0
      %653 = vmatprep.subr.bf16.mxu0 0
      %654 = vmatpush2.bf16.msra.mxu0 0
      %655 = vmatprep.subr.bf16.mxu0 0
      %656 = vmatpush2.bf16.msra.mxu0 0
      %657 = vmatprep.mubr.bf16.mxu0 0
      %658 = vmatmul.mubr.bf16.gmra.mxu0 %v623
      %v659 = vpop.f32.mrf.mxu0
      %v660 = vadd.f32 0.0, %v659
      %v661 = vpop.f32.mrf.mxu0
      %v662 = vpop.f32.mrf.mxu0
      %v663 = vadd.f32 0.0, %v662
      %v664 = vpop.f32.mrf.mxu0
      %665 = vdwg.mxu0
      %v666 = vadd.f32 %v559, %v660
      %v667 = vadd.f32 %v562, %v663
      %v668 = vld [vmem:[#allocation3] sm:$0xf]
      %v669 = vld [vmem:[#allocation3 + $0x4] sm:$0xf]
      %v670 = vld [vmem:[#allocation3 + $0x8] sm:$0x1]
      %s671 = scalar_lea.vmem %s4, 96
      %v672 = vld [vmem:[%s671] sm:$0xf]
      %v673 = vld [vmem:[%s671 + $0x4] sm:$0xf]
      %v674 = vld [vmem:[%s671 + $0x8] sm:$0xf]
      %v675 = vld [vmem:[%s671 + $0xc] sm:$0xf]
      %v676 = vld [vmem:[%s671 + $0x10] sm:$0xf]
      %v677 = vld [vmem:[%s671 + $0x14] sm:$0xf]
      %v678 = vld [vmem:[%s671 + $0x18] sm:$0xf]
      %v679 = vld [vmem:[%s671 + $0x1c] sm:$0xf]
      %v683 = vunpack.c.l.b16 %v668
      %v684 = vunpack.c.l.b16 %v669
      %v685 = vunpack.c.l.b16 %v670
      %v686 = vpack.c.b16 %v684, %v683
      %v687 = vpack.c.b16 %v685, %v685
      %v689 = vshrl.u32 %v686, 16
      %v691 = vshll.u32 %v686, 16
      %v693 = vrot.slane %v691, 1
      %v694 = vor.u32 %v689, %v693
      %v696 = vshll.u32 %v687, 16
      %v698 = vrot.slane %v696, 1
      %v699 = vsel %vm585, %v694, %v698
      %v708 = vunpack.c.l.b16 %v672
      %v709 = vunpack.c.l.b16 %v673
      %v710 = vunpack.c.l.b16 %v674
      %v711 = vunpack.c.l.b16 %v675
      %v712 = vunpack.c.l.b16 %v676
      %v713 = vunpack.c.l.b16 %v677
      %v714 = vunpack.c.l.b16 %v678
      %v715 = vunpack.c.l.b16 %v679
      %v716 = vpack.c.b16 %v709, %v708
      %v717 = vpack.c.b16 %v711, %v710
      %v718 = vpack.c.b16 %v713, %v712
      %v719 = vpack.c.b16 %v715, %v714
      %v725 = vsel %vm447, %v699, 0
      %727 = vmatprep.subr.bf16.mxu0 0
      %728 = vmatpush1.bf16.msra.mxu0 0
      %729 = vmatprep.subr.bf16.mxu0 0
      %730 = vmatpush1.bf16.msra.mxu0 0
      %731 = vmatprep.subr.bf16.mxu0 0
      %732 = vmatpush1.bf16.msra.mxu0 0
      %733 = vmatprep.subr.bf16.mxu0 0
      %734 = vmatpush1.bf16.msra.mxu0 0
      %735 = vmatprep.subr.bf16.mxu0 0
      %736 = vmatpush1.bf16.msra.mxu0 %v719
      %737 = vmatprep.subr.bf16.mxu0 0
      %738 = vmatpush1.bf16.msra.mxu0 %v718
      %739 = vmatprep.subr.bf16.mxu0 0
      %740 = vmatpush1.bf16.msra.mxu0 %v717
      %741 = vmatprep.subr.bf16.mxu0 0
      %742 = vmatpush1.bf16.msra.mxu0 %v716
      %743 = vmatprep.subr.bf16.mxu0 0
      %744 = vmatpush2.bf16.msra.mxu0 0
      %745 = vmatprep.subr.bf16.mxu0 0
      %746 = vmatpush2.bf16.msra.mxu0 0
      %747 = vmatprep.subr.bf16.mxu0 0
      %748 = vmatpush2.bf16.msra.mxu0 0
      %749 = vmatprep.subr.bf16.mxu0 0
      %750 = vmatpush2.bf16.msra.mxu0 0
      %751 = vmatprep.subr.bf16.mxu0 0
      %752 = vmatpush2.bf16.msra.mxu0 0
      %753 = vmatprep.subr.bf16.mxu0 0
      %754 = vmatpush2.bf16.msra.mxu0 0
      %755 = vmatprep.subr.bf16.mxu0 0
      %756 = vmatpush2.bf16.msra.mxu0 0
      %757 = vmatprep.subr.bf16.mxu0 0
      %758 = vmatpush2.bf16.msra.mxu0 0
      %759 = vmatprep.mubr.bf16.mxu0 0
      %760 = vmatmul.mubr.bf16.gmra.mxu0 %v725
      %v761 = vpop.f32.mrf.mxu0
      %v762 = vadd.f32 0.0, %v761
      %v763 = vpop.f32.mrf.mxu0
      %v764 = vpop.f32.mrf.mxu0
      %v765 = vadd.f32 0.0, %v764
      %v766 = vpop.f32.mrf.mxu0
      %767 = vdwg.mxu0
      %v768 = vadd.f32 %v666, %v762
      %v769 = vadd.f32 %v667, %v765
      %v770 = vld [vmem:[#allocation2] sm:$0xe]
      %s771 = scalar_lea.vmem %s4, 128
      %v772 = vld [vmem:[%s771] sm:$0xf]
      %v773 = vld [vmem:[%s771 + $0x4] sm:$0xf]
      %v774 = vld [vmem:[%s771 + $0x8] sm:$0xf]
      %v775 = vld [vmem:[%s771 + $0xc] sm:$0xf]
      %v776 = vld [vmem:[%s771 + $0x10] sm:$0xf]
      %v777 = vld [vmem:[%s771 + $0x14] sm:$0xf]
      %v778 = vld [vmem:[%s771 + $0x18] sm:$0xf]
      %v779 = vld [vmem:[%s771 + $0x1c] sm:$0xf]
      %v781 = vunpack.c.l.b16 %v770
      %v782 = vpack.c.b16 %v581, %v781
      %vm783 = vcmask 1046528
      %v784 = vrot.slane %v782, 1
      %v785 = vrot.slane %v584, 1
      %v786 = vsel %vm783, %v784, %v785
      %v795 = vunpack.c.l.b16 %v772
      %v796 = vunpack.c.l.b16 %v773
      %v797 = vunpack.c.l.b16 %v774
      %v798 = vunpack.c.l.b16 %v775
      %v799 = vunpack.c.l.b16 %v776
      %v800 = vunpack.c.l.b16 %v777
      %v801 = vunpack.c.l.b16 %v778
      %v802 = vunpack.c.l.b16 %v779
      %v803 = vpack.c.b16 %v796, %v795
      %v804 = vpack.c.b16 %v798, %v797
      %v805 = vpack.c.b16 %v800, %v799
      %v806 = vpack.c.b16 %v802, %v801
      %v812 = vsel %vm447, %v786, 0
      %814 = vmatprep.subr.bf16.mxu0 0
      %815 = vmatpush1.bf16.msra.mxu0 0
      %816 = vmatprep.subr.bf16.mxu0 0
      %817 = vmatpush1.bf16.msra.mxu0 0
      %818 = vmatprep.subr.bf16.mxu0 0
      %819 = vmatpush1.bf16.msra.mxu0 0
      %820 = vmatprep.subr.bf16.mxu0 0
      %821 = vmatpush1.bf16.msra.mxu0 0
      %822 = vmatprep.subr.bf16.mxu0 0
      %823 = vmatpush1.bf16.msra.mxu0 %v806
      %824 = vmatprep.subr.bf16.mxu0 0
      %825 = vmatpush1.bf16.msra.mxu0 %v805
      %826 = vmatprep.subr.bf16.mxu0 0
      %827 = vmatpush1.bf16.msra.mxu0 %v804
      %828 = vmatprep.subr.bf16.mxu0 0
      %829 = vmatpush1.bf16.msra.mxu0 %v803
      %830 = vmatprep.subr.bf16.mxu0 0
      %831 = vmatpush2.bf16.msra.mxu0 0
      %832 = vmatprep.subr.bf16.mxu0 0
      %833 = vmatpush2.bf16.msra.mxu0 0
      %834 = vmatprep.subr.bf16.mxu0 0
      %835 = vmatpush2.bf16.msra.mxu0 0
      %836 = vmatprep.subr.bf16.mxu0 0
      %837 = vmatpush2.bf16.msra.mxu0 0
      %838 = vmatprep.subr.bf16.mxu0 0
      %839 = vmatpush2.bf16.msra.mxu0 0
      %840 = vmatprep.subr.bf16.mxu0 0
      %841 = vmatpush2.bf16.msra.mxu0 0
      %842 = vmatprep.subr.bf16.mxu0 0
      %843 = vmatpush2.bf16.msra.mxu0 0
      %844 = vmatprep.subr.bf16.mxu0 0
      %845 = vmatpush2.bf16.msra.mxu0 0
      %846 = vmatprep.mubr.bf16.mxu0 0
      %847 = vmatmul.mubr.bf16.gmra.mxu0 %v812
      %v848 = vpop.f32.mrf.mxu0
      %v849 = vadd.f32 0.0, %v848
      %v850 = vpop.f32.mrf.mxu0
      %v851 = vpop.f32.mrf.mxu0
      %v852 = vadd.f32 0.0, %v851
      %v853 = vpop.f32.mrf.mxu0
      %854 = vdwg.mxu0
      %v855 = vadd.f32 %v768, %v849
      %v856 = vadd.f32 %v769, %v852
      %v857 = vld [vmem:[%s5] sm:$0x1]
      %v859 = vlaneseq
      %v860 = vshrl.u32 %v859, 7
      %v861 = vsub.s32 0, %v860
      %v862 = vrot.slane %v857, %v861
      %v864 = vadd.f32 %v855, %v862
      %v865 = vadd.f32 %v856, %v862
      %v866 = vmax.f32 %v864, 0.0
      %v867 = vmax.f32 %v865, 0.0
      %v868 = vpack.c.bf16 %v867, %v866
      %v870 = vunpack.c.l.b16 %v868
      %v871 = vunpack.c.h.b16 %v868
      %v872 = vpack.c.b16 %v870, %v870
      %v873 = vpack.c.b16 %v871, %v871
      %876 = vst [vmem:[%s381] sm:$0xf] %v872
      %877 = vst [vmem:[%s381 + $0x4] sm:$0xf] %v873
      %s878 = smul.u32 2, %s21
      %p879 = scmp.lt.s32.totalorder %s22, 1
      %s880 = scalar_select %p879, %s22, 1
      %p881 = scmp.lt.s32.totalorder %s878, 1
      %s882 = scalar_select %p881, %s878, 1
      %s883 = smul.addr %s880, 2
      %s884 = sadd.s32 %s882, %s883
      %s885 = smul.addr %s884, 4
      %s886 = scalar_lea.vmem %s6, %s885
      // Predicated region
      $region45: #{encoder_forward.4} parent=43 // pred_check
        %p887 = pneg %p203
      $region46: #{encoder_forward.4} parent=43 // pred_check_branch
        %889 = sbr.rel (%p887) target = $region48
      $region47: #{encoder_forward.4} parent=43 // pred_region
        %s890 = smul.u32 2, %s21
      $region48: #{encoder_forward.4} parent=43 // pred_fallthru
        _
    $region44: #{encoder_forward.4} parent=5 // pred_fallthru
      _
    %p891 = scmp.le.s32.totalorder 2, %s12
    // Predicated region
    $region49: #{encoder_forward.4} parent=5 // pred_check
      %p892 = pneg %p891
    $region50: #{encoder_forward.4} parent=5 // pred_check_branch
      %894 = sbr.rel (%p892) target = $region52
    $region51: #{encoder_forward.4} parent=5 // pred_region
      %s895 = ssub.s32 %s12, 2
      // Predicated region
      $region53: #{encoder_forward.4} parent=51 // pred_check
        %p896 = pneg %p209
      $region54: #{encoder_forward.4} parent=51 // pred_check_branch
        %898 = sbr.rel (%p896) target = $region56
      $region55: #{encoder_forward.4} parent=51 // pred_region
        %s899 = smul.u32 2, %s23
        %p900 = scmp.lt.s32.totalorder %s24, 1
        %s901 = scalar_select %p900, %s24, 1
        %p902 = scmp.lt.s32.totalorder %s899, 1
        %s903 = scalar_select %p902, %s899, 1
        %s904 = smul.addr %s901, 2
        %s905 = sadd.s32 %s903, %s904
        %s906 = smul.addr %s905, 4
        %s907 = scalar_lea.vmem %s6, %s906
      $region56: #{encoder_forward.4} parent=51 // pred_fallthru
        _
    $region52: #{encoder_forward.4} parent=5 // pred_fallthru
      _
  $region6: #{encoder_forward.4} parent=0 // loop_footer
    %s16 = sadd.s32 1, %s12
  $region7: #{encoder_forward.4} parent=0 // loop_footer_branch
    %11 = sbr.rel target = $region3
  $region8: #{encoder_forward.4} parent=0 // loop_exit
    _

// kernel: encoder_forward.5
$region0: #{encoder_forward.5}
  #allocation0 [shape = 'u32[]', space=smem, size = 0x4, offset = 0x4, fixed_abs, tag = 'smem constant byte address 0x4 - core index']
  #allocation1 [shape = 'u32[144,128]{1,0:T(1,128)}', space=vmem, size = 0x12000, scoped, tag = 'internal scratch']
  #allocation2 [shape = 'bf16[16,128]{1,0:T(8,128)(2,1)}', space=vmem, size = 0x1000, scoped, tag = 'scratch operand']
  #allocation3 [shape = 'bf16[16,128]{1,0:T(8,128)(2,1)}', space=vmem, size = 0x1000, scoped, tag = 'scratch operand']
  %s0 = inlined_call_operand.vmem [shape: bf16[2,8,128], index: 0, kind: input, shape index: {}]
  %s1 = inlined_call_operand.vmem [shape: bf16[2,8,128], index: 1, kind: input, shape index: {}]
  %s2 = inlined_call_operand.vmem [shape: bf16[2,1,8,128], index: 2, kind: input, shape index: {}]
  %s3 = inlined_call_operand.vmem [shape: bf16[2,1,8,128], index: 3, kind: input, shape index: {}]
  %s4 = inlined_call_operand.vmem [shape: bf16[5,128,256], index: 4, kind: input, shape index: {}]
  %s5 = inlined_call_operand.vmem [shape: f32[1,256], index: 5, kind: input, shape index: {}]
  %s6 = inlined_call_operand.vmem [shape: f32[8,256], index: 6, kind: input, shape index: {}]
  %s7 = inlined_call_operand.hbm [shape: f32[2,8,256], index: 7, kind: output, shape index: {}]
  %s8 = sld [smem:[#allocation0]]
  $region61: #{encoder_forward.5} parent=0
    _
  %s10 = ssub.s32 1, %s8
  %s11 = scalar_select 0, %s10, %s8
  $region1: #{encoder_forward.5} parent=0
    #allocation4 [shape = 'u8[16384]{0}', space=vmem, size = 0x4000, scoped, tag = 'output window, operand 0']
    #allocation5 [shape = 's32[2]{0}', space=sflag, size = 0x8, scoped, tag = 'scoped memory for encoder_forward.5']
    %12 = vsyncpa [#allocation5], 0
    %s13 = scalar_lea.sflag [#allocation5], 1
    %14 = vsyncpa %s13, 0
    loop: start=0, step=1, limit=4
    $region2: #{encoder_forward.5} parent=1 // loop_pre_header
      _
    $region3: #{encoder_forward.5} parent=1 // loop_header
      %s16 = sphi 0, %s20
      %p17 = scmp.ge.s32.totalorder %s16, 4
      %s23 = sphi 0, %s35
      %s24 = sphi 0, %s31
      %s25 = sphi 0, %s23
      %s26 = sphi 0, %s24
      %s27 = sphi 0, %s25
      %s28 = sphi 0, %s26
      %s40 = sphi 0, %s42
      %s43 = sphi 0, %s40
      %s44 = sphi 0, %s43
      %s60 = sphi 0, %s44
      %s68 = sphi 0, %s70
      %s71 = sphi 0, %s68
      %s72 = sphi 0, %s71
      %s88 = sphi 0, %s72
      %s96 = sphi 0, %s98
      %s99 = sphi 0, %s96
      %s100 = sphi 0, %s99
      %s116 = sphi 0, %s100
      %s124 = sphi 0, %s126
      %s127 = sphi 0, %s124
      %s128 = sphi 0, %s127
      %s144 = sphi 0, %s128
      %s148 = sphi 0, %s148
      %s150 = sphi 0, %s148
      %s151 = sphi 0, %s150
      %s165 = sphi 0, %s151
      %s169 = sphi 0, %s169
      %s171 = sphi 0, %s169
      %s172 = sphi 0, %s171
      %s186 = sphi 0, %s172
      %s192 = sphi 0, %s194
      %s195 = sphi 0, %s192
      %s196 = sphi 0, %s195
      %s212 = sphi 0, %s196
      %s220 = sphi 0, %s222
      %s223 = sphi 0, %s220
      %s224 = sphi 0, %s223
      %s240 = sphi 0, %s224
    $region4: #{encoder_forward.5} parent=1 // loop_header_branch
      %19 = sbr.rel (%p17) target = $region8
    $region5: #{encoder_forward.5} parent=1 // loop_body
      %s21 = ssub.s32 %s16, 1
      %s22 = ssub.s32 %s16, 2
      %s29 = sadd.s32 1, %s24
      %p30 = scmp.ge.s32.totalorder %s29, 2
      %s31 = scalar_select %p30, 0, %s29
      %s32 = sadd.s32 1, %s23
      %s33 = scalar_select %p30, %s32, %s23
      %p34 = scmp.ge.s32.totalorder %s33, 1
      %s35 = scalar_select %p34, 0, %s33
      %s36 = ssub.s32 %s24, %s31
      %s37 = ssub.s32 %s23, %s35
      %s38 = sor.u32 %s36, %s37
      %p39 = scmp.eq.s32.totalorder %s38, 0
      %s41 = sadd.s32 %s40, 1
      %s42 = scalar_select %p39, %s40, %s41
      %p45 = pneg %p39
      %p46 = scmp.eq.s32.totalorder %s16, 1
      %p47 = por %p45, %p46
      %p48 = scmp.ne.s32.totalorder %s40, %s43
      %p49 = scmp.eq.s32.totalorder %s16, 0
      %p50 = por %p48, %p49
      %p51 = scmp.ne.s32.totalorder %s40, %s43
      %p52 = scmp.eq.s32.totalorder %s21, 1
      %p53 = por %p51, %p52
      %p54 = scmp.ne.s32.totalorder %s43, %s44
      %p55 = scmp.eq.s32.totalorder %s21, 0
      %p56 = por %p54, %p55
      %p57 = scmp.ne.s32.totalorder %s43, %s44
      %p58 = scmp.eq.s32.totalorder %s22, 1
      %p59 = por %p57, %p58
      %p61 = scmp.ne.s32.totalorder %s44, %s60
      %p62 = scmp.eq.s32.totalorder %s22, 0
      %p63 = por %p61, %p62
      %s64 = ssub.s32 %s24, %s31
      %s65 = ssub.s32 %s23, %s35
      %s66 = sor.u32 %s64, %s65
      %p67 = scmp.eq.s32.totalorder %s66, 0
      %s69 = sadd.s32 %s68, 1
      %s70 = scalar_select %p67, %s68, %s69
      %p73 = pneg %p67
      %p74 = scmp.eq.s32.totalorder %s16, 1
      %p75 = por %p73, %p74
      %p76 = scmp.ne.s32.totalorder %s68, %s71
      %p77 = scmp.eq.s32.totalorder %s16, 0
      %p78 = por %p76, %p77
      %p79 = scmp.ne.s32.totalorder %s68, %s71
      %p80 = scmp.eq.s32.totalorder %s21, 1
      %p81 = por %p79, %p80
      %p82 = scmp.ne.s32.totalorder %s71, %s72
      %p83 = scmp.eq.s32.totalorder %s21, 0
      %p84 = por %p82, %p83
      %p85 = scmp.ne.s32.totalorder %s71, %s72
      %p86 = scmp.eq.s32.totalorder %s22, 1
      %p87 = por %p85, %p86
      %p89 = scmp.ne.s32.totalorder %s72, %s88
      %p90 = scmp.eq.s32.totalorder %s22, 0
      %p91 = por %p89, %p90
      %s92 = ssub.s32 %s24, %s31
      %s93 = ssub.s32 %s23, %s35
      %s94 = sor.u32 %s92, %s93
      %p95 = scmp.eq.s32.totalorder %s94, 0
      %s97 = sadd.s32 %s96, 1
      %s98 = scalar_select %p95, %s96, %s97
      %p101 = pneg %p95
      %p102 = scmp.eq.s32.totalorder %s16, 1
      %p103 = por %p101, %p102
      %p104 = scmp.ne.s32.totalorder %s96, %s99
      %p105 = scmp.eq.s32.totalorder %s16, 0
      %p106 = por %p104, %p105
      %p107 = scmp.ne.s32.totalorder %s96, %s99
      %p108 = scmp.eq.s32.totalorder %s21, 1
      %p109 = por %p107, %p108
      %p110 = scmp.ne.s32.totalorder %s99, %s100
      %p111 = scmp.eq.s32.totalorder %s21, 0
      %p112 = por %p110, %p111
      %p113 = scmp.ne.s32.totalorder %s99, %s100
      %p114 = scmp.eq.s32.totalorder %s22, 1
      %p115 = por %p113, %p114
      %p117 = scmp.ne.s32.totalorder %s100, %s116
      %p118 = scmp.eq.s32.totalorder %s22, 0
      %p119 = por %p117, %p118
      %s120 = ssub.s32 %s24, %s31
      %s121 = ssub.s32 %s23, %s35
      %s122 = sor.u32 %s120, %s121
      %p123 = scmp.eq.s32.totalorder %s122, 0
      %s125 = sadd.s32 %s124, 1
      %s126 = scalar_select %p123, %s124, %s125
      %p129 = pneg %p123
      %p130 = scmp.eq.s32.totalorder %s16, 1
      %p131 = por %p129, %p130
      %p132 = scmp.ne.s32.totalorder %s124, %s127
      %p133 = scmp.eq.s32.totalorder %s16, 0
      %p134 = por %p132, %p133
      %p135 = scmp.ne.s32.totalorder %s124, %s127
      %p136 = scmp.eq.s32.totalorder %s21, 1
      %p137 = por %p135, %p136
      %p138 = scmp.ne.s32.totalorder %s127, %s128
      %p139 = scmp.eq.s32.totalorder %s21, 0
      %p140 = por %p138, %p139
      %p141 = scmp.ne.s32.totalorder %s127, %s128
      %p142 = scmp.eq.s32.totalorder %s22, 1
      %p143 = por %p141, %p142
      %p145 = scmp.ne.s32.totalorder %s128, %s144
      %p146 = scmp.eq.s32.totalorder %s22, 0
      %p147 = por %p145, %p146
      %s149 = sadd.s32 %s148, 1
      %p152 = scmp.eq.s32.totalorder %s16, 1
      %p153 = scmp.ne.s32.totalorder %s148, %s150
      %p154 = scmp.eq.s32.totalorder %s16, 0
      %p155 = por %p153, %p154
      %p156 = scmp.ne.s32.totalorder %s148, %s150
      %p157 = scmp.eq.s32.totalorder %s21, 1
      %p158 = por %p156, %p157
      %p159 = scmp.ne.s32.totalorder %s150, %s151
      %p160 = scmp.eq.s32.totalorder %s21, 0
      %p161 = por %p159, %p160
      %p162 = scmp.ne.s32.totalorder %s150, %s151
      %p163 = scmp.eq.s32.totalorder %s22, 1
      %p164 = por %p162, %p163
      %p166 = scmp.ne.s32.totalorder %s151, %s165
      %p167 = scmp.eq.s32.totalorder %s22, 0
      %p168 = por %p166, %p167
      %s170 = sadd.s32 %s169, 1
      %p173 = scmp.eq.s32.totalorder %s16, 1
      %p174 = scmp.ne.s32.totalorder %s169, %s171
      %p175 = scmp.eq.s32.totalorder %s16, 0
      %p176 = por %p174, %p175
      %p177 = scmp.ne.s32.totalorder %s169, %s171
      %p178 = scmp.eq.s32.totalorder %s21, 1
      %p179 = por %p177, %p178
      %p180 = scmp.ne.s32.totalorder %s171, %s172
      %p181 = scmp.eq.s32.totalorder %s21, 0
      %p182 = por %p180, %p181
      %p183 = scmp.ne.s32.totalorder %s171, %s172
      %p184 = scmp.eq.s32.totalorder %s22, 1
      %p185 = por %p183, %p184
      %p187 = scmp.ne.s32.totalorder %s172, %s186
      %p188 = scmp.eq.s32.totalorder %s22, 0
      %p189 = por %p187, %p188
      %s190 = ssub.s32 %s23, %s35
      %p191 = scmp.eq.s32.totalorder %s190, 0
      %s193 = sadd.s32 %s192, 1
      %s194 = scalar_select %p191, %s192, %s193
      %p197 = pneg %p191
      %p198 = scmp.eq.s32.totalorder %s16, 1
      %p199 = por %p197, %p198
      %p200 = scmp.ne.s32.totalorder %s192, %s195
      %p201 = scmp.eq.s32.totalorder %s16, 0
      %p202 = por %p200, %p201
      %p203 = scmp.ne.s32.totalorder %s192, %s195
      %p204 = scmp.eq.s32.totalorder %s21, 1
      %p205 = por %p203, %p204
      %p206 = scmp.ne.s32.totalorder %s195, %s196
      %p207 = scmp.eq.s32.totalorder %s21, 0
      %p208 = por %p206, %p207
      %p209 = scmp.ne.s32.totalorder %s195, %s196
      %p210 = scmp.eq.s32.totalorder %s22, 1
      %p211 = por %p209, %p210
      %p213 = scmp.ne.s32.totalorder %s196, %s212
      %p214 = scmp.eq.s32.totalorder %s22, 0
      %p215 = por %p213, %p214
      %s216 = ssub.s32 %s24, %s31
      %s217 = ssub.s32 %s23, %s35
      %s218 = sor.u32 %s216, %s217
      %p219 = scmp.eq.s32.totalorder %s218, 0
      %s221 = sadd.s32 %s220, 1
      %s222 = scalar_select %p219, %s220, %s221
      %p225 = pneg %p219
      %p226 = scmp.eq.s32.totalorder %s16, 1
      %p227 = por %p225, %p226
      %p228 = scmp.ne.s32.totalorder %s220, %s223
      %p229 = scmp.eq.s32.totalorder %s16, 0
      %p230 = por %p228, %p229
      %p231 = scmp.ne.s32.totalorder %s220, %s223
      %p232 = scmp.eq.s32.totalorder %s21, 1
      %p233 = por %p231, %p232
      %p234 = scmp.ne.s32.totalorder %s223, %s224
      %p235 = scmp.eq.s32.totalorder %s21, 0
      %p236 = por %p234, %p235
      %p237 = scmp.ne.s32.totalorder %s223, %s224
      %p238 = scmp.eq.s32.totalorder %s22, 1
      %p239 = por %p237, %p238
      %p241 = scmp.ne.s32.totalorder %s224, %s240
      %p242 = scmp.eq.s32.totalorder %s22, 0
      %p243 = por %p241, %p242
      %p244 = scmp.le.s32.totalorder 1, %s16
      %p245 = scmp.lt.s32.totalorder %s16, 3
      %p246 = pnand %p244, %p245
      %p247 = pneg %p246
      // Predicated region
      $region9: #{encoder_forward.5} parent=5 // pred_check
        _
      $region10: #{encoder_forward.5} parent=5 // pred_check_branch
        %249 = sbr.rel (%p246) target = $region12
      $region11: #{encoder_forward.5} parent=5 // pred_region
        %s250 = ssub.s32 %s16, 1
        // Predicated region
        $region13: #{encoder_forward.5} parent=11 // pred_check
          %p251 = pneg %p161
        $region14: #{encoder_forward.5} parent=11 // pred_check_branch
          %253 = sbr.rel (%p251) target = $region16
        $region15: #{encoder_forward.5} parent=11 // pred_region
          _
        $region16: #{encoder_forward.5} parent=11 // pred_fallthru
          _
        // Predicated region
        $region17: #{encoder_forward.5} parent=11 // pred_check
          %p254 = pneg %p182
        $region18: #{encoder_forward.5} parent=11 // pred_check_branch
          %256 = sbr.rel (%p254) target = $region20
        $region19: #{encoder_forward.5} parent=11 // pred_region
          _
        $region20: #{encoder_forward.5} parent=11 // pred_fallthru
          _
        // Predicated region
        $region21: #{encoder_forward.5} parent=11 // pred_check
          %p257 = pneg %p208
        $region22: #{encoder_forward.5} parent=11 // pred_check_branch
          %259 = sbr.rel (%p257) target = $region24
        $region23: #{encoder_forward.5} parent=11 // pred_region
          %p260 = scmp.lt.s32.totalorder %s25, 0
          %s261 = scalar_select %p260, %s25, 0
          %s262 = smul.addr %s261, 2
          %s263 = smul.addr %s262, 8
          %s264 = scalar_lea.vmem %s6, %s263
        $region24: #{encoder_forward.5} parent=11 // pred_fallthru
          _
      $region12: #{encoder_forward.5} parent=5 // pred_fallthru
        _
      %p265 = scmp.lt.s32.totalorder %s16, 2
      // Predicated region
      $region25: #{encoder_forward.5} parent=5 // pred_check
        %p266 = pneg %p265
      $region26: #{encoder_forward.5} parent=5 // pred_check_branch
        %268 = sbr.rel (%p266) target = $region28
      $region27: #{encoder_forward.5} parent=5 // pred_region
        // Predicated region
        $region29: #{encoder_forward.5} parent=27 // pred_check
          %p269 = pneg %p50
        $region30: #{encoder_forward.5} parent=27 // pred_check_branch
          %271 = sbr.rel (%p269) target = $region32
        $region31: #{encoder_forward.5} parent=27 // pred_region
          %p272 = scmp.lt.s32.totalorder %s24, 1
          %s273 = scalar_select %p272, %s24, 1
          %p274 = scmp.lt.s32.totalorder %s23, 0
          %s275 = scalar_select %p274, %s23, 0
          %s276 = sadd.s32 %s275, %s273
          %s277 = smul.addr %s276, 4
          %s278 = scalar_lea.vmem %s0, %s277
        $region32: #{encoder_forward.5} parent=27 // pred_fallthru
          _
        // Predicated region
        $region33: #{encoder_forward.5} parent=27 // pred_check
          %p279 = pneg %p78
        $region34: #{encoder_forward.5} parent=27 // pred_check_branch
          %281 = sbr.rel (%p279) target = $region36
        $region35: #{encoder_forward.5} parent=27 // pred_region
          %p282 = scmp.lt.s32.totalorder %s24, 1
          %s283 = scalar_select %p282, %s24, 1
          %p284 = scmp.lt.s32.totalorder %s23, 0
          %s285 = scalar_select %p284, %s23, 0
          %s286 = sadd.s32 %s285, %s283
          %s287 = smul.addr %s286, 4
          %s288 = scalar_lea.vmem %s1, %s287
        $region36: #{encoder_forward.5} parent=27 // pred_fallthru
          _
        // Predicated region
        $region37: #{encoder_forward.5} parent=27 // pred_check
          %p289 = pneg %p106
        $region38: #{encoder_forward.5} parent=27 // pred_check_branch
          %291 = sbr.rel (%p289) target = $region40
        $region39: #{encoder_forward.5} parent=27 // pred_region
          %p292 = scmp.lt.s32.totalorder %s24, 1
          %s293 = scalar_select %p292, %s24, 1
          %p294 = scmp.lt.s32.totalorder %s23, 0
          %s295 = scalar_select %p294, %s23, 0
          %s296 = sadd.s32 %s295, %s293
          %s297 = smul.addr %s296, 4
          %s298 = scalar_lea.vmem %s2, %s297
        $region40: #{encoder_forward.5} parent=27 // pred_fallthru
          _
        // Predicated region
        $region41: #{encoder_forward.5} parent=27 // pred_check
          %p299 = pneg %p134
        $region42: #{encoder_forward.5} parent=27 // pred_check_branch
          %301 = sbr.rel (%p299) target = $region44
        $region43: #{encoder_forward.5} parent=27 // pred_region
          %p302 = scmp.lt.s32.totalorder %s24, 1
          %s303 = scalar_select %p302, %s24, 1
          %p304 = scmp.lt.s32.totalorder %s23, 0
          %s305 = scalar_select %p304, %s23, 0
          %s306 = sadd.s32 %s305, %s303
          %s307 = smul.addr %s306, 4
          %s308 = scalar_lea.vmem %s3, %s307
        $region44: #{encoder_forward.5} parent=27 // pred_fallthru
          _
      $region28: #{encoder_forward.5} parent=5 // pred_fallthru
        _
      %p309 = scmp.le.s32.totalorder 1, %s16
      %p310 = scmp.lt.s32.totalorder %s16, 3
      %p311 = pnand %p309, %p310
      %p312 = pneg %p311
      // Predicated region
      $region45: #{encoder_forward.5} parent=5 // pred_check
        _
      $region46: #{encoder_forward.5} parent=5 // pred_check_branch
        %314 = sbr.rel (%p311) target = $region48
      $region47: #{encoder_forward.5} parent=5 // pred_region
        %s315 = ssub.s32 %s16, 1
        %p316 = scmp.lt.s32.totalorder %s26, 1
        %s317 = scalar_select %p316, %s26, 1
        %p318 = scmp.lt.s32.totalorder %s25, 0
        %s319 = scalar_select %p318, %s25, 0
        %s320 = sadd.s32 %s319, %s317
        %s321 = smul.addr %s320, 4
        %s322 = scalar_lea.vmem %s0, %s321
        %p323 = pneg %p56
        %p324 = pneg %p53
        %p325 = scmp.lt.s32.totalorder %s26, 1
        %s326 = scalar_select %p325, %s26, 1
        %p327 = scmp.lt.s32.totalorder %s25, 0
        %s328 = scalar_select %p327, %s25, 0
        %s329 = sadd.s32 %s328, %s326
        %s330 = smul.addr %s329, 4
        %s331 = scalar_lea.vmem %s1, %s330
        %p332 = pneg %p84
        %p333 = pneg %p81
        %p334 = scmp.lt.s32.totalorder %s26, 1
        %s335 = scalar_select %p334, %s26, 1
        %p336 = scmp.lt.s32.totalorder %s25, 0
        %s337 = scalar_select %p336, %s25, 0
        %s338 = sadd.s32 %s337, %s335
        %s339 = smul.addr %s338, 4
        %s340 = scalar_lea.vmem %s2, %s339
        %p341 = pneg %p112
        %p342 = pneg %p109
        %p343 = scmp.lt.s32.totalorder %s26, 1
        %s344 = scalar_select %p343, %s26, 1
        %p345 = scmp.lt.s32.totalorder %s25, 0
        %s346 = scalar_select %p345, %s25, 0
        %s347 = sadd.s32 %s346, %s344
        %s348 = smul.addr %s347, 4
        %s349 = scalar_lea.vmem %s3, %s348
        %p350 = pneg %p140
        %p351 = pneg %p137
        %p352 = pneg %p161
        %p353 = pneg %p158
        %p354 = pneg %p182
        %p355 = pneg %p179
        %p356 = scmp.lt.s32.totalorder %s25, 0
        %s357 = scalar_select %p356, %s25, 0
        %s358 = smul.addr %s357, 2
        %s359 = smul.addr %s358, 8
        %s360 = scalar_lea.vmem %s6, %s359
        %p361 = pneg %p208
        %p362 = pneg %p205
        %p363 = pneg %p236
        %p364 = pneg %p233
        %s365 = sand.u32 %s223, 1
        %s366 = scalar_lea.sflag [#allocation5], %s365
        %s367 = sand.u32 %s223, 1
        %s368 = smul.addr %s367, 16
        %s369 = scalar_lea.vmem [#allocation4], %s368
        %p370 = scmp.lt.s32.totalorder %s26, 1
        %s371 = scalar_select %p370, %s26, 1
        %p372 = scmp.lt.s32.totalorder %s25, 0
        %s373 = scalar_select %p372, %s25, 0
        %s374 = sadd.s32 %s373, %s371
        %s375 = smul.addr %s374, 4
        %s376 = scalar_lea.vmem %s0, %s375
        %p377 = scmp.lt.s32.totalorder %s26, 1
        %s378 = scalar_select %p377, %s26, 1
        %p379 = scmp.lt.s32.totalorder %s25, 0
        %s380 = scalar_select %p379, %s25, 0
        %s381 = sadd.s32 %s380, %s378
        %s382 = smul.addr %s381, 4
        %s383 = scalar_lea.vmem %s1, %s382
        %p384 = scmp.lt.s32.totalorder %s26, 1
        %s385 = scalar_select %p384, %s26, 1
        %p386 = scmp.lt.s32.totalorder %s25, 0
        %s387 = scalar_select %p386, %s25, 0
        %s388 = sadd.s32 %s387, %s385
        %s389 = smul.addr %s388, 4
        %s390 = scalar_lea.vmem %s2, %s389
        %p391 = scmp.lt.s32.totalorder %s26, 1
        %s392 = scalar_select %p391, %s26, 1
        %p393 = scmp.lt.s32.totalorder %s25, 0
        %s394 = scalar_select %p393, %s25, 0
        %s395 = sadd.s32 %s394, %s392
        %s396 = smul.addr %s395, 4
        %s397 = scalar_lea.vmem %s3, %s396
        %p398 = scmp.lt.s32.totalorder %s25, 0
        %s399 = scalar_select %p398, %s25, 0
        %s400 = smul.addr %s399, 2
        %s401 = smul.addr %s400, 8
        %s402 = scalar_lea.vmem %s6, %s401
        %v404 = vld [vmem:[%s376] sm:$0xf]
        %405 = vst [vmem:[#allocation2] sm:$0xf] %v404
        %v406 = vld [vmem:[%s390] sm:$0xf]
        %407 = vst [vmem:[#allocation2 + $0x4] sm:$0xf] %v406
        %v408 = vld [vmem:[%s383] sm:$0xf]
        %409 = vst [vmem:[#allocation3] sm:$0xf] %v408
        %v410 = vld [vmem:[%s397] sm:$0xf]
        %411 = vst [vmem:[#allocation3 + $0x4] sm:$0xf] %v410
        %v412 = vld [vmem:[#allocation2] sm:$0xf]
        %v413 = vld [vmem:[%s4] sm:$0xff]
        %v414 = vld [vmem:[%s4 + $0x8] sm:$0xff]
        %v415 = vld [vmem:[%s4 + $0x10] sm:$0xff]
        %v416 = vld [vmem:[%s4 + $0x18] sm:$0xff]
        %v417 = vld [vmem:[%s4 + $0x20] sm:$0xff]
        %v418 = vld [vmem:[%s4 + $0x28] sm:$0xff]
        %v419 = vld [vmem:[%s4 + $0x30] sm:$0xff]
        %v420 = vld [vmem:[%s4 + $0x38] sm:$0xff]
        %v421 = vld [vmem:[%s4 + $0x40] sm:$0xff]
        %v422 = vld [vmem:[%s4 + $0x48] sm:$0xff]
        %v423 = vld [vmem:[%s4 + $0x50] sm:$0xff]
        %v424 = vld [vmem:[%s4 + $0x58] sm:$0xff]
        %v425 = vld [vmem:[%s4 + $0x60] sm:$0xff]
        %v426 = vld [vmem:[%s4 + $0x68] sm:$0xff]
        %v427 = vld [vmem:[%s4 + $0x70] sm:$0xff]
        %v428 = vld [vmem:[%s4 + $0x78] sm:$0xff]
        %v429 = vld [vmem:[#allocation3] sm:$0xf]
        %s430 = scalar_lea.vmem %s4, 128
        %v431 = vld [vmem:[%s430] sm:$0xff]
        %v432 = vld [vmem:[%s430 + $0x8] sm:$0xff]
        %v433 = vld [vmem:[%s430 + $0x10] sm:$0xff]
        %v434 = vld [vmem:[%s430 + $0x18] sm:$0xff]
        %v435 = vld [vmem:[%s430 + $0x20] sm:$0xff]
        %v436 = vld [vmem:[%s430 + $0x28] sm:$0xff]
        %v437 = vld [vmem:[%s430 + $0x30] sm:$0xff]
        %v438 = vld [vmem:[%s430 + $0x38] sm:$0xff]
        %v439 = vld [vmem:[%s430 + $0x40] sm:$0xff]
        %v440 = vld [vmem:[%s430 + $0x48] sm:$0xff]
        %v441 = vld [vmem:[%s430 + $0x50] sm:$0xff]
        %v442 = vld [vmem:[%s430 + $0x58] sm:$0xff]
        %v443 = vld [vmem:[%s430 + $0x60] sm:$0xff]
        %v444 = vld [vmem:[%s430 + $0x68] sm:$0xff]
        %v445 = vld [vmem:[%s430 + $0x70] sm:$0xff]
        %v446 = vld [vmem:[%s430 + $0x78] sm:$0xff]
        %v463 = vunpack.c.l.b16 %v431
        %v464 = vunpack.c.h.b16 %v431
        %v465 = vunpack.c.l.b16 %v432
        %v466 = vunpack.c.h.b16 %v432
        %v467 = vunpack.c.l.b16 %v433
        %v468 = vunpack.c.h.b16 %v433
        %v469 = vunpack.c.l.b16 %v434
        %v470 = vunpack.c.h.b16 %v434
        %v471 = vunpack.c.l.b16 %v435
        %v472 = vunpack.c.h.b16 %v435
        %v473 = vunpack.c.l.b16 %v436
        %v474 = vunpack.c.h.b16 %v436
        %v475 = vunpack.c.l.b16 %v437
        %v476 = vunpack.c.h.b16 %v437
        %v477 = vunpack.c.l.b16 %v438
        %v478 = vunpack.c.h.b16 %v438
        %v479 = vunpack.c.l.b16 %v439
        %v480 = vunpack.c.h.b16 %v439
        %v481 = vunpack.c.l.b16 %v440
        %v482 = vunpack.c.h.b16 %v440
        %v483 = vunpack.c.l.b16 %v441
        %v484 = vunpack.c.h.b16 %v441
        %v485 = vunpack.c.l.b16 %v442
        %v486 = vunpack.c.h.b16 %v442
        %v487 = vunpack.c.l.b16 %v443
        %v488 = vunpack.c.h.b16 %v443
        %v489 = vunpack.c.l.b16 %v444
        %v490 = vunpack.c.h.b16 %v444
        %v491 = vunpack.c.l.b16 %v445
        %v492 = vunpack.c.h.b16 %v445
        %v493 = vunpack.c.l.b16 %v446
        %v494 = vunpack.c.h.b16 %v446
        %v495 = vpack.c.b16 %v465, %v463
        %v496 = vpack.c.b16 %v466, %v464
        %v497 = vpack.c.b16 %v469, %v467
        %v498 = vpack.c.b16 %v470, %v468
        %v499 = vpack.c.b16 %v473, %v471
        %v500 = vpack.c.b16 %v474, %v472
        %v501 = vpack.c.b16 %v477, %v475
        %v502 = vpack.c.b16 %v478, %v476
        %v503 = vpack.c.b16 %v481, %v479
        %v504 = vpack.c.b16 %v482, %v480
        %v505 = vpack.c.b16 %v485, %v483
        %v506 = vpack.c.b16 %v486, %v484
        %v507 = vpack.c.b16 %v489, %v487
        %v508 = vpack.c.b16 %v490, %v488
        %v509 = vpack.c.b16 %v493, %v491
        %v510 = vpack.c.b16 %v494, %v492
        %527 = vmatprep.subr.bf16.mxu0 %v510
        %528 = vmatpush1.bf16.msra.mxu0 %v509
        %529 = vmatprep.subr.bf16.mxu0 %v508
        %530 = vmatpush1.bf16.msra.mxu0 %v507
        %531 = vmatprep.subr.bf16.mxu0 %v506
        %532 = vmatpush1.bf16.msra.mxu0 %v505
        %533 = vmatprep.subr.bf16.mxu0 %v504
        %534 = vmatpush1.bf16.msra.mxu0 %v503
        %535 = vmatprep.subr.bf16.mxu0 %v502
        %536 = vmatpush1.bf16.msra.mxu0 %v501
        %537 = vmatprep.subr.bf16.mxu0 %v500
        %538 = vmatpush1.bf16.msra.mxu0 %v499
        %539 = vmatprep.subr.bf16.mxu0 %v498
        %540 = vmatpush1.bf16.msra.mxu0 %v497
        %541 = vmatprep.subr.bf16.mxu0 %v496
        %542 = vmatpush1.bf16.msra.mxu0 %v495
        %543 = vmatprep.subr.bf16.mxu0 0
        %544 = vmatpush2.bf16.msra.mxu0 0
        %545 = vmatprep.subr.bf16.mxu0 0
        %546 = vmatpush2.bf16.msra.mxu0 0
        %547 = vmatprep.subr.bf16.mxu0 0
        %548 = vmatpush2.bf16.msra.mxu0 0
        %549 = vmatprep.subr.bf16.mxu0 0
        %550 = vmatpush2.bf16.msra.mxu0 0
        %551 = vmatprep.subr.bf16.mxu0 0
        %552 = vmatpush2.bf16.msra.mxu0 0
        %553 = vmatprep.subr.bf16.mxu0 0
        %554 = vmatpush2.bf16.msra.mxu0 0
        %555 = vmatprep.subr.bf16.mxu0 0
        %556 = vmatpush2.bf16.msra.mxu0 0
        %557 = vmatprep.subr.bf16.mxu0 0
        %558 = vmatpush2.bf16.msra.mxu0 0
        %559 = vmatprep.mubr.bf16.mxu0 0
        %560 = vmatmul.mubr.bf16.gmra.mxu0 %v429
        %v561 = vpop.f32.mrf.mxu0
        %v562 = vadd.f32 0.0, %v561
        %v563 = vpop.f32.mrf.mxu0
        %v564 = vadd.f32 0.0, %v563
        %v565 = vpop.f32.mrf.mxu0
        %v566 = vpop.f32.mrf.mxu0
        %567 = vdwg.mxu0
        %v584 = vunpack.c.l.b16 %v413
        %v585 = vunpack.c.h.b16 %v413
        %v586 = vunpack.c.l.b16 %v414
        %v587 = vunpack.c.h.b16 %v414
        %v588 = vunpack.c.l.b16 %v415
        %v589 = vunpack.c.h.b16 %v415
        %v590 = vunpack.c.l.b16 %v416
        %v591 = vunpack.c.h.b16 %v416
        %v592 = vunpack.c.l.b16 %v417
        %v593 = vunpack.c.h.b16 %v417
        %v594 = vunpack.c.l.b16 %v418
        %v595 = vunpack.c.h.b16 %v418
        %v596 = vunpack.c.l.b16 %v419
        %v597 = vunpack.c.h.b16 %v419
        %v598 = vunpack.c.l.b16 %v420
        %v599 = vunpack.c.h.b16 %v420
        %v600 = vunpack.c.l.b16 %v421
        %v601 = vunpack.c.h.b16 %v421
        %v602 = vunpack.c.l.b16 %v422
        %v603 = vunpack.c.h.b16 %v422
        %v604 = vunpack.c.l.b16 %v423
        %v605 = vunpack.c.h.b16 %v423
        %v606 = vunpack.c.l.b16 %v424
        %v607 = vunpack.c.h.b16 %v424
        %v608 = vunpack.c.l.b16 %v425
        %v609 = vunpack.c.h.b16 %v425
        %v610 = vunpack.c.l.b16 %v426
        %v611 = vunpack.c.h.b16 %v426
        %v612 = vunpack.c.l.b16 %v427
        %v613 = vunpack.c.h.b16 %v427
        %v614 = vunpack.c.l.b16 %v428
        %v615 = vunpack.c.h.b16 %v428
        %v616 = vpack.c.b16 %v586, %v584
        %v617 = vpack.c.b16 %v587, %v585
        %v618 = vpack.c.b16 %v590, %v588
        %v619 = vpack.c.b16 %v591, %v589
        %v620 = vpack.c.b16 %v594, %v592
        %v621 = vpack.c.b16 %v595, %v593
        %v622 = vpack.c.b16 %v598, %v596
        %v623 = vpack.c.b16 %v599, %v597
        %v624 = vpack.c.b16 %v602, %v600
        %v625 = vpack.c.b16 %v603, %v601
        %v626 = vpack.c.b16 %v606, %v604
        %v627 = vpack.c.b16 %v607, %v605
        %v628 = vpack.c.b16 %v610, %v608
        %v629 = vpack.c.b16 %v611, %v609
        %v630 = vpack.c.b16 %v614, %v612
        %v631 = vpack.c.b16 %v615, %v613
        %648 = vmatprep.subr.bf16.mxu0 %v631
        %649 = vmatpush1.bf16.msra.mxu0 %v630
        %650 = vmatprep.subr.bf16.mxu0 %v629
        %651 = vmatpush1.bf16.msra.mxu0 %v628
        %652 = vmatprep.subr.bf16.mxu0 %v627
        %653 = vmatpush1.bf16.msra.mxu0 %v626
        %654 = vmatprep.subr.bf16.mxu0 %v625
        %655 = vmatpush1.bf16.msra.mxu0 %v624
        %656 = vmatprep.subr.bf16.mxu0 %v623
        %657 = vmatpush1.bf16.msra.mxu0 %v622
        %658 = vmatprep.subr.bf16.mxu0 %v621
        %659 = vmatpush1.bf16.msra.mxu0 %v620
        %660 = vmatprep.subr.bf16.mxu0 %v619
        %661 = vmatpush1.bf16.msra.mxu0 %v618
        %662 = vmatprep.subr.bf16.mxu0 %v617
        %663 = vmatpush1.bf16.msra.mxu0 %v616
        %664 = vmatprep.subr.bf16.mxu0 0
        %665 = vmatpush2.bf16.msra.mxu0 0
        %666 = vmatprep.subr.bf16.mxu0 0
        %667 = vmatpush2.bf16.msra.mxu0 0
        %668 = vmatprep.subr.bf16.mxu0 0
        %669 = vmatpush2.bf16.msra.mxu0 0
        %670 = vmatprep.subr.bf16.mxu0 0
        %671 = vmatpush2.bf16.msra.mxu0 0
        %672 = vmatprep.subr.bf16.mxu0 0
        %673 = vmatpush2.bf16.msra.mxu0 0
        %674 = vmatprep.subr.bf16.mxu0 0
        %675 = vmatpush2.bf16.msra.mxu0 0
        %676 = vmatprep.subr.bf16.mxu0 0
        %677 = vmatpush2.bf16.msra.mxu0 0
        %678 = vmatprep.subr.bf16.mxu0 0
        %679 = vmatpush2.bf16.msra.mxu0 0
        %680 = vmatprep.mubr.bf16.mxu0 0
        %681 = vmatmul.mubr.bf16.gmra.mxu0 %v412
        %v682 = vpop.f32.mrf.mxu0
        %v683 = vadd.f32 %v562, %v682
        %v684 = vpop.f32.mrf.mxu0
        %v685 = vadd.f32 %v564, %v684
        %v686 = vpop.f32.mrf.mxu0
        %v687 = vpop.f32.mrf.mxu0
        %688 = vdwg.mxu0
        %v689 = vld [vmem:[#allocation2] sm:$0xf]
        %v690 = vld [vmem:[#allocation2 + $0x4] sm:$0x1]
        %s691 = scalar_lea.vmem %s4, 256
        %v692 = vld [vmem:[%s691] sm:$0xff]
        %v693 = vld [vmem:[%s691 + $0x8] sm:$0xff]
        %v694 = vld [vmem:[%s691 + $0x10] sm:$0xff]
        %v695 = vld [vmem:[%s691 + $0x18] sm:$0xff]
        %v696 = vld [vmem:[%s691 + $0x20] sm:$0xff]
        %v697 = vld [vmem:[%s691 + $0x28] sm:$0xff]
        %v698 = vld [vmem:[%s691 + $0x30] sm:$0xff]
        %v699 = vld [vmem:[%s691 + $0x38] sm:$0xff]
        %v700 = vld [vmem:[%s691 + $0x40] sm:$0xff]
        %v701 = vld [vmem:[%s691 + $0x48] sm:$0xff]
        %v702 = vld [vmem:[%s691 + $0x50] sm:$0xff]
        %v703 = vld [vmem:[%s691 + $0x58] sm:$0xff]
        %v704 = vld [vmem:[%s691 + $0x60] sm:$0xff]
        %v705 = vld [vmem:[%s691 + $0x68] sm:$0xff]
        %v706 = vld [vmem:[%s691 + $0x70] sm:$0xff]
        %v707 = vld [vmem:[%s691 + $0x78] sm:$0xff]
        %v710 = vunpack.c.l.b16 %v689
        %v711 = vunpack.c.l.b16 %v690
        %v712 = vpack.c.b16 %v711, %v710
        %v714 = vshrl.u32 %v712, 16
        %v716 = vshll.u32 %v712, 16
        %v718 = vrot.slane %v716, 1
        %v719 = vor.u32 %v714, %v718
        %v737 = vunpack.c.l.b16 %v692
        %v738 = vunpack.c.h.b16 %v692
        %v739 = vunpack.c.l.b16 %v693
        %v740 = vunpack.c.h.b16 %v693
        %v741 = vunpack.c.l.b16 %v694
        %v742 = vunpack.c.h.b16 %v694
        %v743 = vunpack.c.l.b16 %v695
        %v744 = vunpack.c.h.b16 %v695
        %v745 = vunpack.c.l.b16 %v696
        %v746 = vunpack.c.h.b16 %v696
        %v747 = vunpack.c.l.b16 %v697
        %v748 = vunpack.c.h.b16 %v697
        %v749 = vunpack.c.l.b16 %v698
        %v750 = vunpack.c.h.b16 %v698
        %v751 = vunpack.c.l.b16 %v699
        %v752 = vunpack.c.h.b16 %v699
        %v753 = vunpack.c.l.b16 %v700
        %v754 = vunpack.c.h.b16 %v700
        %v755 = vunpack.c.l.b16 %v701
        %v756 = vunpack.c.h.b16 %v701
        %v757 = vunpack.c.l.b16 %v702
        %v758 = vunpack.c.h.b16 %v702
        %v759 = vunpack.c.l.b16 %v703
        %v760 = vunpack.c.h.b16 %v703
        %v761 = vunpack.c.l.b16 %v704
        %v762 = vunpack.c.h.b16 %v704
        %v763 = vunpack.c.l.b16 %v705
        %v764 = vunpack.c.h.b16 %v705
        %v765 = vunpack.c.l.b16 %v706
        %v766 = vunpack.c.h.b16 %v706
        %v767 = vunpack.c.l.b16 %v707
        %v768 = vunpack.c.h.b16 %v707
        %v769 = vpack.c.b16 %v739, %v737
        %v770 = vpack.c.b16 %v740, %v738
        %v771 = vpack.c.b16 %v743, %v741
        %v772 = vpack.c.b16 %v744, %v742
        %v773 = vpack.c.b16 %v747, %v745
        %v774 = vpack.c.b16 %v748, %v746
        %v775 = vpack.c.b16 %v751, %v749
        %v776 = vpack.c.b16 %v752, %v750
        %v777 = vpack.c.b16 %v755, %v753
        %v778 = vpack.c.b16 %v756, %v754
        %v779 = vpack.c.b16 %v759, %v757
        %v780 = vpack.c.b16 %v760, %v758
        %v781 = vpack.c.b16 %v763, %v761
        %v782 = vpack.c.b16 %v764, %v762
        %v783 = vpack.c.b16 %v767, %v765
        %v784 = vpack.c.b16 %v768, %v766
        %801 = vmatprep.subr.bf16.mxu0 %v784
        %802 = vmatpush1.bf16.msra.mxu0 %v783
        %803 = vmatprep.subr.bf16.mxu0 %v782
        %804 = vmatpush1.bf16.msra.mxu0 %v781
        %805 = vmatprep.subr.bf16.mxu0 %v780
        %806 = vmatpush1.bf16.msra.mxu0 %v779
        %807 = vmatprep.subr.bf16.mxu0 %v778
        %808 = vmatpush1.bf16.msra.mxu0 %v777
        %809 = vmatprep.subr.bf16.mxu0 %v776
        %810 = vmatpush1.bf16.msra.mxu0 %v775
        %811 = vmatprep.subr.bf16.mxu0 %v774
        %812 = vmatpush1.bf16.msra.mxu0 %v773
        %813 = vmatprep.subr.bf16.mxu0 %v772
        %814 = vmatpush1.bf16.msra.mxu0 %v771
        %815 = vmatprep.subr.bf16.mxu0 %v770
        %816 = vmatpush1.bf16.msra.mxu0 %v769
        %817 = vmatprep.subr.bf16.mxu0 0
        %818 = vmatpush2.bf16.msra.mxu0 0
        %819 = vmatprep.subr.bf16.mxu0 0
        %820 = vmatpush2.bf16.msra.mxu0 0
        %821 = vmatprep.subr.bf16.mxu0 0
        %822 = vmatpush2.bf16.msra.mxu0 0
        %823 = vmatprep.subr.bf16.mxu0 0
        %824 = vmatpush2.bf16.msra.mxu0 0
        %825 = vmatprep.subr.bf16.mxu0 0
        %826 = vmatpush2.bf16.msra.mxu0 0
        %827 = vmatprep.subr.bf16.mxu0 0
        %828 = vmatpush2.bf16.msra.mxu0 0
        %829 = vmatprep.subr.bf16.mxu0 0
        %830 = vmatpush2.bf16.msra.mxu0 0
        %831 = vmatprep.subr.bf16.mxu0 0
        %832 = vmatpush2.bf16.msra.mxu0 0
        %833 = vmatprep.mubr.bf16.mxu0 0
        %834 = vmatmul.mubr.bf16.gmra.mxu0 %v719
        %v835 = vpop.f32.mrf.mxu0
        %v836 = vadd.f32 0.0, %v835
        %v837 = vpop.f32.mrf.mxu0
        %v838 = vadd.f32 0.0, %v837
        %v839 = vpop.f32.mrf.mxu0
        %v840 = vpop.f32.mrf.mxu0
        %841 = vdwg.mxu0
        %v842 = vadd.f32 %v683, %v836
        %v843 = vadd.f32 %v685, %v838
        %v844 = vld [vmem:[#allocation3] sm:$0xf]
        %v845 = vld [vmem:[#allocation3 + $0x4] sm:$0x1]
        %s846 = scalar_lea.vmem %s4, 384
        %v847 = vld [vmem:[%s846] sm:$0xff]
        %v848 = vld [vmem:[%s846 + $0x8] sm:$0xff]
        %v849 = vld [vmem:[%s846 + $0x10] sm:$0xff]
        %v850 = vld [vmem:[%s846 + $0x18] sm:$0xff]
        %v851 = vld [vmem:[%s846 + $0x20] sm:$0xff]
        %v852 = vld [vmem:[%s846 + $0x28] sm:$0xff]
        %v853 = vld [vmem:[%s846 + $0x30] sm:$0xff]
        %v854 = vld [vmem:[%s846 + $0x38] sm:$0xff]
        %v855 = vld [vmem:[%s846 + $0x40] sm:$0xff]
        %v856 = vld [vmem:[%s846 + $0x48] sm:$0xff]
        %v857 = vld [vmem:[%s846 + $0x50] sm:$0xff]
        %v858 = vld [vmem:[%s846 + $0x58] sm:$0xff]
        %v859 = vld [vmem:[%s846 + $0x60] sm:$0xff]
        %v860 = vld [vmem:[%s846 + $0x68] sm:$0xff]
        %v861 = vld [vmem:[%s846 + $0x70] sm:$0xff]
        %v862 = vld [vmem:[%s846 + $0x78] sm:$0xff]
        %v865 = vunpack.c.l.b16 %v844
        %v866 = vunpack.c.l.b16 %v845
        %v867 = vpack.c.b16 %v866, %v865
        %v869 = vshrl.u32 %v867, 16
        %v871 = vshll.u32 %v867, 16
        %v873 = vrot.slane %v871, 1
        %v874 = vor.u32 %v869, %v873
        %v892 = vunpack.c.l.b16 %v847
        %v893 = vunpack.c.h.b16 %v847
        %v894 = vunpack.c.l.b16 %v848
        %v895 = vunpack.c.h.b16 %v848
        %v896 = vunpack.c.l.b16 %v849
        %v897 = vunpack.c.h.b16 %v849
        %v898 = vunpack.c.l.b16 %v850
        %v899 = vunpack.c.h.b16 %v850
        %v900 = vunpack.c.l.b16 %v851
        %v901 = vunpack.c.h.b16 %v851
        %v902 = vunpack.c.l.b16 %v852
        %v903 = vunpack.c.h.b16 %v852
        %v904 = vunpack.c.l.b16 %v853
        %v905 = vunpack.c.h.b16 %v853
        %v906 = vunpack.c.l.b16 %v854
        %v907 = vunpack.c.h.b16 %v854
        %v908 = vunpack.c.l.b16 %v855
        %v909 = vunpack.c.h.b16 %v855
        %v910 = vunpack.c.l.b16 %v856
        %v911 = vunpack.c.h.b16 %v856
        %v912 = vunpack.c.l.b16 %v857
        %v913 = vunpack.c.h.b16 %v857
        %v914 = vunpack.c.l.b16 %v858
        %v915 = vunpack.c.h.b16 %v858
        %v916 = vunpack.c.l.b16 %v859
        %v917 = vunpack.c.h.b16 %v859
        %v918 = vunpack.c.l.b16 %v860
        %v919 = vunpack.c.h.b16 %v860
        %v920 = vunpack.c.l.b16 %v861
        %v921 = vunpack.c.h.b16 %v861
        %v922 = vunpack.c.l.b16 %v862
        %v923 = vunpack.c.h.b16 %v862
        %v924 = vpack.c.b16 %v894, %v892
        %v925 = vpack.c.b16 %v895, %v893
        %v926 = vpack.c.b16 %v898, %v896
        %v927 = vpack.c.b16 %v899, %v897
        %v928 = vpack.c.b16 %v902, %v900
        %v929 = vpack.c.b16 %v903, %v901
        %v930 = vpack.c.b16 %v906, %v904
        %v931 = vpack.c.b16 %v907, %v905
        %v932 = vpack.c.b16 %v910, %v908
        %v933 = vpack.c.b16 %v911, %v909
        %v934 = vpack.c.b16 %v914, %v912
        %v935 = vpack.c.b16 %v915, %v913
        %v936 = vpack.c.b16 %v918, %v916
        %v937 = vpack.c.b16 %v919, %v917
        %v938 = vpack.c.b16 %v922, %v920
        %v939 = vpack.c.b16 %v923, %v921
        %956 = vmatprep.subr.bf16.mxu0 %v939
        %957 = vmatpush1.bf16.msra.mxu0 %v938
        %958 = vmatprep.subr.bf16.mxu0 %v937
        %959 = vmatpush1.bf16.msra.mxu0 %v936
        %960 = vmatprep.subr.bf16.mxu0 %v935
        %961 = vmatpush1.bf16.msra.mxu0 %v934
        %962 = vmatprep.subr.bf16.mxu0 %v933
        %963 = vmatpush1.bf16.msra.mxu0 %v932
        %964 = vmatprep.subr.bf16.mxu0 %v931
        %965 = vmatpush1.bf16.msra.mxu0 %v930
        %966 = vmatprep.subr.bf16.mxu0 %v929
        %967 = vmatpush1.bf16.msra.mxu0 %v928
        %968 = vmatprep.subr.bf16.mxu0 %v927
        %969 = vmatpush1.bf16.msra.mxu0 %v926
        %970 = vmatprep.subr.bf16.mxu0 %v925
        %971 = vmatpush1.bf16.msra.mxu0 %v924
        %972 = vmatprep.subr.bf16.mxu0 0
        %973 = vmatpush2.bf16.msra.mxu0 0
        %974 = vmatprep.subr.bf16.mxu0 0
        %975 = vmatpush2.bf16.msra.mxu0 0
        %976 = vmatprep.subr.bf16.mxu0 0
        %977 = vmatpush2.bf16.msra.mxu0 0
        %978 = vmatprep.subr.bf16.mxu0 0
        %979 = vmatpush2.bf16.msra.mxu0 0
        %980 = vmatprep.subr.bf16.mxu0 0
        %981 = vmatpush2.bf16.msra.mxu0 0
        %982 = vmatprep.subr.bf16.mxu0 0
        %983 = vmatpush2.bf16.msra.mxu0 0
        %984 = vmatprep.subr.bf16.mxu0 0
        %985 = vmatpush2.bf16.msra.mxu0 0
        %986 = vmatprep.subr.bf16.mxu0 0
        %987 = vmatpush2.bf16.msra.mxu0 0
        %988 = vmatprep.mubr.bf16.mxu0 0
        %989 = vmatmul.mubr.bf16.gmra.mxu0 %v874
        %v990 = vpop.f32.mrf.mxu0
        %v991 = vadd.f32 0.0, %v990
        %v992 = vpop.f32.mrf.mxu0
        %v993 = vadd.f32 0.0, %v992
        %v994 = vpop.f32.mrf.mxu0
        %v995 = vpop.f32.mrf.mxu0
        %996 = vdwg.mxu0
        %v997 = vadd.f32 %v842, %v991
        %v998 = vadd.f32 %v843, %v993
        %v999 = vld [vmem:[#allocation2] sm:$0xe]
        %s1000 = scalar_lea.vmem %s4, 512
        %v1001 = vld [vmem:[%s1000] sm:$0xff]
        %v1002 = vld [vmem:[%s1000 + $0x8] sm:$0xff]
        %v1003 = vld [vmem:[%s1000 + $0x10] sm:$0xff]
        %v1004 = vld [vmem:[%s1000 + $0x18] sm:$0xff]
        %v1005 = vld [vmem:[%s1000 + $0x20] sm:$0xff]
        %v1006 = vld [vmem:[%s1000 + $0x28] sm:$0xff]
        %v1007 = vld [vmem:[%s1000 + $0x30] sm:$0xff]
        %v1008 = vld [vmem:[%s1000 + $0x38] sm:$0xff]
        %v1009 = vld [vmem:[%s1000 + $0x40] sm:$0xff]
        %v1010 = vld [vmem:[%s1000 + $0x48] sm:$0xff]
        %v1011 = vld [vmem:[%s1000 + $0x50] sm:$0xff]
        %v1012 = vld [vmem:[%s1000 + $0x58] sm:$0xff]
        %v1013 = vld [vmem:[%s1000 + $0x60] sm:$0xff]
        %v1014 = vld [vmem:[%s1000 + $0x68] sm:$0xff]
        %v1015 = vld [vmem:[%s1000 + $0x70] sm:$0xff]
        %v1016 = vld [vmem:[%s1000 + $0x78] sm:$0xff]
        %v1018 = vunpack.c.l.b16 %v999
        %v1019 = vpack.c.b16 %v711, %v1018
        %v1020 = vrot.slane %v1019, 1
        %v1038 = vunpack.c.l.b16 %v1001
        %v1039 = vunpack.c.h.b16 %v1001
        %v1040 = vunpack.c.l.b16 %v1002
        %v1041 = vunpack.c.h.b16 %v1002
        %v1042 = vunpack.c.l.b16 %v1003
        %v1043 = vunpack.c.h.b16 %v1003
        %v1044 = vunpack.c.l.b16 %v1004
        %v1045 = vunpack.c.h.b16 %v1004
        %v1046 = vunpack.c.l.b16 %v1005
        %v1047 = vunpack.c.h.b16 %v1005
        %v1048 = vunpack.c.l.b16 %v1006
        %v1049 = vunpack.c.h.b16 %v1006
        %v1050 = vunpack.c.l.b16 %v1007
        %v1051 = vunpack.c.h.b16 %v1007
        %v1052 = vunpack.c.l.b16 %v1008
        %v1053 = vunpack.c.h.b16 %v1008
        %v1054 = vunpack.c.l.b16 %v1009
        %v1055 = vunpack.c.h.b16 %v1009
        %v1056 = vunpack.c.l.b16 %v1010
        %v1057 = vunpack.c.h.b16 %v1010
        %v1058 = vunpack.c.l.b16 %v1011
        %v1059 = vunpack.c.h.b16 %v1011
        %v1060 = vunpack.c.l.b16 %v1012
        %v1061 = vunpack.c.h.b16 %v1012
        %v1062 = vunpack.c.l.b16 %v1013
        %v1063 = vunpack.c.h.b16 %v1013
        %v1064 = vunpack.c.l.b16 %v1014
        %v1065 = vunpack.c.h.b16 %v1014
        %v1066 = vunpack.c.l.b16 %v1015
        %v1067 = vunpack.c.h.b16 %v1015
        %v1068 = vunpack.c.l.b16 %v1016
        %v1069 = vunpack.c.h.b16 %v1016
        %v1070 = vpack.c.b16 %v1040, %v1038
        %v1071 = vpack.c.b16 %v1041, %v1039
        %v1072 = vpack.c.b16 %v1044, %v1042
        %v1073 = vpack.c.b16 %v1045, %v1043
        %v1074 = vpack.c.b16 %v1048, %v1046
        %v1075 = vpack.c.b16 %v1049, %v1047
        %v1076 = vpack.c.b16 %v1052, %v1050
        %v1077 = vpack.c.b16 %v1053, %v1051
        %v1078 = vpack.c.b16 %v1056, %v1054
        %v1079 = vpack.c.b16 %v1057, %v1055
        %v1080 = vpack.c.b16 %v1060, %v1058
        %v1081 = vpack.c.b16 %v1061, %v1059
        %v1082 = vpack.c.b16 %v1064, %v1062
        %v1083 = vpack.c.b16 %v1065, %v1063
        %v1084 = vpack.c.b16 %v1068, %v1066
        %v1085 = vpack.c.b16 %v1069, %v1067
        %1102 = vmatprep.subr.bf16.mxu0 %v1085
        %1103 = vmatpush1.bf16.msra.mxu0 %v1084
        %1104 = vmatprep.subr.bf16.mxu0 %v1083
        %1105 = vmatpush1.bf16.msra.mxu0 %v1082
        %1106 = vmatprep.subr.bf16.mxu0 %v1081
        %1107 = vmatpush1.bf16.msra.mxu0 %v1080
        %1108 = vmatprep.subr.bf16.mxu0 %v1079
        %1109 = vmatpush1.bf16.msra.mxu0 %v1078
        %1110 = vmatprep.subr.bf16.mxu0 %v1077
        %1111 = vmatpush1.bf16.msra.mxu0 %v1076
        %1112 = vmatprep.subr.bf16.mxu0 %v1075
        %1113 = vmatpush1.bf16.msra.mxu0 %v1074
        %1114 = vmatprep.subr.bf16.mxu0 %v1073
        %1115 = vmatpush1.bf16.msra.mxu0 %v1072
        %1116 = vmatprep.subr.bf16.mxu0 %v1071
        %1117 = vmatpush1.bf16.msra.mxu0 %v1070
        %1118 = vmatprep.subr.bf16.mxu0 0
        %1119 = vmatpush2.bf16.msra.mxu0 0
        %1120 = vmatprep.subr.bf16.mxu0 0
        %1121 = vmatpush2.bf16.msra.mxu0 0
        %1122 = vmatprep.subr.bf16.mxu0 0
        %1123 = vmatpush2.bf16.msra.mxu0 0
        %1124 = vmatprep.subr.bf16.mxu0 0
        %1125 = vmatpush2.bf16.msra.mxu0 0
        %1126 = vmatprep.subr.bf16.mxu0 0
        %1127 = vmatpush2.bf16.msra.mxu0 0
        %1128 = vmatprep.subr.bf16.mxu0 0
        %1129 = vmatpush2.bf16.msra.mxu0 0
        %1130 = vmatprep.subr.bf16.mxu0 0
        %1131 = vmatpush2.bf16.msra.mxu0 0
        %1132 = vmatprep.subr.bf16.mxu0 0
        %1133 = vmatpush2.bf16.msra.mxu0 0
        %1134 = vmatprep.mubr.bf16.mxu0 0
        %1135 = vmatmul.mubr.bf16.gmra.mxu0 %v1020
        %v1136 = vpop.f32.mrf.mxu0
        %v1137 = vadd.f32 0.0, %v1136
        %v1138 = vpop.f32.mrf.mxu0
        %v1139 = vadd.f32 0.0, %v1138
        %v1140 = vpop.f32.mrf.mxu0
        %v1141 = vpop.f32.mrf.mxu0
        %1142 = vdwg.mxu0
        %v1143 = vadd.f32 %v997, %v1137
        %v1144 = vadd.f32 %v998, %v1139
        %v1145 = vld [vmem:[%s5] sm:$0x3]
        %v1147 = vlaneseq
        %v1148 = vshrl.u32 %v1147, 7
        %v1149 = vsub.s32 0, %v1148
        %v1150 = vrot.slane %v1145, %v1149
        %v1151 = vlaneseq
        %v1152 = vshrl.u32 %v1151, 7
        %v1153 = vsub.s32 1, %v1152
        %v1154 = vrot.slane %v1145, %v1153
        %v1157 = vadd.f32 %v1143, %v1150
        %v1158 = vadd.f32 %v1144, %v1154
        %v1159 = vmax.f32 %v1157, 0.0
        %v1160 = vmax.f32 %v1158, 0.0
        %v1161 = vld [vmem:[%s402] sm:$0xff]
        %v1162 = vld [vmem:[%s402 + $0x8] sm:$0xff]
        %v1163 = vadd.f32 %v1159, %v1161
        %v1164 = vadd.f32 %v1160, %v1162
        %1165 = vst [vmem:[%s369] sm:$0xff] %v1163
        %1166 = vst [vmem:[%s369 + $0x8] sm:$0xff] %v1164
        %s1167 = sand.u32 %s223, 1
        %s1168 = scalar_lea.sflag [#allocation5], %s1167
        %s1169 = sand.u32 %s223, 1
        %s1170 = smul.addr %s1169, 16
        %s1171 = scalar_lea.vmem [#allocation4], %s1170
        // Predicated region
        $region49: #{encoder_forward.5} parent=47 // pred_check
          %p1172 = pneg %p233
        $region50: #{encoder_forward.5} parent=47 // pred_check_branch
          %1174 = sbr.rel (%p1172) target = $region52
        $region51: #{encoder_forward.5} parent=47 // pred_region
          %s1176 = ssub.s32 256, 256
          %1177 = vsyncadd %s1168, %s1176
          %s1178 = smul.addr %s25, 2
          %s1179 = smul.addr %s26, 2
          %s1180 = sadd.s32 %s1178, %s1179
          %s1181 = smul.addr %s1180, 128
          %s1182 = scalar_lea.hbm %s7, %s1181
          %s1184 = sshll.u32 %s1171, 4
          %s1185 = int_to_ptr.vmem [resolvable:$true] %s1184
          %1187 = dma.vmem_to_hbm [thread:$0]  %s1185, 256, %s1182, %s1168
        $region52: #{encoder_forward.5} parent=47 // pred_fallthru
          _
      $region48: #{encoder_forward.5} parent=5 // pred_fallthru
        _
      %p1188 = scmp.le.s32.totalorder 2, %s16
      // Predicated region
      $region53: #{encoder_forward.5} parent=5 // pred_check
        %p1189 = pneg %p1188
      $region54: #{encoder_forward.5} parent=5 // pred_check_branch
        %1191 = sbr.rel (%p1189) target = $region56
      $region55: #{encoder_forward.5} parent=5 // pred_region
        %s1192 = ssub.s32 %s16, 2
        // Predicated region
        $region57: #{encoder_forward.5} parent=55 // pred_check
          %p1193 = pneg %p239
        $region58: #{encoder_forward.5} parent=55 // pred_check_branch
          %1195 = sbr.rel (%p1193) target = $region60
        $region59: #{encoder_forward.5} parent=55 // pred_region
          %s1196 = sand.u32 %s224, 1
          %s1197 = scalar_lea.sflag [#allocation5], %s1196
          %s1198 = sand.u32 %s224, 1
          %s1199 = smul.addr %s1198, 16
          %s1200 = scalar_lea.vmem [#allocation4], %s1199
          %1201 = dma.done %s1197, 256
        $region60: #{encoder_forward.5} parent=55 // pred_fallthru
          _
      $region56: #{encoder_forward.5} parent=5 // pred_fallthru
        _
    $region6: #{encoder_forward.5} parent=1 // loop_footer
      %s20 = sadd.s32 1, %s16
    $region7: #{encoder_forward.5} parent=1 // loop_footer_branch
      %15 = sbr.rel target = $region3
    $region8: #{encoder_forward.5} parent=1 // loop_exit
      _
    %1202 = vsyncpa [#allocation5], 1
    %s1203 = scalar_lea.sflag [#allocation5], 1
    %1204 = vsyncpa %s1203, 1

</llo_original>
